<compile_context>
chip_gen: v7x
topology: tpu7x:2x2x1
jax: 0.10.0
libtpu: 0.0.40
codegen_flags: <defaults>
</compile_context>

<pallas_src>
import functools

import jax
import jax.numpy as jnp
from jax.experimental import pallas as pl
from jax.experimental.pallas import tpu as pltpu


# ----------------------------------------------------------------------------
# small static helpers
# ----------------------------------------------------------------------------
def _round_up(x, m):
    return ((x + m - 1) // m) * m


def _pick_token_tile(n_tokens_per_image, cap):
    """Largest multiple of 8 that divides the (padded) per-image token count, <= cap."""
    best = None
    tm = 8
    limit = min(n_tokens_per_image, max(cap, 8))
    while tm <= limit:
        if n_tokens_per_image % tm == 0:
            best = tm
        tm += 8
    return best


def _largest_divisor_leq(n, cap):
    for d in range(min(n, max(cap, 1)), 0, -1):
        if n % d == 0:
            return d
    return 1


# ----------------------------------------------------------------------------
# Kernel 1: fused  tokens = LN(patches @ Wp + bp + pos);  logits = tokens @ Wd + bd
#   grid over token tiles; all weights + pos kept VMEM-resident, single-buffered.
# ----------------------------------------------------------------------------
def enc_dec_kernel(patches_ref, wp_ref, bp_ref, pos_ref, gamma_ref, beta_ref,
                   wd_ref, bd_ref, out_ref, *, eps, tm, blocks_per_img):
    i = pl.program_id(0)

    # patch embed (MXU, f32 accumulation even for bf16 inputs)
    t = jnp.dot(patches_ref[...], wp_ref[...], preferred_element_type=jnp.float32)

    # positional embedding: pos is fully VMEM-resident in f32; slice the rows of
    # this token tile. Offset is a multiple of TM (TM divides tokens-per-image,
    # tiles never straddle images), so the sublane slice stays (8,128)-aligned.
    if blocks_per_img == 1:
        pos = pos_ref[...]
    else:
        off = pl.multiple_of((i % blocks_per_img) * tm, tm)
        pos = pos_ref[pl.ds(off, tm), :]
    t = t + bp_ref[...] + pos

    # single-pass LayerNorm statistics in f32 (v5e has no bf16 VPU/EUP path)
    mu = jnp.mean(t, axis=-1, keepdims=True)
    msq = jnp.mean(t * t, axis=-1, keepdims=True)
    var = jnp.maximum(msq - mu * mu, 0.0)
    tn = (t - mu) * jax.lax.rsqrt(var + eps)
    tn = tn * gamma_ref[...] + beta_ref[...]

    # decoder head: lane-dense (n_cls padded to a multiple of 128) -> unmasked stores
    logits = jnp.dot(tn.astype(wd_ref.dtype), wd_ref[...],
                     preferred_element_type=jnp.float32)
    out_ref[...] = (logits + bd_ref[...]).astype(out_ref.dtype)


def run_enc_dec(patches, wp, bp, pos, gamma, beta, wd, bd, *,
                eps=1e-6, out_dtype=jnp.float32, vmem_budget_bytes=40 << 20):
    BN, K = patches.shape
    N, D = pos.shape                      # N = (padded) tokens per image
    nc_pad = wd.shape[1]
    assert BN % N == 0
    assert N % 8 == 0, "pad tokens-per-image to a multiple of 8 in the wrapper"

    mm_isz = jnp.dtype(patches.dtype).itemsize
    wd_isz = jnp.dtype(wd.dtype).itemsize
    out_isz = jnp.dtype(out_dtype).itemsize

    # --- VMEM budgeting (per TensorCore; <= ~40 MiB is safe on v7x's 64 MiB/TC) ---
    # resident, single-buffered operands
    resident = (K * D * mm_isz            # wp
                + 3 * D * 4               # bp, gamma, beta (f32)
                + N * D * 4               # pos (f32, resident)
                + D * nc_pad * wd_isz     # wd
                + nc_pad * 4)             # bd
    # per-token-row cost: double-buffered streamed patches + output tiles,
    # plus f32 intermediates (t/tn and logits).
    per_row = 2 * K * mm_isz + 2 * nc_pad * out_isz + 2 * D * 4 + nc_pad * 4
    headroom = 1 << 20
    cap = (vmem_budget_bytes - resident - headroom) // per_row
    cap = max(8, (cap // 8) * 8)

    TM = _pick_token_tile(N, cap)
    assert TM is not None and BN % TM == 0
    blocks_per_img = N // TM

    def const2(i):
        return (0, 0)

    in_specs = [
        pl.BlockSpec((TM, K), lambda i: (i, 0)),                             # patches (streamed)
        pl.BlockSpec((K, D), const2, pipeline_mode=pl.Buffered(1)),          # wp    (resident)
        pl.BlockSpec((1, D), const2, pipeline_mode=pl.Buffered(1)),          # bp    (resident)
        pl.BlockSpec((N, D), const2, pipeline_mode=pl.Buffered(1)),          # pos   (resident, f32)
        pl.BlockSpec((1, D), const2, pipeline_mode=pl.Buffered(1)),          # gamma (resident)
        pl.BlockSpec((1, D), const2, pipeline_mode=pl.Buffered(1)),          # beta  (resident)
        pl.BlockSpec((D, nc_pad), const2, pipeline_mode=pl.Buffered(1)),     # wd    (resident)
        pl.BlockSpec((1, nc_pad), const2, pipeline_mode=pl.Buffered(1)),     # bd    (resident)
    ]

    kernel = functools.partial(enc_dec_kernel, eps=eps, tm=TM,
                               blocks_per_img=blocks_per_img)
    return pl.pallas_call(
        kernel,
        out_shape=jax.ShapeDtypeStruct((BN, nc_pad), out_dtype),
        grid=(BN // TM,),
        in_specs=in_specs,
        out_specs=pl.BlockSpec((TM, nc_pad), lambda i: (i, 0)),
        compiler_params=pltpu.CompilerParams(
            # token tiles are independent -> megacore sharding on 2-TC parts.
            # TODO(synk): verify via xprof on v7x that this axis is split across
            # both TensorCores; fall back to an explicit core axis if not.
            dimension_semantics=("parallel",),
            vmem_limit_bytes=int(vmem_budget_bytes)),
    )(patches, wp, bp, pos, gamma, beta, wd, bd)


# ----------------------------------------------------------------------------
# Kernel 2: bilinear upsample of (h, w) mask planes to (H, W), G planes per step.
#   Fused per plane: width pass (lane-dense (h, W) intermediate) then height pass.
# ----------------------------------------------------------------------------
def interp_kernel(m_ref, awt_ref, ah_ref, out_ref):
    ah = ah_ref[...]
    awt = awt_ref[...]
    # G is small & static -> unrolled; live intermediate is a single (h, W) plane.
    for g in range(out_ref.shape[0]):
        tmp = jnp.dot(m_ref[g], awt, preferred_element_type=jnp.float32)  # (h, W)
        out_ref[g] = jnp.dot(ah, tmp.astype(ah.dtype),
                             preferred_element_type=jnp.float32).astype(out_ref.dtype)


def run_bilinear(masks_grid, a_h, a_wt, *,
                 out_dtype=jnp.float32, vmem_budget_bytes=24 << 20):
    # masks_grid: (BC, h, w) ; a_h: (H, h) ; a_wt: (w, W)
    BC, h, w = masks_grid.shape
    H = a_h.shape[0]
    W = a_wt.shape[1]

    m_isz = jnp.dtype(masks_grid.dtype).itemsize
    a_isz = jnp.dtype(a_h.dtype).itemsize
    out_isz = jnp.dtype(out_dtype).itemsize

    # corrected accounting: A matrices single-buffered + per-plane cost of
    # double-buffered input block, double-buffered output block and the (h, W)
    # f32 width-pass intermediate.
    resident = (H * h + w * W) * a_isz
    per_plane = 2 * h * w * m_isz + 2 * H * W * out_isz + h * W * 4
    headroom = 1 << 20
    g_cap = max(1, (vmem_budget_bytes - resident - headroom) // per_plane)
    G = _largest_divisor_leq(BC, int(g_cap))

    return pl.pallas_call(
        interp_kernel,
        out_shape=jax.ShapeDtypeStruct((BC, H, W), out_dtype),
        grid=(BC // G,),
        in_specs=[
            pl.BlockSpec((G, h, w), lambda i: (i, 0, 0)),                          # masks (streamed)
            pl.BlockSpec((w, W), lambda i: (0, 0), pipeline_mode=pl.Buffered(1)),  # A_w^T (resident)
            pl.BlockSpec((H, h), lambda i: (0, 0), pipeline_mode=pl.Buffered(1)),  # A_h   (resident)
        ],
        out_specs=pl.BlockSpec((G, H, W), lambda i: (i, 0, 0)),
        compiler_params=pltpu.CompilerParams(
            dimension_semantics=("parallel",),
            vmem_limit_bytes=int(vmem_budget_bytes)),
    )(masks_grid, a_wt, a_h)


# ----------------------------------------------------------------------------
# Glue helpers (plain JAX)
# ----------------------------------------------------------------------------
def extract_patches(im, P):
    # im: (B, C, H, W) NCHW -> (B*N, C*P*P), token order row-major over patch grid
    B, C, H, W = im.shape
    h, w = H // P, W // P
    x = im.reshape(B, C, h, P, w, P)
    x = x.transpose(0, 2, 4, 1, 3, 5)          # (B, h, w, C, P, P)
    return x.reshape(B * h * w, C * P * P)


def bilinear_matrix(out_size, in_size):
    # F.interpolate(mode='bilinear', align_corners=False) interpolation matrix.
    i = jnp.arange(out_size, dtype=jnp.float32)
    src = (i + 0.5) * (in_size / out_size) - 0.5
    src = jnp.clip(src, 0.0, in_size - 1.0)
    i0 = jnp.floor(src).astype(jnp.int32)
    i1 = jnp.minimum(i0 + 1, in_size - 1)
    w1 = src - i0.astype(jnp.float32)
    w0 = 1.0 - w1
    A = jnp.zeros((out_size, in_size), jnp.float32)
    A = A.at[jnp.arange(out_size), i0].add(w0)
    A = A.at[jnp.arange(out_size), i1].add(w1)
    return A


@functools.partial(jax.jit, static_argnames=("patch_size", "use_bf16"))
def segmenter_forward(im, params, patch_size, use_bf16=False):
    B, C, H, W = im.shape
    P = patch_size
    h, w = H // P, W // P
    N = h * w
    n_cls = params["wd"].shape[1]

    # pad tokens-per-image up to a multiple of 8 (e.g. ViT-B/16@224: N=196 -> 200);
    # padded rows are zero patches + zero pos, their LN output is finite garbage
    # that is sliced off below.
    N_pad = _round_up(N, 8)
    patches = extract_patches(im, P)                          # (B*N, C*P*P)
    if N_pad != N:
        patches = patches.reshape(B, N, -1)
        patches = jnp.pad(patches, ((0, 0), (0, N_pad - N), (0, 0)))
        patches = patches.reshape(B * N_pad, -1)
        pos = jnp.pad(params["pos"], ((0, N_pad - N), (0, 0)))
    else:
        pos = params["pos"]

    # lane-dense decoder head: zero-pad n_cls up to a multiple of 128
    nc_pad = _round_up(n_cls, 128)
    wd_p = jnp.pad(params["wd"], ((0, 0), (0, nc_pad - n_cls)))
    bd_p = jnp.pad(params["bd"], ((0, 0), (0, nc_pad - n_cls)))

    # bf16 streaming (f32 accumulation / f32 LN) is profitable on v5e/v6e/v7x alike;
    # the default f32 path matches the PyTorch reference bit-closely.
    mm_dtype = jnp.bfloat16 if use_bf16 else jnp.float32
    io_dtype = mm_dtype   # kernel-1 logits / kernel-2 output dtype

    logits = run_enc_dec(
        patches.astype(mm_dtype),
        params["wp"].astype(mm_dtype),
        params["bp"],
        pos,                                                   # (N_pad, D) f32, resident
        params["gamma"], params["beta"],
        wd_p.astype(mm_dtype), bd_p,
        out_dtype=io_dtype)                                    # (B*N_pad, nc_pad)

    logits = logits.reshape(B, N_pad, nc_pad)[:, :N, :n_cls]   # drop padding
    # TODO(synk): this logits-sized reshape/transpose (1/P^2 of the output traffic)
    # stays in XLA; it could be folded into kernel 1's out_spec if ever hot.
    masks = logits.reshape(B, h, w, n_cls).transpose(0, 3, 1, 2)   # (B, n_cls, h, w)

    # F.interpolate(..., size=(H, W), mode='bilinear', align_corners=False)
    a_h = bilinear_matrix(H, h).astype(mm_dtype)               # (H, h)
    a_wt = bilinear_matrix(W, w).T.astype(mm_dtype)            # (w, W)
    up = run_bilinear(masks.reshape(B * n_cls, h, w), a_h, a_wt, out_dtype=io_dtype)
    return up.reshape(B, n_cls, H, W)


def reference_forward(im, params, patch_size, eps=1e-6):
    B, C, H, W = im.shape
    P = patch_size
    h, w = H // P, W // P
    n_cls = params["wd"].shape[1]
    patches = extract_patches(im, P)
    pos = jnp.tile(params["pos"], (B, 1))
    t = patches @ params["wp"] + params["bp"] + pos
    mu = t.mean(-1, keepdims=True)
    var = ((t - mu) ** 2).mean(-1, keepdims=True)
    tn = (t - mu) * jax.lax.rsqrt(var + eps) * params["gamma"] + params["beta"]
    logits = tn @ params["wd"] + params["bd"]
    masks = logits.reshape(B, h, w, n_cls).transpose(0, 3, 1, 2)
    a_h = bilinear_matrix(H, h)
    a_w = bilinear_matrix(W, w)
    return jnp.einsum("Hh,bchw,Ww->bcHW", a_h, masks, a_w)


if __name__ == "__main__":
    B, C, H, W = 2, 4, 16, 16
    P = 4                     # patch size
    D = 32                    # encoder hidden dim
    n_cls = 8                 # decoder output classes
    h, w = H // P, W // P
    N = h * w

    key = jax.random.PRNGKey(0)
    k_im, k_wp, k_bp, k_pos, k_g, k_b, k_wd, k_bd = jax.random.split(key, 8)

    im = jax.random.normal(k_im, (B, C, H, W), jnp.float32)
    params = {
        "wp":    jax.random.normal(k_wp, (C * P * P, D), jnp.float32) * 0.05,
        "bp":    jax.random.normal(k_bp, (1, D), jnp.float32) * 0.01,
        "pos":   jax.random.normal(k_pos, (N, D), jnp.float32) * 0.02,
        "gamma": jnp.ones((1, D), jnp.float32) + 0.1 * jax.random.normal(k_g, (1, D)),
        "beta":  0.1 * jax.random.normal(k_b, (1, D), jnp.float32),
        "wd":    jax.random.normal(k_wd, (D, n_cls), jnp.float32) * 0.05,
        "bd":    jax.random.normal(k_bd, (1, n_cls), jnp.float32) * 0.01,
    }

    ref = reference_forward(im, params, P)

    # f32 path: tight check against the pure-JAX reference
    out = segmenter_forward(im, params, P, use_bf16=False)
    out = jax.block_until_ready(out)
    assert out.shape == (B, n_cls, H, W), out.shape
    err = float(jnp.max(jnp.abs(out - ref)))
    assert err < 2e-4, err

    # bf16 streaming path (bandwidth optimization on all generations): looser check
    out_bf16 = segmenter_forward(im, params, P, use_bf16=True)
    out_bf16 = jax.block_until_ready(out_bf16)
    err_bf16 = float(jnp.max(jnp.abs(out_bf16.astype(jnp.float32) - ref)))
    assert err_bf16 < 1e-1, err_bf16

    print("KERNEL_OK")
</pallas_src>

<mosaic_0001>
module attributes {stable_mosaic.version = 11 : i64} {
  func.func private @main(%arg0: i32) attributes {dimension_semantics = [#tpu.dimension_semantics<core_parallel>], iteration_bounds = array<i64: 2>, tpu.core_type = #tpu.core_type<sc_scalar_subcore>, window_params = []} {
    return
  }
}

module attributes {stable_mosaic.version = 11 : i64} {
  func.func private @main(%arg0: i32) attributes {dimension_semantics = [#tpu.dimension_semantics<core_parallel>], iteration_bounds = array<i64: 2>, tpu.core_type = #tpu.core_type<sc_scalar_subcore>, window_params = []} {
    return
  }
}

module attributes {stable_mosaic.version = 11 : i64} {
  func.func @enc_dec_kernel(%arg0: i32, %arg1: memref<16x64xf32, #tpu.memory_space<vmem>>, %arg2: memref<64x32xf32, #tpu.memory_space<vmem>>, %arg3: memref<1x32xf32, #tpu.memory_space<vmem>>, %arg4: memref<16x32xf32, #tpu.memory_space<vmem>>, %arg5: memref<1x32xf32, #tpu.memory_space<vmem>>, %arg6: memref<1x32xf32, #tpu.memory_space<vmem>>, %arg7: memref<32x128xf32, #tpu.memory_space<vmem>>, %arg8: memref<1x128xf32, #tpu.memory_space<vmem>>, %arg9: memref<16x128xf32, #tpu.memory_space<vmem>>) attributes {dimension_semantics = [#tpu.dimension_semantics<parallel>], iteration_bounds = array<i64: 2>, scalar_prefetch = 0 : i64, scratch_operands = 0 : i64, tpu.core_type = #tpu.core_type<tc>, window_params = [{transform_indices = @transform_0, window_bounds = array<i64: 16, 64>}, {pipeline_mode = #tpu.pipeline_mode<synchronous>, transform_indices = @transform_1, window_bounds = array<i64: 64, 32>}, {pipeline_mode = #tpu.pipeline_mode<synchronous>, transform_indices = @transform_2, window_bounds = array<i64: 1, 32>}, {pipeline_mode = #tpu.pipeline_mode<synchronous>, transform_indices = @transform_3, window_bounds = array<i64: 16, 32>}, {pipeline_mode = #tpu.pipeline_mode<synchronous>, transform_indices = @transform_4, window_bounds = array<i64: 1, 32>}, {pipeline_mode = #tpu.pipeline_mode<synchronous>, transform_indices = @transform_5, window_bounds = array<i64: 1, 32>}, {pipeline_mode = #tpu.pipeline_mode<synchronous>, transform_indices = @transform_6, window_bounds = array<i64: 32, 128>}, {pipeline_mode = #tpu.pipeline_mode<synchronous>, transform_indices = @transform_7, window_bounds = array<i64: 1, 128>}, {transform_indices = @transform_8, window_bounds = array<i64: 16, 128>}]} {
    %c0 = arith.constant 0 : index
    %c0_0 = arith.constant 0 : index
    %0 = vector.load %arg1[%c0, %c0_0] : memref<16x64xf32, #tpu.memory_space<vmem>>, vector<16x64xf32>
    %c0_1 = arith.constant 0 : index
    %c0_2 = arith.constant 0 : index
    %1 = vector.load %arg2[%c0_1, %c0_2] : memref<64x32xf32, #tpu.memory_space<vmem>>, vector<64x32xf32>
    %cst = arith.constant dense<0.000000e+00> : vector<16x32xf32>
    %2 = tpu.matmul %0, %1, %cst {dimension_numbers = #tpu.dot_dimension_numbers<[1], [0], [0], [1], [0, 0, 1, 1], [], []>} : vector<16x64xf32>, vector<64x32xf32>, vector<16x32xf32> -> vector<16x32xf32>
    %c0_3 = arith.constant 0 : index
    %c0_4 = arith.constant 0 : index
    %3 = vector.load %arg4[%c0_3, %c0_4] : memref<16x32xf32, #tpu.memory_space<vmem>>, vector<16x32xf32>
    %c0_5 = arith.constant 0 : index
    %c0_6 = arith.constant 0 : index
    %4 = vector.load %arg3[%c0_5, %c0_6] : memref<1x32xf32, #tpu.memory_space<vmem>>, vector<1x32xf32>
    %5 = vector.broadcast %4 : vector<1x32xf32> to vector<16x32xf32>
    %6 = arith.addf %2, %5 : vector<16x32xf32>
    %7 = arith.addf %6, %3 : vector<16x32xf32>
    %cst_7 = arith.constant dense<0.000000e+00> : vector<16xf32>
    %8 = vector.multi_reduction <add>, %7, %cst_7 [1] : vector<16x32xf32> to vector<16xf32>
    %9 = vector.shape_cast %8 : vector<16xf32> to vector<16x1xf32>
    %cst_8 = arith.constant 3.200000e+01 : f32
    %10 = vector.broadcast %cst_8 : f32 to vector<16x1xf32>
    %11 = arith.divf %9, %10 : vector<16x1xf32>
    %12 = arith.mulf %7, %7 : vector<16x32xf32>
    %cst_9 = arith.constant dense<0.000000e+00> : vector<16xf32>
    %13 = vector.multi_reduction <add>, %12, %cst_9 [1] : vector<16x32xf32> to vector<16xf32>
    %14 = vector.shape_cast %13 : vector<16xf32> to vector<16x1xf32>
    %cst_10 = arith.constant 3.200000e+01 : f32
    %15 = vector.broadcast %cst_10 : f32 to vector<16x1xf32>
    %16 = arith.divf %14, %15 : vector<16x1xf32>
    %17 = arith.mulf %11, %11 : vector<16x1xf32>
    %18 = arith.subf %16, %17 : vector<16x1xf32>
    %cst_11 = arith.constant 0.000000e+00 : f32
    %19 = vector.broadcast %cst_11 : f32 to vector<16x1xf32>
    %20 = arith.maximumf %18, %19 : vector<16x1xf32>
    %21 = vector.broadcast %11 : vector<16x1xf32> to vector<16x32xf32>
    %22 = arith.subf %7, %21 : vector<16x32xf32>
    %cst_12 = arith.constant 9.99999997E-7 : f32
    %23 = vector.broadcast %cst_12 : f32 to vector<16x1xf32>
    %24 = arith.addf %20, %23 : vector<16x1xf32>
    %25 = math.rsqrt %24 : vector<16x1xf32>
    %26 = vector.broadcast %25 : vector<16x1xf32> to vector<16x32xf32>
    %27 = arith.mulf %22, %26 : vector<16x32xf32>
    %c0_13 = arith.constant 0 : index
    %c0_14 = arith.constant 0 : index
    %28 = vector.load %arg5[%c0_13, %c0_14] : memref<1x32xf32, #tpu.memory_space<vmem>>, vector<1x32xf32>
    %29 = vector.broadcast %28 : vector<1x32xf32> to vector<16x32xf32>
    %30 = arith.mulf %27, %29 : vector<16x32xf32>
    %c0_15 = arith.constant 0 : index
    %c0_16 = arith.constant 0 : index
    %31 = vector.load %arg6[%c0_15, %c0_16] : memref<1x32xf32, #tpu.memory_space<vmem>>, vector<1x32xf32>
    %32 = vector.broadcast %31 : vector<1x32xf32> to vector<16x32xf32>
    %33 = arith.addf %30, %32 : vector<16x32xf32>
    %c0_17 = arith.constant 0 : index
    %c0_18 = arith.constant 0 : index
    %34 = vector.load %arg7[%c0_17, %c0_18] : memref<32x128xf32, #tpu.memory_space<vmem>>, vector<32x128xf32>
    %cst_19 = arith.constant dense<0.000000e+00> : vector<16x128xf32>
    %35 = tpu.matmul %33, %34, %cst_19 {dimension_numbers = #tpu.dot_dimension_numbers<[1], [0], [0], [1], [0, 0, 1, 1], [], []>} : vector<16x32xf32>, vector<32x128xf32>, vector<16x128xf32> -> vector<16x128xf32>
    %c0_20 = arith.constant 0 : index
    %c0_21 = arith.constant 0 : index
    %36 = vector.load %arg8[%c0_20, %c0_21] : memref<1x128xf32, #tpu.memory_space<vmem>>, vector<1x128xf32>
    %37 = vector.broadcast %36 : vector<1x128xf32> to vector<16x128xf32>
    %38 = arith.addf %35, %37 : vector<16x128xf32>
    %c0_22 = arith.constant 0 : index
    %c0_23 = arith.constant 0 : index
    %39 = vector.load %arg9[%c0_22, %c0_23] : memref<16x128xf32, #tpu.memory_space<vmem>>, vector<16x128xf32>
    tpu.vector_store %arg9[%c0_22, %c0_23], %38 {strides = array<i32>} : memref<16x128xf32, #tpu.memory_space<vmem>>, vector<16x128xf32>,
    return
  }
  func.func @transform_0(%arg0: i32) -> (i32, i32) {
    %c0_i32 = arith.constant 0 : i32
    %c0_i32_0 = arith.constant 0 : i32
    return %arg0, %c0_i32 : i32, i32
  }
  func.func @transform_1(%arg0: i32) -> (i32, i32) {
    %c0_i32 = arith.constant 0 : i32
    %c0_i32_0 = arith.constant 0 : i32
    %c0_i32_1 = arith.constant 0 : i32
    return %c0_i32, %c0_i32_0 : i32, i32
  }
  func.func @transform_2(%arg0: i32) -> (i32, i32) {
    %c0_i32 = arith.constant 0 : i32
    %c0_i32_0 = arith.constant 0 : i32
    %c0_i32_1 = arith.constant 0 : i32
    return %c0_i32, %c0_i32_0 : i32, i32
  }
  func.func @transform_3(%arg0: i32) -> (i32, i32) {
    %c0_i32 = arith.constant 0 : i32
    %c0_i32_0 = arith.constant 0 : i32
    %c0_i32_1 = arith.constant 0 : i32
    return %c0_i32, %c0_i32_0 : i32, i32
  }
  func.func @transform_4(%arg0: i32) -> (i32, i32) {
    %c0_i32 = arith.constant 0 : i32
    %c0_i32_0 = arith.constant 0 : i32
    %c0_i32_1 = arith.constant 0 : i32
    return %c0_i32, %c0_i32_0 : i32, i32
  }
  func.func @transform_5(%arg0: i32) -> (i32, i32) {
    %c0_i32 = arith.constant 0 : i32
    %c0_i32_0 = arith.constant 0 : i32
    %c0_i32_1 = arith.constant 0 : i32
    return %c0_i32, %c0_i32_0 : i32, i32
  }
  func.func @transform_6(%arg0: i32) -> (i32, i32) {
    %c0_i32 = arith.constant 0 : i32
    %c0_i32_0 = arith.constant 0 : i32
    %c0_i32_1 = arith.constant 0 : i32
    return %c0_i32, %c0_i32_0 : i32, i32
  }
  func.func @transform_7(%arg0: i32) -> (i32, i32) {
    %c0_i32 = arith.constant 0 : i32
    %c0_i32_0 = arith.constant 0 : i32
    %c0_i32_1 = arith.constant 0 : i32
    return %c0_i32, %c0_i32_0 : i32, i32
  }
  func.func @transform_8(%arg0: i32) -> (i32, i32) {
    %c0_i32 = arith.constant 0 : i32
    %c0_i32_0 = arith.constant 0 : i32
    return %arg0, %c0_i32 : i32, i32
  }
}

module attributes {stable_mosaic.version = 11 : i64} {
  func.func @interp_kernel(%arg0: i32, %arg1: memref<16x4x4xf32, #tpu.memory_space<vmem>>, %arg2: memref<4x16xf32, #tpu.memory_space<vmem>>, %arg3: memref<16x4xf32, #tpu.memory_space<vmem>>, %arg4: memref<16x16x16xf32, #tpu.memory_space<vmem>>) attributes {dimension_semantics = [#tpu.dimension_semantics<parallel>], iteration_bounds = array<i64: 1>, scalar_prefetch = 0 : i64, scratch_operands = 0 : i64, tpu.core_type = #tpu.core_type<tc>, window_params = [{transform_indices = @transform_0, window_bounds = array<i64: 16, 4, 4>}, {pipeline_mode = #tpu.pipeline_mode<synchronous>, transform_indices = @transform_1, window_bounds = array<i64: 4, 16>}, {pipeline_mode = #tpu.pipeline_mode<synchronous>, transform_indices = @transform_2, window_bounds = array<i64: 16, 4>}, {transform_indices = @transform_3, window_bounds = array<i64: 16, 16, 16>}]} {
    %c0 = arith.constant 0 : index
    %c0_0 = arith.constant 0 : index
    %0 = vector.load %arg3[%c0, %c0_0] : memref<16x4xf32, #tpu.memory_space<vmem>>, vector<16x4xf32>
    %c0_1 = arith.constant 0 : index
    %c0_2 = arith.constant 0 : index
    %1 = vector.load %arg2[%c0_1, %c0_2] : memref<4x16xf32, #tpu.memory_space<vmem>>, vector<4x16xf32>
    %c0_3 = arith.constant 0 : index
    %c0_4 = arith.constant 0 : index
    %c0_5 = arith.constant 0 : index
    %2 = vector.load %arg1[%c0_3, %c0_4, %c0_5] : memref<16x4x4xf32, #tpu.memory_space<vmem>>, vector<1x4x4xf32>
    %3 = vector.shape_cast %2 : vector<1x4x4xf32> to vector<4x4xf32>
    %cst = arith.constant dense<0.000000e+00> : vector<4x16xf32>
    %4 = tpu.matmul %3, %1, %cst {dimension_numbers = #tpu.dot_dimension_numbers<[1], [0], [0], [1], [0, 0, 1, 1], [], []>} : vector<4x4xf32>, vector<4x16xf32>, vector<4x16xf32> -> vector<4x16xf32>
    %cst_6 = arith.constant dense<0.000000e+00> : vector<16x16xf32>
    %5 = tpu.matmul %0, %4, %cst_6 {dimension_numbers = #tpu.dot_dimension_numbers<[1], [0], [0], [1], [0, 0, 1, 1], [], []>} : vector<16x4xf32>, vector<4x16xf32>, vector<16x16xf32> -> vector<16x16xf32>
    %c0_7 = arith.constant 0 : index
    %c0_8 = arith.constant 0 : index
    %c0_9 = arith.constant 0 : index
    %6 = vector.load %arg4[%c0_7, %c0_8, %c0_9] : memref<16x16x16xf32, #tpu.memory_space<vmem>>, vector<1x16x16xf32>
    %7 = vector.shape_cast %6 : vector<1x16x16xf32> to vector<16x16xf32>
    %8 = vector.shape_cast %5 : vector<16x16xf32> to vector<1x16x16xf32>
    tpu.vector_store %arg4[%c0_7, %c0_8, %c0_9], %8 {strides = array<i32>} : memref<16x16x16xf32, #tpu.memory_space<vmem>>, vector<1x16x16xf32>,
    %c1 = arith.constant 1 : index
    %c0_10 = arith.constant 0 : index
    %c0_11 = arith.constant 0 : index
    %9 = vector.load %arg1[%c1, %c0_10, %c0_11] : memref<16x4x4xf32, #tpu.memory_space<vmem>>, vector<1x4x4xf32>
    %10 = vector.shape_cast %9 : vector<1x4x4xf32> to vector<4x4xf32>
    %cst_12 = arith.constant dense<0.000000e+00> : vector<4x16xf32>
    %11 = tpu.matmul %10, %1, %cst_12 {dimension_numbers = #tpu.dot_dimension_numbers<[1], [0], [0], [1], [0, 0, 1, 1], [], []>} : vector<4x4xf32>, vector<4x16xf32>, vector<4x16xf32> -> vector<4x16xf32>
    %cst_13 = arith.constant dense<0.000000e+00> : vector<16x16xf32>
    %12 = tpu.matmul %0, %11, %cst_13 {dimension_numbers = #tpu.dot_dimension_numbers<[1], [0], [0], [1], [0, 0, 1, 1], [], []>} : vector<16x4xf32>, vector<4x16xf32>, vector<16x16xf32> -> vector<16x16xf32>
    %c1_14 = arith.constant 1 : index
    %c0_15 = arith.constant 0 : index
    %c0_16 = arith.constant 0 : index
    %13 = vector.load %arg4[%c1_14, %c0_15, %c0_16] : memref<16x16x16xf32, #tpu.memory_space<vmem>>, vector<1x16x16xf32>
    %14 = vector.shape_cast %13 : vector<1x16x16xf32> to vector<16x16xf32>
    %15 = vector.shape_cast %12 : vector<16x16xf32> to vector<1x16x16xf32>
    tpu.vector_store %arg4[%c1_14, %c0_15, %c0_16], %15 {strides = array<i32>} : memref<16x16x16xf32, #tpu.memory_space<vmem>>, vector<1x16x16xf32>,
    %c2 = arith.constant 2 : index
    %c0_17 = arith.constant 0 : index
    %c0_18 = arith.constant 0 : index
    %16 = vector.load %arg1[%c2, %c0_17, %c0_18] : memref<16x4x4xf32, #tpu.memory_space<vmem>>, vector<1x4x4xf32>
    %17 = vector.shape_cast %16 : vector<1x4x4xf32> to vector<4x4xf32>
    %cst_19 = arith.constant dense<0.000000e+00> : vector<4x16xf32>
    %18 = tpu.matmul %17, %1, %cst_19 {dimension_numbers = #tpu.dot_dimension_numbers<[1], [0], [0], [1], [0, 0, 1, 1], [], []>} : vector<4x4xf32>, vector<4x16xf32>, vector<4x16xf32> -> vector<4x16xf32>
    %cst_20 = arith.constant dense<0.000000e+00> : vector<16x16xf32>
    %19 = tpu.matmul %0, %18, %cst_20 {dimension_numbers = #tpu.dot_dimension_numbers<[1], [0], [0], [1], [0, 0, 1, 1], [], []>} : vector<16x4xf32>, vector<4x16xf32>, vector<16x16xf32> -> vector<16x16xf32>
    %c2_21 = arith.constant 2 : index
    %c0_22 = arith.constant 0 : index
    %c0_23 = arith.constant 0 : index
    %20 = vector.load %arg4[%c2_21, %c0_22, %c0_23] : memref<16x16x16xf32, #tpu.memory_space<vmem>>, vector<1x16x16xf32>
    %21 = vector.shape_cast %20 : vector<1x16x16xf32> to vector<16x16xf32>
    %22 = vector.shape_cast %19 : vector<16x16xf32> to vector<1x16x16xf32>
    tpu.vector_store %arg4[%c2_21, %c0_22, %c0_23], %22 {strides = array<i32>} : memref<16x16x16xf32, #tpu.memory_space<vmem>>, vector<1x16x16xf32>,
    %c3 = arith.constant 3 : index
    %c0_24 = arith.constant 0 : index
    %c0_25 = arith.constant 0 : index
    %23 = vector.load %arg1[%c3, %c0_24, %c0_25] : memref<16x4x4xf32, #tpu.memory_space<vmem>>, vector<1x4x4xf32>
    %24 = vector.shape_cast %23 : vector<1x4x4xf32> to vector<4x4xf32>
    %cst_26 = arith.constant dense<0.000000e+00> : vector<4x16xf32>
    %25 = tpu.matmul %24, %1, %cst_26 {dimension_numbers = #tpu.dot_dimension_numbers<[1], [0], [0], [1], [0, 0, 1, 1], [], []>} : vector<4x4xf32>, vector<4x16xf32>, vector<4x16xf32> -> vector<4x16xf32>
    %cst_27 = arith.constant dense<0.000000e+00> : vector<16x16xf32>
    %26 = tpu.matmul %0, %25, %cst_27 {dimension_numbers = #tpu.dot_dimension_numbers<[1], [0], [0], [1], [0, 0, 1, 1], [], []>} : vector<16x4xf32>, vector<4x16xf32>, vector<16x16xf32> -> vector<16x16xf32>
    %c3_28 = arith.constant 3 : index
    %c0_29 = arith.constant 0 : index
    %c0_30 = arith.constant 0 : index
    %27 = vector.load %arg4[%c3_28, %c0_29, %c0_30] : memref<16x16x16xf32, #tpu.memory_space<vmem>>, vector<1x16x16xf32>
    %28 = vector.shape_cast %27 : vector<1x16x16xf32> to vector<16x16xf32>
    %29 = vector.shape_cast %26 : vector<16x16xf32> to vector<1x16x16xf32>
    tpu.vector_store %arg4[%c3_28, %c0_29, %c0_30], %29 {strides = array<i32>} : memref<16x16x16xf32, #tpu.memory_space<vmem>>, vector<1x16x16xf32>,
    %c4 = arith.constant 4 : index
    %c0_31 = arith.constant 0 : index
    %c0_32 = arith.constant 0 : index
    %30 = vector.load %arg1[%c4, %c0_31, %c0_32] : memref<16x4x4xf32, #tpu.memory_space<vmem>>, vector<1x4x4xf32>
    %31 = vector.shape_cast %30 : vector<1x4x4xf32> to vector<4x4xf32>
    %cst_33 = arith.constant dense<0.000000e+00> : vector<4x16xf32>
    %32 = tpu.matmul %31, %1, %cst_33 {dimension_numbers = #tpu.dot_dimension_numbers<[1], [0], [0], [1], [0, 0, 1, 1], [], []>} : vector<4x4xf32>, vector<4x16xf32>, vector<4x16xf32> -> vector<4x16xf32>
    %cst_34 = arith.constant dense<0.000000e+00> : vector<16x16xf32>
    %33 = tpu.matmul %0, %32, %cst_34 {dimension_numbers = #tpu.dot_dimension_numbers<[1], [0], [0], [1], [0, 0, 1, 1], [], []>} : vector<16x4xf32>, vector<4x16xf32>, vector<16x16xf32> -> vector<16x16xf32>
    %c4_35 = arith.constant 4 : index
    %c0_36 = arith.constant 0 : index
    %c0_37 = arith.constant 0 : index
    %34 = vector.load %arg4[%c4_35, %c0_36, %c0_37] : memref<16x16x16xf32, #tpu.memory_space<vmem>>, vector<1x16x16xf32>
    %35 = vector.shape_cast %34 : vector<1x16x16xf32> to vector<16x16xf32>
    %36 = vector.shape_cast %33 : vector<16x16xf32> to vector<1x16x16xf32>
    tpu.vector_store %arg4[%c4_35, %c0_36, %c0_37], %36 {strides = array<i32>} : memref<16x16x16xf32, #tpu.memory_space<vmem>>, vector<1x16x16xf32>,
    %c5 = arith.constant 5 : index
    %c0_38 = arith.constant 0 : index
    %c0_39 = arith.constant 0 : index
    %37 = vector.load %arg1[%c5, %c0_38, %c0_39] : memref<16x4x4xf32, #tpu.memory_space<vmem>>, vector<1x4x4xf32>
    %38 = vector.shape_cast %37 : vector<1x4x4xf32> to vector<4x4xf32>
    %cst_40 = arith.constant dense<0.000000e+00> : vector<4x16xf32>
    %39 = tpu.matmul %38, %1, %cst_40 {dimension_numbers = #tpu.dot_dimension_numbers<[1], [0], [0], [1], [0, 0, 1, 1], [], []>} : vector<4x4xf32>, vector<4x16xf32>, vector<4x16xf32> -> vector<4x16xf32>
    %cst_41 = arith.constant dense<0.000000e+00> : vector<16x16xf32>
    %40 = tpu.matmul %0, %39, %cst_41 {dimension_numbers = #tpu.dot_dimension_numbers<[1], [0], [0], [1], [0, 0, 1, 1], [], []>} : vector<16x4xf32>, vector<4x16xf32>, vector<16x16xf32> -> vector<16x16xf32>
    %c5_42 = arith.constant 5 : index
    %c0_43 = arith.constant 0 : index
    %c0_44 = arith.constant 0 : index
    %41 = vector.load %arg4[%c5_42, %c0_43, %c0_44] : memref<16x16x16xf32, #tpu.memory_space<vmem>>, vector<1x16x16xf32>
    %42 = vector.shape_cast %41 : vector<1x16x16xf32> to vector<16x16xf32>
    %43 = vector.shape_cast %40 : vector<16x16xf32> to vector<1x16x16xf32>
    tpu.vector_store %arg4[%c5_42, %c0_43, %c0_44], %43 {strides = array<i32>} : memref<16x16x16xf32, #tpu.memory_space<vmem>>, vector<1x16x16xf32>,
    %c6 = arith.constant 6 : index
    %c0_45 = arith.constant 0 : index
    %c0_46 = arith.constant 0 : index
    %44 = vector.load %arg1[%c6, %c0_45, %c0_46] : memref<16x4x4xf32, #tpu.memory_space<vmem>>, vector<1x4x4xf32>
    %45 = vector.shape_cast %44 : vector<1x4x4xf32> to vector<4x4xf32>
    %cst_47 = arith.constant dense<0.000000e+00> : vector<4x16xf32>
    %46 = tpu.matmul %45, %1, %cst_47 {dimension_numbers = #tpu.dot_dimension_numbers<[1], [0], [0], [1], [0, 0, 1, 1], [], []>} : vector<4x4xf32>, vector<4x16xf32>, vector<4x16xf32> -> vector<4x16xf32>
    %cst_48 = arith.constant dense<0.000000e+00> : vector<16x16xf32>
    %47 = tpu.matmul %0, %46, %cst_48 {dimension_numbers = #tpu.dot_dimension_numbers<[1], [0], [0], [1], [0, 0, 1, 1], [], []>} : vector<16x4xf32>, vector<4x16xf32>, vector<16x16xf32> -> vector<16x16xf32>
    %c6_49 = arith.constant 6 : index
    %c0_50 = arith.constant 0 : index
    %c0_51 = arith.constant 0 : index
    %48 = vector.load %arg4[%c6_49, %c0_50, %c0_51] : memref<16x16x16xf32, #tpu.memory_space<vmem>>, vector<1x16x16xf32>
    %49 = vector.shape_cast %48 : vector<1x16x16xf32> to vector<16x16xf32>
    %50 = vector.shape_cast %47 : vector<16x16xf32> to vector<1x16x16xf32>
    tpu.vector_store %arg4[%c6_49, %c0_50, %c0_51], %50 {strides = array<i32>} : memref<16x16x16xf32, #tpu.memory_space<vmem>>, vector<1x16x16xf32>,
    %c7 = arith.constant 7 : index
    %c0_52 = arith.constant 0 : index
    %c0_53 = arith.constant 0 : index
    %51 = vector.load %arg1[%c7, %c0_52, %c0_53] : memref<16x4x4xf32, #tpu.memory_space<vmem>>, vector<1x4x4xf32>
    %52 = vector.shape_cast %51 : vector<1x4x4xf32> to vector<4x4xf32>
    %cst_54 = arith.constant dense<0.000000e+00> : vector<4x16xf32>
    %53 = tpu.matmul %52, %1, %cst_54 {dimension_numbers = #tpu.dot_dimension_numbers<[1], [0], [0], [1], [0, 0, 1, 1], [], []>} : vector<4x4xf32>, vector<4x16xf32>, vector<4x16xf32> -> vector<4x16xf32>
    %cst_55 = arith.constant dense<0.000000e+00> : vector<16x16xf32>
    %54 = tpu.matmul %0, %53, %cst_55 {dimension_numbers = #tpu.dot_dimension_numbers<[1], [0], [0], [1], [0, 0, 1, 1], [], []>} : vector<16x4xf32>, vector<4x16xf32>, vector<16x16xf32> -> vector<16x16xf32>
    %c7_56 = arith.constant 7 : index
    %c0_57 = arith.constant 0 : index
    %c0_58 = arith.constant 0 : index
    %55 = vector.load %arg4[%c7_56, %c0_57, %c0_58] : memref<16x16x16xf32, #tpu.memory_space<vmem>>, vector<1x16x16xf32>
    %56 = vector.shape_cast %55 : vector<1x16x16xf32> to vector<16x16xf32>
    %57 = vector.shape_cast %54 : vector<16x16xf32> to vector<1x16x16xf32>
    tpu.vector_store %arg4[%c7_56, %c0_57, %c0_58], %57 {strides = array<i32>} : memref<16x16x16xf32, #tpu.memory_space<vmem>>, vector<1x16x16xf32>,
    %c8 = arith.constant 8 : index
    %c0_59 = arith.constant 0 : index
    %c0_60 = arith.constant 0 : index
    %58 = vector.load %arg1[%c8, %c0_59, %c0_60] : memref<16x4x4xf32, #tpu.memory_space<vmem>>, vector<1x4x4xf32>
    %59 = vector.shape_cast %58 : vector<1x4x4xf32> to vector<4x4xf32>
    %cst_61 = arith.constant dense<0.000000e+00> : vector<4x16xf32>
    %60 = tpu.matmul %59, %1, %cst_61 {dimension_numbers = #tpu.dot_dimension_numbers<[1], [0], [0], [1], [0, 0, 1, 1], [], []>} : vector<4x4xf32>, vector<4x16xf32>, vector<4x16xf32> -> vector<4x16xf32>
    %cst_62 = arith.constant dense<0.000000e+00> : vector<16x16xf32>
    %61 = tpu.matmul %0, %60, %cst_62 {dimension_numbers = #tpu.dot_dimension_numbers<[1], [0], [0], [1], [0, 0, 1, 1], [], []>} : vector<16x4xf32>, vector<4x16xf32>, vector<16x16xf32> -> vector<16x16xf32>
    %c8_63 = arith.constant 8 : index
    %c0_64 = arith.constant 0 : index
    %c0_65 = arith.constant 0 : index
    %62 = vector.load %arg4[%c8_63, %c0_64, %c0_65] : memref<16x16x16xf32, #tpu.memory_space<vmem>>, vector<1x16x16xf32>
    %63 = vector.shape_cast %62 : vector<1x16x16xf32> to vector<16x16xf32>
    %64 = vector.shape_cast %61 : vector<16x16xf32> to vector<1x16x16xf32>
    tpu.vector_store %arg4[%c8_63, %c0_64, %c0_65], %64 {strides = array<i32>} : memref<16x16x16xf32, #tpu.memory_space<vmem>>, vector<1x16x16xf32>,
    %c9 = arith.constant 9 : index
    %c0_66 = arith.constant 0 : index
    %c0_67 = arith.constant 0 : index
    %65 = vector.load %arg1[%c9, %c0_66, %c0_67] : memref<16x4x4xf32, #tpu.memory_space<vmem>>, vector<1x4x4xf32>
    %66 = vector.shape_cast %65 : vector<1x4x4xf32> to vector<4x4xf32>
    %cst_68 = arith.constant dense<0.000000e+00> : vector<4x16xf32>
    %67 = tpu.matmul %66, %1, %cst_68 {dimension_numbers = #tpu.dot_dimension_numbers<[1], [0], [0], [1], [0, 0, 1, 1], [], []>} : vector<4x4xf32>, vector<4x16xf32>, vector<4x16xf32> -> vector<4x16xf32>
    %cst_69 = arith.constant dense<0.000000e+00> : vector<16x16xf32>
    %68 = tpu.matmul %0, %67, %cst_69 {dimension_numbers = #tpu.dot_dimension_numbers<[1], [0], [0], [1], [0, 0, 1, 1], [], []>} : vector<16x4xf32>, vector<4x16xf32>, vector<16x16xf32> -> vector<16x16xf32>
    %c9_70 = arith.constant 9 : index
    %c0_71 = arith.constant 0 : index
    %c0_72 = arith.constant 0 : index
    %69 = vector.load %arg4[%c9_70, %c0_71, %c0_72] : memref<16x16x16xf32, #tpu.memory_space<vmem>>, vector<1x16x16xf32>
    %70 = vector.shape_cast %69 : vector<1x16x16xf32> to vector<16x16xf32>
    %71 = vector.shape_cast %68 : vector<16x16xf32> to vector<1x16x16xf32>
    tpu.vector_store %arg4[%c9_70, %c0_71, %c0_72], %71 {strides = array<i32>} : memref<16x16x16xf32, #tpu.memory_space<vmem>>, vector<1x16x16xf32>,
    %c10 = arith.constant 10 : index
    %c0_73 = arith.constant 0 : index
    %c0_74 = arith.constant 0 : index
    %72 = vector.load %arg1[%c10, %c0_73, %c0_74] : memref<16x4x4xf32, #tpu.memory_space<vmem>>, vector<1x4x4xf32>
    %73 = vector.shape_cast %72 : vector<1x4x4xf32> to vector<4x4xf32>
    %cst_75 = arith.constant dense<0.000000e+00> : vector<4x16xf32>
    %74 = tpu.matmul %73, %1, %cst_75 {dimension_numbers = #tpu.dot_dimension_numbers<[1], [0], [0], [1], [0, 0, 1, 1], [], []>} : vector<4x4xf32>, vector<4x16xf32>, vector<4x16xf32> -> vector<4x16xf32>
    %cst_76 = arith.constant dense<0.000000e+00> : vector<16x16xf32>
    %75 = tpu.matmul %0, %74, %cst_76 {dimension_numbers = #tpu.dot_dimension_numbers<[1], [0], [0], [1], [0, 0, 1, 1], [], []>} : vector<16x4xf32>, vector<4x16xf32>, vector<16x16xf32> -> vector<16x16xf32>
    %c10_77 = arith.constant 10 : index
    %c0_78 = arith.constant 0 : index
    %c0_79 = arith.constant 0 : index
    %76 = vector.load %arg4[%c10_77, %c0_78, %c0_79] : memref<16x16x16xf32, #tpu.memory_space<vmem>>, vector<1x16x16xf32>
    %77 = vector.shape_cast %76 : vector<1x16x16xf32> to vector<16x16xf32>
    %78 = vector.shape_cast %75 : vector<16x16xf32> to vector<1x16x16xf32>
    tpu.vector_store %arg4[%c10_77, %c0_78, %c0_79], %78 {strides = array<i32>} : memref<16x16x16xf32, #tpu.memory_space<vmem>>, vector<1x16x16xf32>,
    %c11 = arith.constant 11 : index
    %c0_80 = arith.constant 0 : index
    %c0_81 = arith.constant 0 : index
    %79 = vector.load %arg1[%c11, %c0_80, %c0_81] : memref<16x4x4xf32, #tpu.memory_space<vmem>>, vector<1x4x4xf32>
    %80 = vector.shape_cast %79 : vector<1x4x4xf32> to vector<4x4xf32>
    %cst_82 = arith.constant dense<0.000000e+00> : vector<4x16xf32>
    %81 = tpu.matmul %80, %1, %cst_82 {dimension_numbers = #tpu.dot_dimension_numbers<[1], [0], [0], [1], [0, 0, 1, 1], [], []>} : vector<4x4xf32>, vector<4x16xf32>, vector<4x16xf32> -> vector<4x16xf32>
    %cst_83 = arith.constant dense<0.000000e+00> : vector<16x16xf32>
    %82 = tpu.matmul %0, %81, %cst_83 {dimension_numbers = #tpu.dot_dimension_numbers<[1], [0], [0], [1], [0, 0, 1, 1], [], []>} : vector<16x4xf32>, vector<4x16xf32>, vector<16x16xf32> -> vector<16x16xf32>
    %c11_84 = arith.constant 11 : index
    %c0_85 = arith.constant 0 : index
    %c0_86 = arith.constant 0 : index
    %83 = vector.load %arg4[%c11_84, %c0_85, %c0_86] : memref<16x16x16xf32, #tpu.memory_space<vmem>>, vector<1x16x16xf32>
    %84 = vector.shape_cast %83 : vector<1x16x16xf32> to vector<16x16xf32>
    %85 = vector.shape_cast %82 : vector<16x16xf32> to vector<1x16x16xf32>
    tpu.vector_store %arg4[%c11_84, %c0_85, %c0_86], %85 {strides = array<i32>} : memref<16x16x16xf32, #tpu.memory_space<vmem>>, vector<1x16x16xf32>,
    %c12 = arith.constant 12 : index
    %c0_87 = arith.constant 0 : index
    %c0_88 = arith.constant 0 : index
    %86 = vector.load %arg1[%c12, %c0_87, %c0_88] : memref<16x4x4xf32, #tpu.memory_space<vmem>>, vector<1x4x4xf32>
    %87 = vector.shape_cast %86 : vector<1x4x4xf32> to vector<4x4xf32>
    %cst_89 = arith.constant dense<0.000000e+00> : vector<4x16xf32>
    %88 = tpu.matmul %87, %1, %cst_89 {dimension_numbers = #tpu.dot_dimension_numbers<[1], [0], [0], [1], [0, 0, 1, 1], [], []>} : vector<4x4xf32>, vector<4x16xf32>, vector<4x16xf32> -> vector<4x16xf32>
    %cst_90 = arith.constant dense<0.000000e+00> : vector<16x16xf32>
    %89 = tpu.matmul %0, %88, %cst_90 {dimension_numbers = #tpu.dot_dimension_numbers<[1], [0], [0], [1], [0, 0, 1, 1], [], []>} : vector<16x4xf32>, vector<4x16xf32>, vector<16x16xf32> -> vector<16x16xf32>
    %c12_91 = arith.constant 12 : index
    %c0_92 = arith.constant 0 : index
    %c0_93 = arith.constant 0 : index
    %90 = vector.load %arg4[%c12_91, %c0_92, %c0_93] : memref<16x16x16xf32, #tpu.memory_space<vmem>>, vector<1x16x16xf32>
    %91 = vector.shape_cast %90 : vector<1x16x16xf32> to vector<16x16xf32>
    %92 = vector.shape_cast %89 : vector<16x16xf32> to vector<1x16x16xf32>
    tpu.vector_store %arg4[%c12_91, %c0_92, %c0_93], %92 {strides = array<i32>} : memref<16x16x16xf32, #tpu.memory_space<vmem>>, vector<1x16x16xf32>,
    %c13 = arith.constant 13 : index
    %c0_94 = arith.constant 0 : index
    %c0_95 = arith.constant 0 : index
    %93 = vector.load %arg1[%c13, %c0_94, %c0_95] : memref<16x4x4xf32, #tpu.memory_space<vmem>>, vector<1x4x4xf32>
    %94 = vector.shape_cast %93 : vector<1x4x4xf32> to vector<4x4xf32>
    %cst_96 = arith.constant dense<0.000000e+00> : vector<4x16xf32>
    %95 = tpu.matmul %94, %1, %cst_96 {dimension_numbers = #tpu.dot_dimension_numbers<[1], [0], [0], [1], [0, 0, 1, 1], [], []>} : vector<4x4xf32>, vector<4x16xf32>, vector<4x16xf32> -> vector<4x16xf32>
    %cst_97 = arith.constant dense<0.000000e+00> : vector<16x16xf32>
    %96 = tpu.matmul %0, %95, %cst_97 {dimension_numbers = #tpu.dot_dimension_numbers<[1], [0], [0], [1], [0, 0, 1, 1], [], []>} : vector<16x4xf32>, vector<4x16xf32>, vector<16x16xf32> -> vector<16x16xf32>
    %c13_98 = arith.constant 13 : index
    %c0_99 = arith.constant 0 : index
    %c0_100 = arith.constant 0 : index
    %97 = vector.load %arg4[%c13_98, %c0_99, %c0_100] : memref<16x16x16xf32, #tpu.memory_space<vmem>>, vector<1x16x16xf32>
    %98 = vector.shape_cast %97 : vector<1x16x16xf32> to vector<16x16xf32>
    %99 = vector.shape_cast %96 : vector<16x16xf32> to vector<1x16x16xf32>
    tpu.vector_store %arg4[%c13_98, %c0_99, %c0_100], %99 {strides = array<i32>} : memref<16x16x16xf32, #tpu.memory_space<vmem>>, vector<1x16x16xf32>,
    %c14 = arith.constant 14 : index
    %c0_101 = arith.constant 0 : index
    %c0_102 = arith.constant 0 : index
    %100 = vector.load %arg1[%c14, %c0_101, %c0_102] : memref<16x4x4xf32, #tpu.memory_space<vmem>>, vector<1x4x4xf32>
    %101 = vector.shape_cast %100 : vector<1x4x4xf32> to vector<4x4xf32>
    %cst_103 = arith.constant dense<0.000000e+00> : vector<4x16xf32>
    %102 = tpu.matmul %101, %1, %cst_103 {dimension_numbers = #tpu.dot_dimension_numbers<[1], [0], [0], [1], [0, 0, 1, 1], [], []>} : vector<4x4xf32>, vector<4x16xf32>, vector<4x16xf32> -> vector<4x16xf32>
    %cst_104 = arith.constant dense<0.000000e+00> : vector<16x16xf32>
    %103 = tpu.matmul %0, %102, %cst_104 {dimension_numbers = #tpu.dot_dimension_numbers<[1], [0], [0], [1], [0, 0, 1, 1], [], []>} : vector<16x4xf32>, vector<4x16xf32>, vector<16x16xf32> -> vector<16x16xf32>
    %c14_105 = arith.constant 14 : index
    %c0_106 = arith.constant 0 : index
    %c0_107 = arith.constant 0 : index
    %104 = vector.load %arg4[%c14_105, %c0_106, %c0_107] : memref<16x16x16xf32, #tpu.memory_space<vmem>>, vector<1x16x16xf32>
    %105 = vector.shape_cast %104 : vector<1x16x16xf32> to vector<16x16xf32>
    %106 = vector.shape_cast %103 : vector<16x16xf32> to vector<1x16x16xf32>
    tpu.vector_store %arg4[%c14_105, %c0_106, %c0_107], %106 {strides = array<i32>} : memref<16x16x16xf32, #tpu.memory_space<vmem>>, vector<1x16x16xf32>,
    %c15 = arith.constant 15 : index
    %c0_108 = arith.constant 0 : index
    %c0_109 = arith.constant 0 : index
    %107 = vector.load %arg1[%c15, %c0_108, %c0_109] : memref<16x4x4xf32, #tpu.memory_space<vmem>>, vector<1x4x4xf32>
    %108 = vector.shape_cast %107 : vector<1x4x4xf32> to vector<4x4xf32>
    %cst_110 = arith.constant dense<0.000000e+00> : vector<4x16xf32>
    %109 = tpu.matmul %108, %1, %cst_110 {dimension_numbers = #tpu.dot_dimension_numbers<[1], [0], [0], [1], [0, 0, 1, 1], [], []>} : vector<4x4xf32>, vector<4x16xf32>, vector<4x16xf32> -> vector<4x16xf32>
    %cst_111 = arith.constant dense<0.000000e+00> : vector<16x16xf32>
    %110 = tpu.matmul %0, %109, %cst_111 {dimension_numbers = #tpu.dot_dimension_numbers<[1], [0], [0], [1], [0, 0, 1, 1], [], []>} : vector<16x4xf32>, vector<4x16xf32>, vector<16x16xf32> -> vector<16x16xf32>
    %c15_112 = arith.constant 15 : index
    %c0_113 = arith.constant 0 : index
    %c0_114 = arith.constant 0 : index
    %111 = vector.load %arg4[%c15_112, %c0_113, %c0_114] : memref<16x16x16xf32, #tpu.memory_space<vmem>>, vector<1x16x16xf32>
    %112 = vector.shape_cast %111 : vector<1x16x16xf32> to vector<16x16xf32>
    %113 = vector.shape_cast %110 : vector<16x16xf32> to vector<1x16x16xf32>
    tpu.vector_store %arg4[%c15_112, %c0_113, %c0_114], %113 {strides = array<i32>} : memref<16x16x16xf32, #tpu.memory_space<vmem>>, vector<1x16x16xf32>,
    return
  }
  func.func @transform_0(%arg0: i32) -> (i32, i32, i32) {
    %c0_i32 = arith.constant 0 : i32
    %c0_i32_0 = arith.constant 0 : i32
    %c0_i32_1 = arith.constant 0 : i32
    return %arg0, %c0_i32, %c0_i32_0 : i32, i32, i32
  }
  func.func @transform_1(%arg0: i32) -> (i32, i32) {
    %c0_i32 = arith.constant 0 : i32
    %c0_i32_0 = arith.constant 0 : i32
    %c0_i32_1 = arith.constant 0 : i32
    return %c0_i32, %c0_i32_0 : i32, i32
  }
  func.func @transform_2(%arg0: i32) -> (i32, i32) {
    %c0_i32 = arith.constant 0 : i32
    %c0_i32_0 = arith.constant 0 : i32
    %c0_i32_1 = arith.constant 0 : i32
    return %c0_i32, %c0_i32_0 : i32, i32
  }
  func.func @transform_3(%arg0: i32) -> (i32, i32, i32) {
    %c0_i32 = arith.constant 0 : i32
    %c0_i32_0 = arith.constant 0 : i32
    %c0_i32_1 = arith.constant 0 : i32
    return %arg0, %c0_i32, %c0_i32_0 : i32, i32, i32
  }
}

</mosaic_0001>

<llo_original>
// kernel: segmenter_forward.2
$region0: #{segmenter_forward.2}
  #allocation0 [shape = 'u32[]', space=smem, size = 0x4, offset = 0x4, fixed_abs, tag = 'smem constant byte address 0x4 - core index']
  #allocation1 [shape = 'u32[144,128]{1,0:T(1,128)}', space=vmem, size = 0x12000, scoped, tag = 'internal scratch']
  %s0 = inlined_call_operand.vmem [shape: f32[32,64], index: 0, kind: input, shape index: {}]
  %s1 = inlined_call_operand.vmem [shape: f32[64,32], index: 1, kind: input, shape index: {}]
  %s2 = inlined_call_operand.vmem [shape: f32[1,32], index: 2, kind: input, shape index: {}]
  %s3 = inlined_call_operand.vmem [shape: f32[16,32], index: 3, kind: input, shape index: {}]
  %s4 = inlined_call_operand.vmem [shape: f32[1,32], index: 4, kind: input, shape index: {}]
  %s5 = inlined_call_operand.vmem [shape: f32[1,32], index: 5, kind: input, shape index: {}]
  %s6 = inlined_call_operand.vmem [shape: f32[32,128], index: 6, kind: input, shape index: {}]
  %s7 = inlined_call_operand.vmem [shape: f32[1,128], index: 7, kind: input, shape index: {}]
  %s8 = inlined_call_operand.vmem [shape: f32[32,128], index: 8, kind: output, shape index: {}]
  %s9 = sld [smem:[#allocation0]]
  $region65: #{segmenter_forward.2} parent=0
    _
  %s11 = ssub.s32 1, %s9
  %s12 = scalar_select 0, %s11, %s9
  loop: start=0, step=1, limit=4
  $region2: #{segmenter_forward.2} parent=0 // loop_pre_header
    _
  $region3: #{segmenter_forward.2} parent=0 // loop_header
    %s14 = sphi 0, %s18
    %p15 = scmp.ge.s32.totalorder %s14, 4
    %s24 = sphi 0, %s26
    %s27 = sphi 0, %s24
    %s28 = sphi 0, %s27
    %s44 = sphi 0, %s28
    %s48 = sphi 0, %s48
    %s50 = sphi 0, %s48
    %s51 = sphi 0, %s50
    %s65 = sphi 0, %s51
    %s69 = sphi 0, %s69
    %s71 = sphi 0, %s69
    %s72 = sphi 0, %s71
    %s86 = sphi 0, %s72
    %s90 = sphi 0, %s90
    %s92 = sphi 0, %s90
    %s93 = sphi 0, %s92
    %s107 = sphi 0, %s93
    %s111 = sphi 0, %s111
    %s113 = sphi 0, %s111
    %s114 = sphi 0, %s113
    %s128 = sphi 0, %s114
    %s132 = sphi 0, %s132
    %s134 = sphi 0, %s132
    %s135 = sphi 0, %s134
    %s149 = sphi 0, %s135
    %s153 = sphi 0, %s153
    %s155 = sphi 0, %s153
    %s156 = sphi 0, %s155
    %s170 = sphi 0, %s156
    %s174 = sphi 0, %s174
    %s176 = sphi 0, %s174
    %s177 = sphi 0, %s176
    %s191 = sphi 0, %s177
    %s197 = sphi 0, %s199
    %s200 = sphi 0, %s197
    %s201 = sphi 0, %s200
    %s217 = sphi 0, %s201
  $region4: #{segmenter_forward.2} parent=0 // loop_header_branch
    %17 = sbr.rel (%p15) target = $region8
  $region5: #{segmenter_forward.2} parent=0 // loop_body
    %s19 = ssub.s32 %s14, 1
    %s20 = ssub.s32 %s14, 2
    %s21 = sadd.s32 %s14, 1
    %s22 = ssub.s32 %s14, %s21
    %p23 = scmp.eq.s32.totalorder %s22, 0
    %s25 = sadd.s32 %s24, 1
    %s26 = scalar_select %p23, %s24, %s25
    %p29 = pneg %p23
    %p30 = scmp.eq.s32.totalorder %s14, 1
    %p31 = por %p29, %p30
    %p32 = scmp.ne.s32.totalorder %s24, %s27
    %p33 = scmp.eq.s32.totalorder %s14, 0
    %p34 = por %p32, %p33
    %p35 = scmp.ne.s32.totalorder %s24, %s27
    %p36 = scmp.eq.s32.totalorder %s19, 1
    %p37 = por %p35, %p36
    %p38 = scmp.ne.s32.totalorder %s27, %s28
    %p39 = scmp.eq.s32.totalorder %s19, 0
    %p40 = por %p38, %p39
    %p41 = scmp.ne.s32.totalorder %s27, %s28
    %p42 = scmp.eq.s32.totalorder %s20, 1
    %p43 = por %p41, %p42
    %p45 = scmp.ne.s32.totalorder %s28, %s44
    %p46 = scmp.eq.s32.totalorder %s20, 0
    %p47 = por %p45, %p46
    %s49 = sadd.s32 %s48, 1
    %p52 = scmp.eq.s32.totalorder %s14, 1
    %p53 = scmp.ne.s32.totalorder %s48, %s50
    %p54 = scmp.eq.s32.totalorder %s14, 0
    %p55 = por %p53, %p54
    %p56 = scmp.ne.s32.totalorder %s48, %s50
    %p57 = scmp.eq.s32.totalorder %s19, 1
    %p58 = por %p56, %p57
    %p59 = scmp.ne.s32.totalorder %s50, %s51
    %p60 = scmp.eq.s32.totalorder %s19, 0
    %p61 = por %p59, %p60
    %p62 = scmp.ne.s32.totalorder %s50, %s51
    %p63 = scmp.eq.s32.totalorder %s20, 1
    %p64 = por %p62, %p63
    %p66 = scmp.ne.s32.totalorder %s51, %s65
    %p67 = scmp.eq.s32.totalorder %s20, 0
    %p68 = por %p66, %p67
    %s70 = sadd.s32 %s69, 1
    %p73 = scmp.eq.s32.totalorder %s14, 1
    %p74 = scmp.ne.s32.totalorder %s69, %s71
    %p75 = scmp.eq.s32.totalorder %s14, 0
    %p76 = por %p74, %p75
    %p77 = scmp.ne.s32.totalorder %s69, %s71
    %p78 = scmp.eq.s32.totalorder %s19, 1
    %p79 = por %p77, %p78
    %p80 = scmp.ne.s32.totalorder %s71, %s72
    %p81 = scmp.eq.s32.totalorder %s19, 0
    %p82 = por %p80, %p81
    %p83 = scmp.ne.s32.totalorder %s71, %s72
    %p84 = scmp.eq.s32.totalorder %s20, 1
    %p85 = por %p83, %p84
    %p87 = scmp.ne.s32.totalorder %s72, %s86
    %p88 = scmp.eq.s32.totalorder %s20, 0
    %p89 = por %p87, %p88
    %s91 = sadd.s32 %s90, 1
    %p94 = scmp.eq.s32.totalorder %s14, 1
    %p95 = scmp.ne.s32.totalorder %s90, %s92
    %p96 = scmp.eq.s32.totalorder %s14, 0
    %p97 = por %p95, %p96
    %p98 = scmp.ne.s32.totalorder %s90, %s92
    %p99 = scmp.eq.s32.totalorder %s19, 1
    %p100 = por %p98, %p99
    %p101 = scmp.ne.s32.totalorder %s92, %s93
    %p102 = scmp.eq.s32.totalorder %s19, 0
    %p103 = por %p101, %p102
    %p104 = scmp.ne.s32.totalorder %s92, %s93
    %p105 = scmp.eq.s32.totalorder %s20, 1
    %p106 = por %p104, %p105
    %p108 = scmp.ne.s32.totalorder %s93, %s107
    %p109 = scmp.eq.s32.totalorder %s20, 0
    %p110 = por %p108, %p109
    %s112 = sadd.s32 %s111, 1
    %p115 = scmp.eq.s32.totalorder %s14, 1
    %p116 = scmp.ne.s32.totalorder %s111, %s113
    %p117 = scmp.eq.s32.totalorder %s14, 0
    %p118 = por %p116, %p117
    %p119 = scmp.ne.s32.totalorder %s111, %s113
    %p120 = scmp.eq.s32.totalorder %s19, 1
    %p121 = por %p119, %p120
    %p122 = scmp.ne.s32.totalorder %s113, %s114
    %p123 = scmp.eq.s32.totalorder %s19, 0
    %p124 = por %p122, %p123
    %p125 = scmp.ne.s32.totalorder %s113, %s114
    %p126 = scmp.eq.s32.totalorder %s20, 1
    %p127 = por %p125, %p126
    %p129 = scmp.ne.s32.totalorder %s114, %s128
    %p130 = scmp.eq.s32.totalorder %s20, 0
    %p131 = por %p129, %p130
    %s133 = sadd.s32 %s132, 1
    %p136 = scmp.eq.s32.totalorder %s14, 1
    %p137 = scmp.ne.s32.totalorder %s132, %s134
    %p138 = scmp.eq.s32.totalorder %s14, 0
    %p139 = por %p137, %p138
    %p140 = scmp.ne.s32.totalorder %s132, %s134
    %p141 = scmp.eq.s32.totalorder %s19, 1
    %p142 = por %p140, %p141
    %p143 = scmp.ne.s32.totalorder %s134, %s135
    %p144 = scmp.eq.s32.totalorder %s19, 0
    %p145 = por %p143, %p144
    %p146 = scmp.ne.s32.totalorder %s134, %s135
    %p147 = scmp.eq.s32.totalorder %s20, 1
    %p148 = por %p146, %p147
    %p150 = scmp.ne.s32.totalorder %s135, %s149
    %p151 = scmp.eq.s32.totalorder %s20, 0
    %p152 = por %p150, %p151
    %s154 = sadd.s32 %s153, 1
    %p157 = scmp.eq.s32.totalorder %s14, 1
    %p158 = scmp.ne.s32.totalorder %s153, %s155
    %p159 = scmp.eq.s32.totalorder %s14, 0
    %p160 = por %p158, %p159
    %p161 = scmp.ne.s32.totalorder %s153, %s155
    %p162 = scmp.eq.s32.totalorder %s19, 1
    %p163 = por %p161, %p162
    %p164 = scmp.ne.s32.totalorder %s155, %s156
    %p165 = scmp.eq.s32.totalorder %s19, 0
    %p166 = por %p164, %p165
    %p167 = scmp.ne.s32.totalorder %s155, %s156
    %p168 = scmp.eq.s32.totalorder %s20, 1
    %p169 = por %p167, %p168
    %p171 = scmp.ne.s32.totalorder %s156, %s170
    %p172 = scmp.eq.s32.totalorder %s20, 0
    %p173 = por %p171, %p172
    %s175 = sadd.s32 %s174, 1
    %p178 = scmp.eq.s32.totalorder %s14, 1
    %p179 = scmp.ne.s32.totalorder %s174, %s176
    %p180 = scmp.eq.s32.totalorder %s14, 0
    %p181 = por %p179, %p180
    %p182 = scmp.ne.s32.totalorder %s174, %s176
    %p183 = scmp.eq.s32.totalorder %s19, 1
    %p184 = por %p182, %p183
    %p185 = scmp.ne.s32.totalorder %s176, %s177
    %p186 = scmp.eq.s32.totalorder %s19, 0
    %p187 = por %p185, %p186
    %p188 = scmp.ne.s32.totalorder %s176, %s177
    %p189 = scmp.eq.s32.totalorder %s20, 1
    %p190 = por %p188, %p189
    %p192 = scmp.ne.s32.totalorder %s177, %s191
    %p193 = scmp.eq.s32.totalorder %s20, 0
    %p194 = por %p192, %p193
    %s195 = ssub.s32 %s14, %s21
    %p196 = scmp.eq.s32.totalorder %s195, 0
    %s198 = sadd.s32 %s197, 1
    %s199 = scalar_select %p196, %s197, %s198
    %p202 = pneg %p196
    %p203 = scmp.eq.s32.totalorder %s14, 1
    %p204 = por %p202, %p203
    %p205 = scmp.ne.s32.totalorder %s197, %s200
    %p206 = scmp.eq.s32.totalorder %s14, 0
    %p207 = por %p205, %p206
    %p208 = scmp.ne.s32.totalorder %s197, %s200
    %p209 = scmp.eq.s32.totalorder %s19, 1
    %p210 = por %p208, %p209
    %p211 = scmp.ne.s32.totalorder %s200, %s201
    %p212 = scmp.eq.s32.totalorder %s19, 0
    %p213 = por %p211, %p212
    %p214 = scmp.ne.s32.totalorder %s200, %s201
    %p215 = scmp.eq.s32.totalorder %s20, 1
    %p216 = por %p214, %p215
    %p218 = scmp.ne.s32.totalorder %s201, %s217
    %p219 = scmp.eq.s32.totalorder %s20, 0
    %p220 = por %p218, %p219
    %p221 = scmp.le.s32.totalorder 1, %s14
    %p222 = scmp.lt.s32.totalorder %s14, 3
    %p223 = pnand %p221, %p222
    %p224 = pneg %p223
    // Predicated region
    $region9: #{segmenter_forward.2} parent=5 // pred_check
      _
    $region10: #{segmenter_forward.2} parent=5 // pred_check_branch
      %226 = sbr.rel (%p223) target = $region12
    $region11: #{segmenter_forward.2} parent=5 // pred_region
      %s227 = ssub.s32 %s14, 1
      // Predicated region
      $region13: #{segmenter_forward.2} parent=11 // pred_check
        %p228 = pneg %p61
      $region14: #{segmenter_forward.2} parent=11 // pred_check_branch
        %230 = sbr.rel (%p228) target = $region16
      $region15: #{segmenter_forward.2} parent=11 // pred_region
        _
      $region16: #{segmenter_forward.2} parent=11 // pred_fallthru
        _
      // Predicated region
      $region17: #{segmenter_forward.2} parent=11 // pred_check
        %p231 = pneg %p82
      $region18: #{segmenter_forward.2} parent=11 // pred_check_branch
        %233 = sbr.rel (%p231) target = $region20
      $region19: #{segmenter_forward.2} parent=11 // pred_region
        _
      $region20: #{segmenter_forward.2} parent=11 // pred_fallthru
        _
      // Predicated region
      $region21: #{segmenter_forward.2} parent=11 // pred_check
        %p234 = pneg %p103
      $region22: #{segmenter_forward.2} parent=11 // pred_check_branch
        %236 = sbr.rel (%p234) target = $region24
      $region23: #{segmenter_forward.2} parent=11 // pred_region
        _
      $region24: #{segmenter_forward.2} parent=11 // pred_fallthru
        _
      // Predicated region
      $region25: #{segmenter_forward.2} parent=11 // pred_check
        %p237 = pneg %p124
      $region26: #{segmenter_forward.2} parent=11 // pred_check_branch
        %239 = sbr.rel (%p237) target = $region28
      $region27: #{segmenter_forward.2} parent=11 // pred_region
        _
      $region28: #{segmenter_forward.2} parent=11 // pred_fallthru
        _
      // Predicated region
      $region29: #{segmenter_forward.2} parent=11 // pred_check
        %p240 = pneg %p145
      $region30: #{segmenter_forward.2} parent=11 // pred_check_branch
        %242 = sbr.rel (%p240) target = $region32
      $region31: #{segmenter_forward.2} parent=11 // pred_region
        _
      $region32: #{segmenter_forward.2} parent=11 // pred_fallthru
        _
      // Predicated region
      $region33: #{segmenter_forward.2} parent=11 // pred_check
        %p243 = pneg %p166
      $region34: #{segmenter_forward.2} parent=11 // pred_check_branch
        %245 = sbr.rel (%p243) target = $region36
      $region35: #{segmenter_forward.2} parent=11 // pred_region
        _
      $region36: #{segmenter_forward.2} parent=11 // pred_fallthru
        _
      // Predicated region
      $region37: #{segmenter_forward.2} parent=11 // pred_check
        %p246 = pneg %p187
      $region38: #{segmenter_forward.2} parent=11 // pred_check_branch
        %248 = sbr.rel (%p246) target = $region40
      $region39: #{segmenter_forward.2} parent=11 // pred_region
        _
      $region40: #{segmenter_forward.2} parent=11 // pred_fallthru
        _
    $region12: #{segmenter_forward.2} parent=5 // pred_fallthru
      _
    %p249 = scmp.lt.s32.totalorder %s14, 2
    // Predicated region
    $region41: #{segmenter_forward.2} parent=5 // pred_check
      %p250 = pneg %p249
    $region42: #{segmenter_forward.2} parent=5 // pred_check_branch
      %252 = sbr.rel (%p250) target = $region44
    $region43: #{segmenter_forward.2} parent=5 // pred_region
      // Predicated region
      $region45: #{segmenter_forward.2} parent=43 // pred_check
        %p253 = pneg %p34
      $region46: #{segmenter_forward.2} parent=43 // pred_check_branch
        %255 = sbr.rel (%p253) target = $region48
      $region47: #{segmenter_forward.2} parent=43 // pred_region
        %s256 = smul.u32 2, %s14
        %p257 = scmp.lt.s32.totalorder %s256, 3
        %s258 = scalar_select %p257, %s256, 3
        %s259 = smul.addr %s258, 8
        %s260 = scalar_lea.vmem %s0, %s259
        %s261 = smul.u32 2, %s14
      $region48: #{segmenter_forward.2} parent=43 // pred_fallthru
        _
    $region44: #{segmenter_forward.2} parent=5 // pred_fallthru
      _
    %p262 = scmp.le.s32.totalorder 1, %s14
    %p263 = scmp.lt.s32.totalorder %s14, 3
    %p264 = pnand %p262, %p263
    %p265 = pneg %p264
    // Predicated region
    $region49: #{segmenter_forward.2} parent=5 // pred_check
      _
    $region50: #{segmenter_forward.2} parent=5 // pred_check_branch
      %267 = sbr.rel (%p264) target = $region52
    $region51: #{segmenter_forward.2} parent=5 // pred_region
      %s268 = ssub.s32 %s14, 1
      %s269 = smul.u32 2, %s19
      %p270 = scmp.lt.s32.totalorder %s269, 3
      %s271 = scalar_select %p270, %s269, 3
      %s272 = smul.addr %s271, 8
      %s273 = scalar_lea.vmem %s0, %s272
      %p274 = pneg %p40
      %p275 = pneg %p37
      %p276 = pneg %p61
      %p277 = pneg %p58
      %p278 = pneg %p82
      %p279 = pneg %p79
      %p280 = pneg %p103
      %p281 = pneg %p100
      %p282 = pneg %p124
      %p283 = pneg %p121
      %p284 = pneg %p145
      %p285 = pneg %p142
      %p286 = pneg %p166
      %p287 = pneg %p163
      %p288 = pneg %p187
      %p289 = pneg %p184
      %p290 = pneg %p213
      %p291 = pneg %p210
      %s292 = smul.u32 2, %s19
      %p293 = scmp.lt.s32.totalorder %s292, 3
      %s294 = scalar_select %p293, %s292, 3
      %s295 = smul.addr %s294, 8
      %s296 = scalar_lea.vmem %s8, %s295
      %s297 = smul.u32 2, %s19
      %p298 = scmp.lt.s32.totalorder %s297, 3
      %s299 = scalar_select %p298, %s297, 3
      %s300 = smul.addr %s299, 8
      %s301 = scalar_lea.vmem %s0, %s300
      %s302 = smul.u32 2, %s19
      %s303 = smul.u32 2, %s19
      %p304 = scmp.lt.s32.totalorder %s303, 3
      %s305 = scalar_select %p304, %s303, 3
      %s306 = smul.addr %s305, 8
      %s307 = scalar_lea.vmem %s8, %s306
      %s308 = smul.u32 2, %s19
      %v309 = vld [vmem:[%s301] sm:$0xff]
      %v310 = vld [vmem:[%s301 + $0x8] sm:$0xff]
      %v311 = vld [vmem:[%s1] sm:$0xff]
      %v312 = vld [vmem:[%s1 + $0x8] sm:$0xff]
      %v313 = vld [vmem:[%s1 + $0x10] sm:$0xff]
      %v314 = vld [vmem:[%s1 + $0x18] sm:$0xff]
      %v315 = vld [vmem:[%s1 + $0x20] sm:$0xff]
      %v316 = vld [vmem:[%s1 + $0x28] sm:$0xff]
      %v317 = vld [vmem:[%s1 + $0x30] sm:$0xff]
      %v318 = vld [vmem:[%s1 + $0x38] sm:$0xff]
      %v319 = vld [vmem:[%s3] sm:$0xff]
      %v320 = vld [vmem:[%s3 + $0x8] sm:$0xff]
      %v321 = vld [vmem:[%s2] sm:$0x1]
      %v323 = vlaneseq
      %v324 = vshrl.u32 %v323, 7
      %v325 = vsub.s32 0, %v324
      %v326 = vrot.slane %v321, %v325
      %vm328 = vcmask 523264
      %v330 = vsel %vm328, %v309, 0
      %v333 = vsel %vm328, %v310, 0
      %335 = vmatprep.subr.mxu0 0.0
      %336 = vmatpush1.msra.mxu0 %v311
      %337 = vmatprep.subr.mxu0 0.0
      %338 = vmatpush1.msra.mxu0 %v312
      %339 = vmatprep.subr.mxu0 0.0
      %340 = vmatpush1.msra.mxu0 %v313
      %341 = vmatprep.subr.mxu0 0.0
      %342 = vmatpush1.msra.mxu0 %v314
      %343 = vmatprep.subr.mxu0 0.0
      %344 = vmatpush1.msra.mxu0 %v315
      %345 = vmatprep.subr.mxu0 0.0
      %346 = vmatpush1.msra.mxu0 %v316
      %347 = vmatprep.subr.mxu0 0.0
      %348 = vmatpush1.msra.mxu0 %v317
      %349 = vmatprep.subr.mxu0 0.0
      %350 = vmatpush1.msra.mxu0 %v318
      %351 = vmatprep.subr.mxu0 0.0
      %352 = vmatpush1.msra.mxu0 0.0
      %353 = vmatprep.subr.mxu0 0.0
      %354 = vmatpush1.msra.mxu0 0.0
      %355 = vmatprep.subr.mxu0 0.0
      %356 = vmatpush1.msra.mxu0 0.0
      %357 = vmatprep.subr.mxu0 0.0
      %358 = vmatpush1.msra.mxu0 0.0
      %359 = vmatprep.subr.mxu0 0.0
      %360 = vmatpush1.msra.mxu0 0.0
      %361 = vmatprep.subr.mxu0 0.0
      %362 = vmatpush1.msra.mxu0 0.0
      %363 = vmatprep.subr.mxu0 0.0
      %364 = vmatpush1.msra.mxu0 0.0
      %365 = vmatprep.subr.mxu0 0.0
      %366 = vmatpush1.msra.mxu0 0.0
      %367 = vmatprep.subr.mxu0 0.0
      %368 = vmatpush1.msra.mxu0 0.0
      %369 = vmatprep.subr.mxu0 0.0
      %370 = vmatpush1.msra.mxu0 0.0
      %371 = vmatprep.subr.mxu0 0.0
      %372 = vmatpush1.msra.mxu0 0.0
      %373 = vmatprep.subr.mxu0 0.0
      %374 = vmatpush1.msra.mxu0 0.0
      %375 = vmatprep.subr.mxu0 0.0
      %376 = vmatpush1.msra.mxu0 0.0
      %377 = vmatprep.subr.mxu0 0.0
      %378 = vmatpush1.msra.mxu0 0.0
      %379 = vmatprep.subr.mxu0 0.0
      %380 = vmatpush1.msra.mxu0 0.0
      %381 = vmatprep.subr.mxu0 0.0
      %382 = vmatpush1.msra.mxu0 0.0
      %383 = vmatprep.subr.mxu0 0.0
      %384 = vmatpush1.msra.mxu0 0.0
      %385 = vmatprep.subr.mxu0 0.0
      %386 = vmatpush1.msra.mxu0 0.0
      %387 = vmatprep.subr.mxu0 0.0
      %388 = vmatpush1.msra.mxu0 0.0
      %389 = vmatprep.subr.mxu0 0.0
      %390 = vmatpush1.msra.mxu0 0.0
      %391 = vmatprep.subr.mxu0 0.0
      %392 = vmatpush1.msra.mxu0 0.0
      %393 = vmatprep.subr.mxu0 0.0
      %394 = vmatpush1.msra.mxu0 0.0
      %395 = vmatprep.subr.mxu0 0.0
      %396 = vmatpush1.msra.mxu0 0.0
      %397 = vmatprep.subr.mxu0 0.0
      %398 = vmatpush1.msra.mxu0 0.0
      %399 = vmatprep.mubr.f32.mxu0 0.0
      %400 = vmatmul.mubr.f32.gmra.mrb[0].mxu0 %v330
      %v401 = vpop.f32.mrb[0].mxu0
      %v402 = vadd.f32 %v326, %v401
      %v403 = vpop.f32.mrb[0].mxu0
      %404 = vmatprep.mubr.f32.mxu0 0.0
      %405 = vmatmul.mubr.f32.gmra.mrb[0].mxu0 %v333
      %v406 = vpop.f32.mrb[0].mxu0
      %v407 = vadd.f32 %v326, %v406
      %v408 = vpop.f32.mrb[0].mxu0
      %409 = vdwg.mxu0
      %v410 = vadd.f32 %v402, %v319
      %v411 = vadd.f32 %v407, %v320
      %vm412 = vcmask 261120
      %v413 = vsel %vm412, %v410, 0.0
      %414 = vadd.xlane.f32.xlu0 %v413
      %v415 = vpop.xlane.xlu0 %414
      %v416 = vsel %vm412, %v411, 0.0
      %417 = vadd.xlane.f32.xlu0 %v416
      %v418 = vpop.xlane.xlu0 %417
      %v419 = vrcp.pop 32.0
      %v420 = vmul.f32 %v415, %v419
      %v421 = vmul.f32 %v418, %v419
      %v422 = vmul.f32 %v410, %v410
      %v423 = vmul.f32 %v411, %v411
      %v424 = vsel %vm412, %v422, 0.0
      %425 = vadd.xlane.f32.xlu0 %v424
      %v426 = vpop.xlane.xlu0 %425
      %v427 = vsel %vm412, %v423, 0.0
      %428 = vadd.xlane.f32.xlu0 %v427
      %v429 = vpop.xlane.xlu0 %428
      %v430 = vmul.f32 %v426, %v419
      %v431 = vmul.f32 %v429, %v419
      %v432 = vmul.f32 %v420, %v420
      %v433 = vmul.f32 %v421, %v421
      %v434 = vsub.f32 %v430, %v432
      %v435 = vsub.f32 %v431, %v433
      %v436 = vmax.f32 %v434, 0.0
      %v437 = vmax.f32 %v435, 0.0
      %v438 = vsub.f32 %v410, %v420
      %v439 = vsub.f32 %v411, %v421
      %v440 = vadd.f32 %v436, 1e-06
      %v441 = vadd.f32 %v437, 1e-06
      %v442 = vrsqrt.pop %v440
      %v443 = vrsqrt.pop %v441
      %v444 = vmul.f32 %v438, %v442
      %v445 = vmul.f32 %v439, %v443
      %v446 = vld [vmem:[%s4] sm:$0x1]
      %v448 = vlaneseq
      %v449 = vshrl.u32 %v448, 7
      %v450 = vsub.s32 0, %v449
      %v451 = vrot.slane %v446, %v450
      %v453 = vmul.f32 %v444, %v451
      %v454 = vmul.f32 %v445, %v451
      %v455 = vld [vmem:[%s5] sm:$0x1]
      %v457 = vlaneseq
      %v458 = vshrl.u32 %v457, 7
      %v459 = vsub.s32 0, %v458
      %v460 = vrot.slane %v455, %v459
      %v462 = vadd.f32 %v453, %v460
      %v463 = vadd.f32 %v454, %v460
      %v464 = vld [vmem:[%s6] sm:$0xff]
      %v465 = vld [vmem:[%s6 + $0x8] sm:$0xff]
      %v466 = vld [vmem:[%s6 + $0x10] sm:$0xff]
      %v467 = vld [vmem:[%s6 + $0x18] sm:$0xff]
      %v468 = vld [vmem:[%s7] sm:$0x1]
      %v470 = vlaneseq
      %v471 = vshrl.u32 %v470, 7
      %v472 = vsub.s32 0, %v471
      %v473 = vrot.slane %v468, %v472
      %v476 = vsel %vm412, %v462, 0
      %v479 = vsel %vm412, %v463, 0
      %481 = vmatprep.subr.mxu0 0.0
      %482 = vmatpush1.msra.mxu0 %v464
      %483 = vmatprep.subr.mxu0 0.0
      %484 = vmatpush1.msra.mxu0 %v465
      %485 = vmatprep.subr.mxu0 0.0
      %486 = vmatpush1.msra.mxu0 %v466
      %487 = vmatprep.subr.mxu0 0.0
      %488 = vmatpush1.msra.mxu0 %v467
      %489 = vmatprep.subr.mxu0 0.0
      %490 = vmatpush1.msra.mxu0 0.0
      %491 = vmatprep.subr.mxu0 0.0
      %492 = vmatpush1.msra.mxu0 0.0
      %493 = vmatprep.subr.mxu0 0.0
      %494 = vmatpush1.msra.mxu0 0.0
      %495 = vmatprep.subr.mxu0 0.0
      %496 = vmatpush1.msra.mxu0 0.0
      %497 = vmatprep.subr.mxu0 0.0
      %498 = vmatpush1.msra.mxu0 0.0
      %499 = vmatprep.subr.mxu0 0.0
      %500 = vmatpush1.msra.mxu0 0.0
      %501 = vmatprep.subr.mxu0 0.0
      %502 = vmatpush1.msra.mxu0 0.0
      %503 = vmatprep.subr.mxu0 0.0
      %504 = vmatpush1.msra.mxu0 0.0
      %505 = vmatprep.subr.mxu0 0.0
      %506 = vmatpush1.msra.mxu0 0.0
      %507 = vmatprep.subr.mxu0 0.0
      %508 = vmatpush1.msra.mxu0 0.0
      %509 = vmatprep.subr.mxu0 0.0
      %510 = vmatpush1.msra.mxu0 0.0
      %511 = vmatprep.subr.mxu0 0.0
      %512 = vmatpush1.msra.mxu0 0.0
      %513 = vmatprep.subr.mxu0 0.0
      %514 = vmatpush1.msra.mxu0 0.0
      %515 = vmatprep.subr.mxu0 0.0
      %516 = vmatpush1.msra.mxu0 0.0
      %517 = vmatprep.subr.mxu0 0.0
      %518 = vmatpush1.msra.mxu0 0.0
      %519 = vmatprep.subr.mxu0 0.0
      %520 = vmatpush1.msra.mxu0 0.0
      %521 = vmatprep.subr.mxu0 0.0
      %522 = vmatpush1.msra.mxu0 0.0
      %523 = vmatprep.subr.mxu0 0.0
      %524 = vmatpush1.msra.mxu0 0.0
      %525 = vmatprep.subr.mxu0 0.0
      %526 = vmatpush1.msra.mxu0 0.0
      %527 = vmatprep.subr.mxu0 0.0
      %528 = vmatpush1.msra.mxu0 0.0
      %529 = vmatprep.subr.mxu0 0.0
      %530 = vmatpush1.msra.mxu0 0.0
      %531 = vmatprep.subr.mxu0 0.0
      %532 = vmatpush1.msra.mxu0 0.0
      %533 = vmatprep.subr.mxu0 0.0
      %534 = vmatpush1.msra.mxu0 0.0
      %535 = vmatprep.subr.mxu0 0.0
      %536 = vmatpush1.msra.mxu0 0.0
      %537 = vmatprep.subr.mxu0 0.0
      %538 = vmatpush1.msra.mxu0 0.0
      %539 = vmatprep.subr.mxu0 0.0
      %540 = vmatpush1.msra.mxu0 0.0
      %541 = vmatprep.subr.mxu0 0.0
      %542 = vmatpush1.msra.mxu0 0.0
      %543 = vmatprep.subr.mxu0 0.0
      %544 = vmatpush1.msra.mxu0 0.0
      %545 = vmatprep.mubr.f32.mxu0 0.0
      %546 = vmatmul.mubr.f32.gmra.mrb[0].mxu0 %v476
      %v547 = vpop.f32.mrb[0].mxu0
      %v548 = vadd.f32 %v473, %v547
      %v549 = vpop.f32.mrb[0].mxu0
      %550 = vmatprep.mubr.f32.mxu0 0.0
      %551 = vmatmul.mubr.f32.gmra.mrb[0].mxu0 %v479
      %v552 = vpop.f32.mrb[0].mxu0
      %v553 = vadd.f32 %v473, %v552
      %v554 = vpop.f32.mrb[0].mxu0
      %555 = vdwg.mxu0
      %556 = vst [vmem:[%s307] sm:$0xff] %v548
      %557 = vst [vmem:[%s307 + $0x8] sm:$0xff] %v553
      %s558 = smul.u32 2, %s19
      %p559 = scmp.lt.s32.totalorder %s558, 3
      %s560 = scalar_select %p559, %s558, 3
      %s561 = smul.addr %s560, 8
      %s562 = scalar_lea.vmem %s8, %s561
      // Predicated region
      $region53: #{segmenter_forward.2} parent=51 // pred_check
        %p563 = pneg %p210
      $region54: #{segmenter_forward.2} parent=51 // pred_check_branch
        %565 = sbr.rel (%p563) target = $region56
      $region55: #{segmenter_forward.2} parent=51 // pred_region
        %s566 = smul.u32 2, %s19
      $region56: #{segmenter_forward.2} parent=51 // pred_fallthru
        _
    $region52: #{segmenter_forward.2} parent=5 // pred_fallthru
      _
    %p567 = scmp.le.s32.totalorder 2, %s14
    // Predicated region
    $region57: #{segmenter_forward.2} parent=5 // pred_check
      %p568 = pneg %p567
    $region58: #{segmenter_forward.2} parent=5 // pred_check_branch
      %570 = sbr.rel (%p568) target = $region60
    $region59: #{segmenter_forward.2} parent=5 // pred_region
      %s571 = ssub.s32 %s14, 2
      // Predicated region
      $region61: #{segmenter_forward.2} parent=59 // pred_check
        %p572 = pneg %p216
      $region62: #{segmenter_forward.2} parent=59 // pred_check_branch
        %574 = sbr.rel (%p572) target = $region64
      $region63: #{segmenter_forward.2} parent=59 // pred_region
        %s575 = smul.u32 2, %s20
        %p576 = scmp.lt.s32.totalorder %s575, 3
        %s577 = scalar_select %p576, %s575, 3
        %s578 = smul.addr %s577, 8
        %s579 = scalar_lea.vmem %s8, %s578
      $region64: #{segmenter_forward.2} parent=59 // pred_fallthru
        _
    $region60: #{segmenter_forward.2} parent=5 // pred_fallthru
      _
  $region6: #{segmenter_forward.2} parent=0 // loop_footer
    %s18 = sadd.s32 1, %s14
  $region7: #{segmenter_forward.2} parent=0 // loop_footer_branch
    %13 = sbr.rel target = $region3
  $region8: #{segmenter_forward.2} parent=0 // loop_exit
    _

// kernel: segmenter_forward.3
$region0: #{segmenter_forward.3}
  #allocation0 [shape = 'u32[]', space=smem, size = 0x4, offset = 0x4, fixed_abs, tag = 'smem constant byte address 0x4 - core index']
  #allocation1 [shape = 'u32[144,128]{1,0:T(1,128)}', space=vmem, size = 0x12000, scoped, tag = 'internal scratch']
  %s0 = inlined_call_operand.vmem [shape: f32[16,4,4], index: 0, kind: input, shape index: {}]
  %s1 = inlined_call_operand.vmem [shape: f32[4,16], index: 1, kind: input, shape index: {}]
  %s2 = inlined_call_operand.vmem [shape: f32[16,4], index: 2, kind: input, shape index: {}]
  %s3 = inlined_call_operand.hbm [shape: f32[16,16,16], index: 3, kind: output, shape index: {}]
  %s4 = sld [smem:[#allocation0]]
  $region22: #{segmenter_forward.3} parent=0
    _
  %s6 = ssub.s32 1, %s4
  %s7 = scalar_select 0, %s6, %s4
  $region1: #{segmenter_forward.3} parent=0
    #allocation2 [shape = 'u8[131072]{0}', space=vmem, size = 0x20000, scoped, tag = 'output window, operand 0, single buffered']
    #allocation3 [shape = 's32[1]{0}', space=sflag, size = 0x4, scoped, tag = 'scoped memory for segmenter_forward.3']
    %8 = vsyncpa [#allocation3], 0
    // Predicated region
    $region2: #{segmenter_forward.3} parent=1 // pred_check
      _
    $region3: #{segmenter_forward.3} parent=1 // pred_check_branch
      %10 = sbr.rel (0) target = $region5
    $region4: #{segmenter_forward.3} parent=1 // pred_region
      _
    $region5: #{segmenter_forward.3} parent=1 // pred_fallthru
      _
    // Predicated region
    $region6: #{segmenter_forward.3} parent=1 // pred_check
      _
    $region7: #{segmenter_forward.3} parent=1 // pred_check_branch
      %12 = sbr.rel (0) target = $region9
    $region8: #{segmenter_forward.3} parent=1 // pred_region
      _
    $region9: #{segmenter_forward.3} parent=1 // pred_fallthru
      _
    // Predicated region
    $region10: #{segmenter_forward.3} parent=1 // pred_check
      _
    $region11: #{segmenter_forward.3} parent=1 // pred_check_branch
      %14 = sbr.rel (0) target = $region13
    $region12: #{segmenter_forward.3} parent=1 // pred_region
      _
    $region13: #{segmenter_forward.3} parent=1 // pred_fallthru
      _
    %v15 = vld [vmem:[%s2] sm:$0xff]
    %v16 = vld [vmem:[%s2 + $0x8] sm:$0xff]
    %v17 = vld [vmem:[%s1] sm:$0xf]
    %v18 = vld [vmem:[%s0] sm:$0xf]
    %vm19 = vcmask 31744
    %v21 = vsel %vm19, %v18, 0
    %vm23 = vcmask 1043456
    %v25 = vsel %vm23, %v17, 0
    %27 = vmatprep.subr.mxu0 0.0
    %28 = vmatpush1.msra.mxu0 %v25
    %29 = vmatprep.subr.mxu0 0.0
    %30 = vmatpush1.msra.mxu0 0.0
    %31 = vmatprep.subr.mxu0 0.0
    %32 = vmatpush1.msra.mxu0 0.0
    %33 = vmatprep.subr.mxu0 0.0
    %34 = vmatpush1.msra.mxu0 0.0
    %35 = vmatprep.subr.mxu0 0.0
    %36 = vmatpush1.msra.mxu0 0.0
    %37 = vmatprep.subr.mxu0 0.0
    %38 = vmatpush1.msra.mxu0 0.0
    %39 = vmatprep.subr.mxu0 0.0
    %40 = vmatpush1.msra.mxu0 0.0
    %41 = vmatprep.subr.mxu0 0.0
    %42 = vmatpush1.msra.mxu0 0.0
    %43 = vmatprep.subr.mxu0 0.0
    %44 = vmatpush1.msra.mxu0 0.0
    %45 = vmatprep.subr.mxu0 0.0
    %46 = vmatpush1.msra.mxu0 0.0
    %47 = vmatprep.subr.mxu0 0.0
    %48 = vmatpush1.msra.mxu0 0.0
    %49 = vmatprep.subr.mxu0 0.0
    %50 = vmatpush1.msra.mxu0 0.0
    %51 = vmatprep.subr.mxu0 0.0
    %52 = vmatpush1.msra.mxu0 0.0
    %53 = vmatprep.subr.mxu0 0.0
    %54 = vmatpush1.msra.mxu0 0.0
    %55 = vmatprep.subr.mxu0 0.0
    %56 = vmatpush1.msra.mxu0 0.0
    %57 = vmatprep.subr.mxu0 0.0
    %58 = vmatpush1.msra.mxu0 0.0
    %59 = vmatprep.subr.mxu0 0.0
    %60 = vmatpush1.msra.mxu0 0.0
    %61 = vmatprep.subr.mxu0 0.0
    %62 = vmatpush1.msra.mxu0 0.0
    %63 = vmatprep.subr.mxu0 0.0
    %64 = vmatpush1.msra.mxu0 0.0
    %65 = vmatprep.subr.mxu0 0.0
    %66 = vmatpush1.msra.mxu0 0.0
    %67 = vmatprep.subr.mxu0 0.0
    %68 = vmatpush1.msra.mxu0 0.0
    %69 = vmatprep.subr.mxu0 0.0
    %70 = vmatpush1.msra.mxu0 0.0
    %71 = vmatprep.subr.mxu0 0.0
    %72 = vmatpush1.msra.mxu0 0.0
    %73 = vmatprep.subr.mxu0 0.0
    %74 = vmatpush1.msra.mxu0 0.0
    %75 = vmatprep.subr.mxu0 0.0
    %76 = vmatpush1.msra.mxu0 0.0
    %77 = vmatprep.subr.mxu0 0.0
    %78 = vmatpush1.msra.mxu0 0.0
    %79 = vmatprep.subr.mxu0 0.0
    %80 = vmatpush1.msra.mxu0 0.0
    %81 = vmatprep.subr.mxu0 0.0
    %82 = vmatpush1.msra.mxu0 0.0
    %83 = vmatprep.subr.mxu0 0.0
    %84 = vmatpush1.msra.mxu0 0.0
    %85 = vmatprep.subr.mxu0 0.0
    %86 = vmatpush1.msra.mxu0 0.0
    %87 = vmatprep.subr.mxu0 0.0
    %88 = vmatpush1.msra.mxu0 0.0
    %89 = vmatprep.subr.mxu0 0.0
    %90 = vmatpush1.msra.mxu0 0.0
    %91 = vmatprep.mubr.f32.mxu0 0.0
    %92 = vmatmul.mubr.f32.gmra.mrb[0].mxu0 %v21
    %v93 = vpop.f32.mrb[0].mxu0
    %v94 = vadd.f32 0.0, %v93
    %v95 = vpop.f32.mrb[0].mxu0
    %96 = vdwg.mxu0
    %v98 = vsel %vm19, %v15, 0
    %v101 = vsel %vm19, %v16, 0
    %v104 = vsel %vm23, %v94, 0
    %106 = vmatprep.subr.mxu0 0.0
    %107 = vmatpush1.msra.mxu0 %v104
    %108 = vmatprep.subr.mxu0 0.0
    %109 = vmatpush1.msra.mxu0 0.0
    %110 = vmatprep.subr.mxu0 0.0
    %111 = vmatpush1.msra.mxu0 0.0
    %112 = vmatprep.subr.mxu0 0.0
    %113 = vmatpush1.msra.mxu0 0.0
    %114 = vmatprep.subr.mxu0 0.0
    %115 = vmatpush1.msra.mxu0 0.0
    %116 = vmatprep.subr.mxu0 0.0
    %117 = vmatpush1.msra.mxu0 0.0
    %118 = vmatprep.subr.mxu0 0.0
    %119 = vmatpush1.msra.mxu0 0.0
    %120 = vmatprep.subr.mxu0 0.0
    %121 = vmatpush1.msra.mxu0 0.0
    %122 = vmatprep.subr.mxu0 0.0
    %123 = vmatpush1.msra.mxu0 0.0
    %124 = vmatprep.subr.mxu0 0.0
    %125 = vmatpush1.msra.mxu0 0.0
    %126 = vmatprep.subr.mxu0 0.0
    %127 = vmatpush1.msra.mxu0 0.0
    %128 = vmatprep.subr.mxu0 0.0
    %129 = vmatpush1.msra.mxu0 0.0
    %130 = vmatprep.subr.mxu0 0.0
    %131 = vmatpush1.msra.mxu0 0.0
    %132 = vmatprep.subr.mxu0 0.0
    %133 = vmatpush1.msra.mxu0 0.0
    %134 = vmatprep.subr.mxu0 0.0
    %135 = vmatpush1.msra.mxu0 0.0
    %136 = vmatprep.subr.mxu0 0.0
    %137 = vmatpush1.msra.mxu0 0.0
    %138 = vmatprep.subr.mxu0 0.0
    %139 = vmatpush1.msra.mxu0 0.0
    %140 = vmatprep.subr.mxu0 0.0
    %141 = vmatpush1.msra.mxu0 0.0
    %142 = vmatprep.subr.mxu0 0.0
    %143 = vmatpush1.msra.mxu0 0.0
    %144 = vmatprep.subr.mxu0 0.0
    %145 = vmatpush1.msra.mxu0 0.0
    %146 = vmatprep.subr.mxu0 0.0
    %147 = vmatpush1.msra.mxu0 0.0
    %148 = vmatprep.subr.mxu0 0.0
    %149 = vmatpush1.msra.mxu0 0.0
    %150 = vmatprep.subr.mxu0 0.0
    %151 = vmatpush1.msra.mxu0 0.0
    %152 = vmatprep.subr.mxu0 0.0
    %153 = vmatpush1.msra.mxu0 0.0
    %154 = vmatprep.subr.mxu0 0.0
    %155 = vmatpush1.msra.mxu0 0.0
    %156 = vmatprep.subr.mxu0 0.0
    %157 = vmatpush1.msra.mxu0 0.0
    %158 = vmatprep.subr.mxu0 0.0
    %159 = vmatpush1.msra.mxu0 0.0
    %160 = vmatprep.subr.mxu0 0.0
    %161 = vmatpush1.msra.mxu0 0.0
    %162 = vmatprep.subr.mxu0 0.0
    %163 = vmatpush1.msra.mxu0 0.0
    %164 = vmatprep.subr.mxu0 0.0
    %165 = vmatpush1.msra.mxu0 0.0
    %166 = vmatprep.subr.mxu0 0.0
    %167 = vmatpush1.msra.mxu0 0.0
    %168 = vmatprep.subr.mxu0 0.0
    %169 = vmatpush1.msra.mxu0 0.0
    %170 = vmatprep.mubr.f32.mxu0 0.0
    %171 = vmatmul.mubr.f32.gmra.mrb[0].mxu0 %v98
    %v172 = vpop.f32.mrb[0].mxu0
    %v173 = vadd.f32 0.0, %v172
    %v174 = vpop.f32.mrb[0].mxu0
    %175 = vmatprep.mubr.f32.mxu0 0.0
    %176 = vmatmul.mubr.f32.gmra.mrb[0].mxu0 %v101
    %v177 = vpop.f32.mrb[0].mxu0
    %v178 = vadd.f32 0.0, %v177
    %v179 = vpop.f32.mrb[0].mxu0
    %180 = vdwg.mxu0
    %vm181 = vcmask 130048
    %182 = vst.msk [vmem:[#allocation2] sm:$0xff] %vm181, %v173
    %183 = vst.msk [vmem:[#allocation2 + $0x8] sm:$0xff] %vm181, %v178
    %s184 = scalar_lea.vmem %s0, 4
    %v185 = vld [vmem:[%s184] sm:$0xf]
    %v187 = vsel %vm19, %v185, 0
    %189 = vmatprep.subr.mxu0 0.0
    %190 = vmatpush1.msra.mxu0 %v25
    %191 = vmatprep.subr.mxu0 0.0
    %192 = vmatpush1.msra.mxu0 0.0
    %193 = vmatprep.subr.mxu0 0.0
    %194 = vmatpush1.msra.mxu0 0.0
    %195 = vmatprep.subr.mxu0 0.0
    %196 = vmatpush1.msra.mxu0 0.0
    %197 = vmatprep.subr.mxu0 0.0
    %198 = vmatpush1.msra.mxu0 0.0
    %199 = vmatprep.subr.mxu0 0.0
    %200 = vmatpush1.msra.mxu0 0.0
    %201 = vmatprep.subr.mxu0 0.0
    %202 = vmatpush1.msra.mxu0 0.0
    %203 = vmatprep.subr.mxu0 0.0
    %204 = vmatpush1.msra.mxu0 0.0
    %205 = vmatprep.subr.mxu0 0.0
    %206 = vmatpush1.msra.mxu0 0.0
    %207 = vmatprep.subr.mxu0 0.0
    %208 = vmatpush1.msra.mxu0 0.0
    %209 = vmatprep.subr.mxu0 0.0
    %210 = vmatpush1.msra.mxu0 0.0
    %211 = vmatprep.subr.mxu0 0.0
    %212 = vmatpush1.msra.mxu0 0.0
    %213 = vmatprep.subr.mxu0 0.0
    %214 = vmatpush1.msra.mxu0 0.0
    %215 = vmatprep.subr.mxu0 0.0
    %216 = vmatpush1.msra.mxu0 0.0
    %217 = vmatprep.subr.mxu0 0.0
    %218 = vmatpush1.msra.mxu0 0.0
    %219 = vmatprep.subr.mxu0 0.0
    %220 = vmatpush1.msra.mxu0 0.0
    %221 = vmatprep.subr.mxu0 0.0
    %222 = vmatpush1.msra.mxu0 0.0
    %223 = vmatprep.subr.mxu0 0.0
    %224 = vmatpush1.msra.mxu0 0.0
    %225 = vmatprep.subr.mxu0 0.0
    %226 = vmatpush1.msra.mxu0 0.0
    %227 = vmatprep.subr.mxu0 0.0
    %228 = vmatpush1.msra.mxu0 0.0
    %229 = vmatprep.subr.mxu0 0.0
    %230 = vmatpush1.msra.mxu0 0.0
    %231 = vmatprep.subr.mxu0 0.0
    %232 = vmatpush1.msra.mxu0 0.0
    %233 = vmatprep.subr.mxu0 0.0
    %234 = vmatpush1.msra.mxu0 0.0
    %235 = vmatprep.subr.mxu0 0.0
    %236 = vmatpush1.msra.mxu0 0.0
    %237 = vmatprep.subr.mxu0 0.0
    %238 = vmatpush1.msra.mxu0 0.0
    %239 = vmatprep.subr.mxu0 0.0
    %240 = vmatpush1.msra.mxu0 0.0
    %241 = vmatprep.subr.mxu0 0.0
    %242 = vmatpush1.msra.mxu0 0.0
    %243 = vmatprep.subr.mxu0 0.0
    %244 = vmatpush1.msra.mxu0 0.0
    %245 = vmatprep.subr.mxu0 0.0
    %246 = vmatpush1.msra.mxu0 0.0
    %247 = vmatprep.subr.mxu0 0.0
    %248 = vmatpush1.msra.mxu0 0.0
    %249 = vmatprep.subr.mxu0 0.0
    %250 = vmatpush1.msra.mxu0 0.0
    %251 = vmatprep.subr.mxu0 0.0
    %252 = vmatpush1.msra.mxu0 0.0
    %253 = vmatprep.mubr.f32.mxu0 0.0
    %254 = vmatmul.mubr.f32.gmra.mrb[0].mxu0 %v187
    %v255 = vpop.f32.mrb[0].mxu0
    %v256 = vadd.f32 0.0, %v255
    %v257 = vpop.f32.mrb[0].mxu0
    %258 = vdwg.mxu0
    %v260 = vsel %vm23, %v256, 0
    %262 = vmatprep.subr.mxu0 0.0
    %263 = vmatpush1.msra.mxu0 %v260
    %264 = vmatprep.subr.mxu0 0.0
    %265 = vmatpush1.msra.mxu0 0.0
    %266 = vmatprep.subr.mxu0 0.0
    %267 = vmatpush1.msra.mxu0 0.0
    %268 = vmatprep.subr.mxu0 0.0
    %269 = vmatpush1.msra.mxu0 0.0
    %270 = vmatprep.subr.mxu0 0.0
    %271 = vmatpush1.msra.mxu0 0.0
    %272 = vmatprep.subr.mxu0 0.0
    %273 = vmatpush1.msra.mxu0 0.0
    %274 = vmatprep.subr.mxu0 0.0
    %275 = vmatpush1.msra.mxu0 0.0
    %276 = vmatprep.subr.mxu0 0.0
    %277 = vmatpush1.msra.mxu0 0.0
    %278 = vmatprep.subr.mxu0 0.0
    %279 = vmatpush1.msra.mxu0 0.0
    %280 = vmatprep.subr.mxu0 0.0
    %281 = vmatpush1.msra.mxu0 0.0
    %282 = vmatprep.subr.mxu0 0.0
    %283 = vmatpush1.msra.mxu0 0.0
    %284 = vmatprep.subr.mxu0 0.0
    %285 = vmatpush1.msra.mxu0 0.0
    %286 = vmatprep.subr.mxu0 0.0
    %287 = vmatpush1.msra.mxu0 0.0
    %288 = vmatprep.subr.mxu0 0.0
    %289 = vmatpush1.msra.mxu0 0.0
    %290 = vmatprep.subr.mxu0 0.0
    %291 = vmatpush1.msra.mxu0 0.0
    %292 = vmatprep.subr.mxu0 0.0
    %293 = vmatpush1.msra.mxu0 0.0
    %294 = vmatprep.subr.mxu0 0.0
    %295 = vmatpush1.msra.mxu0 0.0
    %296 = vmatprep.subr.mxu0 0.0
    %297 = vmatpush1.msra.mxu0 0.0
    %298 = vmatprep.subr.mxu0 0.0
    %299 = vmatpush1.msra.mxu0 0.0
    %300 = vmatprep.subr.mxu0 0.0
    %301 = vmatpush1.msra.mxu0 0.0
    %302 = vmatprep.subr.mxu0 0.0
    %303 = vmatpush1.msra.mxu0 0.0
    %304 = vmatprep.subr.mxu0 0.0
    %305 = vmatpush1.msra.mxu0 0.0
    %306 = vmatprep.subr.mxu0 0.0
    %307 = vmatpush1.msra.mxu0 0.0
    %308 = vmatprep.subr.mxu0 0.0
    %309 = vmatpush1.msra.mxu0 0.0
    %310 = vmatprep.subr.mxu0 0.0
    %311 = vmatpush1.msra.mxu0 0.0
    %312 = vmatprep.subr.mxu0 0.0
    %313 = vmatpush1.msra.mxu0 0.0
    %314 = vmatprep.subr.mxu0 0.0
    %315 = vmatpush1.msra.mxu0 0.0
    %316 = vmatprep.subr.mxu0 0.0
    %317 = vmatpush1.msra.mxu0 0.0
    %318 = vmatprep.subr.mxu0 0.0
    %319 = vmatpush1.msra.mxu0 0.0
    %320 = vmatprep.subr.mxu0 0.0
    %321 = vmatpush1.msra.mxu0 0.0
    %322 = vmatprep.subr.mxu0 0.0
    %323 = vmatpush1.msra.mxu0 0.0
    %324 = vmatprep.subr.mxu0 0.0
    %325 = vmatpush1.msra.mxu0 0.0
    %326 = vmatprep.mubr.f32.mxu0 0.0
    %327 = vmatmul.mubr.f32.gmra.mrb[0].mxu0 %v98
    %v328 = vpop.f32.mrb[0].mxu0
    %v329 = vadd.f32 0.0, %v328
    %v330 = vpop.f32.mrb[0].mxu0
    %331 = vmatprep.mubr.f32.mxu0 0.0
    %332 = vmatmul.mubr.f32.gmra.mrb[0].mxu0 %v101
    %v333 = vpop.f32.mrb[0].mxu0
    %v334 = vadd.f32 0.0, %v333
    %v335 = vpop.f32.mrb[0].mxu0
    %336 = vdwg.mxu0
    %s337 = scalar_lea.vmem [#allocation2], 16
    %338 = vst.msk [vmem:[%s337] sm:$0xff] %vm181, %v329
    %339 = vst.msk [vmem:[%s337 + $0x8] sm:$0xff] %vm181, %v334
    %s340 = scalar_lea.vmem %s0, 8
    %v341 = vld [vmem:[%s340] sm:$0xf]
    %v343 = vsel %vm19, %v341, 0
    %345 = vmatprep.subr.mxu0 0.0
    %346 = vmatpush1.msra.mxu0 %v25
    %347 = vmatprep.subr.mxu0 0.0
    %348 = vmatpush1.msra.mxu0 0.0
    %349 = vmatprep.subr.mxu0 0.0
    %350 = vmatpush1.msra.mxu0 0.0
    %351 = vmatprep.subr.mxu0 0.0
    %352 = vmatpush1.msra.mxu0 0.0
    %353 = vmatprep.subr.mxu0 0.0
    %354 = vmatpush1.msra.mxu0 0.0
    %355 = vmatprep.subr.mxu0 0.0
    %356 = vmatpush1.msra.mxu0 0.0
    %357 = vmatprep.subr.mxu0 0.0
    %358 = vmatpush1.msra.mxu0 0.0
    %359 = vmatprep.subr.mxu0 0.0
    %360 = vmatpush1.msra.mxu0 0.0
    %361 = vmatprep.subr.mxu0 0.0
    %362 = vmatpush1.msra.mxu0 0.0
    %363 = vmatprep.subr.mxu0 0.0
    %364 = vmatpush1.msra.mxu0 0.0
    %365 = vmatprep.subr.mxu0 0.0
    %366 = vmatpush1.msra.mxu0 0.0
    %367 = vmatprep.subr.mxu0 0.0
    %368 = vmatpush1.msra.mxu0 0.0
    %369 = vmatprep.subr.mxu0 0.0
    %370 = vmatpush1.msra.mxu0 0.0
    %371 = vmatprep.subr.mxu0 0.0
    %372 = vmatpush1.msra.mxu0 0.0
    %373 = vmatprep.subr.mxu0 0.0
    %374 = vmatpush1.msra.mxu0 0.0
    %375 = vmatprep.subr.mxu0 0.0
    %376 = vmatpush1.msra.mxu0 0.0
    %377 = vmatprep.subr.mxu0 0.0
    %378 = vmatpush1.msra.mxu0 0.0
    %379 = vmatprep.subr.mxu0 0.0
    %380 = vmatpush1.msra.mxu0 0.0
    %381 = vmatprep.subr.mxu0 0.0
    %382 = vmatpush1.msra.mxu0 0.0
    %383 = vmatprep.subr.mxu0 0.0
    %384 = vmatpush1.msra.mxu0 0.0
    %385 = vmatprep.subr.mxu0 0.0
    %386 = vmatpush1.msra.mxu0 0.0
    %387 = vmatprep.subr.mxu0 0.0
    %388 = vmatpush1.msra.mxu0 0.0
    %389 = vmatprep.subr.mxu0 0.0
    %390 = vmatpush1.msra.mxu0 0.0
    %391 = vmatprep.subr.mxu0 0.0
    %392 = vmatpush1.msra.mxu0 0.0
    %393 = vmatprep.subr.mxu0 0.0
    %394 = vmatpush1.msra.mxu0 0.0
    %395 = vmatprep.subr.mxu0 0.0
    %396 = vmatpush1.msra.mxu0 0.0
    %397 = vmatprep.subr.mxu0 0.0
    %398 = vmatpush1.msra.mxu0 0.0
    %399 = vmatprep.subr.mxu0 0.0
    %400 = vmatpush1.msra.mxu0 0.0
    %401 = vmatprep.subr.mxu0 0.0
    %402 = vmatpush1.msra.mxu0 0.0
    %403 = vmatprep.subr.mxu0 0.0
    %404 = vmatpush1.msra.mxu0 0.0
    %405 = vmatprep.subr.mxu0 0.0
    %406 = vmatpush1.msra.mxu0 0.0
    %407 = vmatprep.subr.mxu0 0.0
    %408 = vmatpush1.msra.mxu0 0.0
    %409 = vmatprep.mubr.f32.mxu0 0.0
    %410 = vmatmul.mubr.f32.gmra.mrb[0].mxu0 %v343
    %v411 = vpop.f32.mrb[0].mxu0
    %v412 = vadd.f32 0.0, %v411
    %v413 = vpop.f32.mrb[0].mxu0
    %414 = vdwg.mxu0
    %v416 = vsel %vm23, %v412, 0
    %418 = vmatprep.subr.mxu0 0.0
    %419 = vmatpush1.msra.mxu0 %v416
    %420 = vmatprep.subr.mxu0 0.0
    %421 = vmatpush1.msra.mxu0 0.0
    %422 = vmatprep.subr.mxu0 0.0
    %423 = vmatpush1.msra.mxu0 0.0
    %424 = vmatprep.subr.mxu0 0.0
    %425 = vmatpush1.msra.mxu0 0.0
    %426 = vmatprep.subr.mxu0 0.0
    %427 = vmatpush1.msra.mxu0 0.0
    %428 = vmatprep.subr.mxu0 0.0
    %429 = vmatpush1.msra.mxu0 0.0
    %430 = vmatprep.subr.mxu0 0.0
    %431 = vmatpush1.msra.mxu0 0.0
    %432 = vmatprep.subr.mxu0 0.0
    %433 = vmatpush1.msra.mxu0 0.0
    %434 = vmatprep.subr.mxu0 0.0
    %435 = vmatpush1.msra.mxu0 0.0
    %436 = vmatprep.subr.mxu0 0.0
    %437 = vmatpush1.msra.mxu0 0.0
    %438 = vmatprep.subr.mxu0 0.0
    %439 = vmatpush1.msra.mxu0 0.0
    %440 = vmatprep.subr.mxu0 0.0
    %441 = vmatpush1.msra.mxu0 0.0
    %442 = vmatprep.subr.mxu0 0.0
    %443 = vmatpush1.msra.mxu0 0.0
    %444 = vmatprep.subr.mxu0 0.0
    %445 = vmatpush1.msra.mxu0 0.0
    %446 = vmatprep.subr.mxu0 0.0
    %447 = vmatpush1.msra.mxu0 0.0
    %448 = vmatprep.subr.mxu0 0.0
    %449 = vmatpush1.msra.mxu0 0.0
    %450 = vmatprep.subr.mxu0 0.0
    %451 = vmatpush1.msra.mxu0 0.0
    %452 = vmatprep.subr.mxu0 0.0
    %453 = vmatpush1.msra.mxu0 0.0
    %454 = vmatprep.subr.mxu0 0.0
    %455 = vmatpush1.msra.mxu0 0.0
    %456 = vmatprep.subr.mxu0 0.0
    %457 = vmatpush1.msra.mxu0 0.0
    %458 = vmatprep.subr.mxu0 0.0
    %459 = vmatpush1.msra.mxu0 0.0
    %460 = vmatprep.subr.mxu0 0.0
    %461 = vmatpush1.msra.mxu0 0.0
    %462 = vmatprep.subr.mxu0 0.0
    %463 = vmatpush1.msra.mxu0 0.0
    %464 = vmatprep.subr.mxu0 0.0
    %465 = vmatpush1.msra.mxu0 0.0
    %466 = vmatprep.subr.mxu0 0.0
    %467 = vmatpush1.msra.mxu0 0.0
    %468 = vmatprep.subr.mxu0 0.0
    %469 = vmatpush1.msra.mxu0 0.0
    %470 = vmatprep.subr.mxu0 0.0
    %471 = vmatpush1.msra.mxu0 0.0
    %472 = vmatprep.subr.mxu0 0.0
    %473 = vmatpush1.msra.mxu0 0.0
    %474 = vmatprep.subr.mxu0 0.0
    %475 = vmatpush1.msra.mxu0 0.0
    %476 = vmatprep.subr.mxu0 0.0
    %477 = vmatpush1.msra.mxu0 0.0
    %478 = vmatprep.subr.mxu0 0.0
    %479 = vmatpush1.msra.mxu0 0.0
    %480 = vmatprep.subr.mxu0 0.0
    %481 = vmatpush1.msra.mxu0 0.0
    %482 = vmatprep.mubr.f32.mxu0 0.0
    %483 = vmatmul.mubr.f32.gmra.mrb[0].mxu0 %v98
    %v484 = vpop.f32.mrb[0].mxu0
    %v485 = vadd.f32 0.0, %v484
    %v486 = vpop.f32.mrb[0].mxu0
    %487 = vmatprep.mubr.f32.mxu0 0.0
    %488 = vmatmul.mubr.f32.gmra.mrb[0].mxu0 %v101
    %v489 = vpop.f32.mrb[0].mxu0
    %v490 = vadd.f32 0.0, %v489
    %v491 = vpop.f32.mrb[0].mxu0
    %492 = vdwg.mxu0
    %s493 = scalar_lea.vmem [#allocation2], 32
    %494 = vst.msk [vmem:[%s493] sm:$0xff] %vm181, %v485
    %495 = vst.msk [vmem:[%s493 + $0x8] sm:$0xff] %vm181, %v490
    %s496 = scalar_lea.vmem %s0, 12
    %v497 = vld [vmem:[%s496] sm:$0xf]
    %v499 = vsel %vm19, %v497, 0
    %501 = vmatprep.subr.mxu0 0.0
    %502 = vmatpush1.msra.mxu0 %v25
    %503 = vmatprep.subr.mxu0 0.0
    %504 = vmatpush1.msra.mxu0 0.0
    %505 = vmatprep.subr.mxu0 0.0
    %506 = vmatpush1.msra.mxu0 0.0
    %507 = vmatprep.subr.mxu0 0.0
    %508 = vmatpush1.msra.mxu0 0.0
    %509 = vmatprep.subr.mxu0 0.0
    %510 = vmatpush1.msra.mxu0 0.0
    %511 = vmatprep.subr.mxu0 0.0
    %512 = vmatpush1.msra.mxu0 0.0
    %513 = vmatprep.subr.mxu0 0.0
    %514 = vmatpush1.msra.mxu0 0.0
    %515 = vmatprep.subr.mxu0 0.0
    %516 = vmatpush1.msra.mxu0 0.0
    %517 = vmatprep.subr.mxu0 0.0
    %518 = vmatpush1.msra.mxu0 0.0
    %519 = vmatprep.subr.mxu0 0.0
    %520 = vmatpush1.msra.mxu0 0.0
    %521 = vmatprep.subr.mxu0 0.0
    %522 = vmatpush1.msra.mxu0 0.0
    %523 = vmatprep.subr.mxu0 0.0
    %524 = vmatpush1.msra.mxu0 0.0
    %525 = vmatprep.subr.mxu0 0.0
    %526 = vmatpush1.msra.mxu0 0.0
    %527 = vmatprep.subr.mxu0 0.0
    %528 = vmatpush1.msra.mxu0 0.0
    %529 = vmatprep.subr.mxu0 0.0
    %530 = vmatpush1.msra.mxu0 0.0
    %531 = vmatprep.subr.mxu0 0.0
    %532 = vmatpush1.msra.mxu0 0.0
    %533 = vmatprep.subr.mxu0 0.0
    %534 = vmatpush1.msra.mxu0 0.0
    %535 = vmatprep.subr.mxu0 0.0
    %536 = vmatpush1.msra.mxu0 0.0
    %537 = vmatprep.subr.mxu0 0.0
    %538 = vmatpush1.msra.mxu0 0.0
    %539 = vmatprep.subr.mxu0 0.0
    %540 = vmatpush1.msra.mxu0 0.0
    %541 = vmatprep.subr.mxu0 0.0
    %542 = vmatpush1.msra.mxu0 0.0
    %543 = vmatprep.subr.mxu0 0.0
    %544 = vmatpush1.msra.mxu0 0.0
    %545 = vmatprep.subr.mxu0 0.0
    %546 = vmatpush1.msra.mxu0 0.0
    %547 = vmatprep.subr.mxu0 0.0
    %548 = vmatpush1.msra.mxu0 0.0
    %549 = vmatprep.subr.mxu0 0.0
    %550 = vmatpush1.msra.mxu0 0.0
    %551 = vmatprep.subr.mxu0 0.0
    %552 = vmatpush1.msra.mxu0 0.0
    %553 = vmatprep.subr.mxu0 0.0
    %554 = vmatpush1.msra.mxu0 0.0
    %555 = vmatprep.subr.mxu0 0.0
    %556 = vmatpush1.msra.mxu0 0.0
    %557 = vmatprep.subr.mxu0 0.0
    %558 = vmatpush1.msra.mxu0 0.0
    %559 = vmatprep.subr.mxu0 0.0
    %560 = vmatpush1.msra.mxu0 0.0
    %561 = vmatprep.subr.mxu0 0.0
    %562 = vmatpush1.msra.mxu0 0.0
    %563 = vmatprep.subr.mxu0 0.0
    %564 = vmatpush1.msra.mxu0 0.0
    %565 = vmatprep.mubr.f32.mxu0 0.0
    %566 = vmatmul.mubr.f32.gmra.mrb[0].mxu0 %v499
    %v567 = vpop.f32.mrb[0].mxu0
    %v568 = vadd.f32 0.0, %v567
    %v569 = vpop.f32.mrb[0].mxu0
    %570 = vdwg.mxu0
    %v572 = vsel %vm23, %v568, 0
    %574 = vmatprep.subr.mxu0 0.0
    %575 = vmatpush1.msra.mxu0 %v572
    %576 = vmatprep.subr.mxu0 0.0
    %577 = vmatpush1.msra.mxu0 0.0
    %578 = vmatprep.subr.mxu0 0.0
    %579 = vmatpush1.msra.mxu0 0.0
    %580 = vmatprep.subr.mxu0 0.0
    %581 = vmatpush1.msra.mxu0 0.0
    %582 = vmatprep.subr.mxu0 0.0
    %583 = vmatpush1.msra.mxu0 0.0
    %584 = vmatprep.subr.mxu0 0.0
    %585 = vmatpush1.msra.mxu0 0.0
    %586 = vmatprep.subr.mxu0 0.0
    %587 = vmatpush1.msra.mxu0 0.0
    %588 = vmatprep.subr.mxu0 0.0
    %589 = vmatpush1.msra.mxu0 0.0
    %590 = vmatprep.subr.mxu0 0.0
    %591 = vmatpush1.msra.mxu0 0.0
    %592 = vmatprep.subr.mxu0 0.0
    %593 = vmatpush1.msra.mxu0 0.0
    %594 = vmatprep.subr.mxu0 0.0
    %595 = vmatpush1.msra.mxu0 0.0
    %596 = vmatprep.subr.mxu0 0.0
    %597 = vmatpush1.msra.mxu0 0.0
    %598 = vmatprep.subr.mxu0 0.0
    %599 = vmatpush1.msra.mxu0 0.0
    %600 = vmatprep.subr.mxu0 0.0
    %601 = vmatpush1.msra.mxu0 0.0
    %602 = vmatprep.subr.mxu0 0.0
    %603 = vmatpush1.msra.mxu0 0.0
    %604 = vmatprep.subr.mxu0 0.0
    %605 = vmatpush1.msra.mxu0 0.0
    %606 = vmatprep.subr.mxu0 0.0
    %607 = vmatpush1.msra.mxu0 0.0
    %608 = vmatprep.subr.mxu0 0.0
    %609 = vmatpush1.msra.mxu0 0.0
    %610 = vmatprep.subr.mxu0 0.0
    %611 = vmatpush1.msra.mxu0 0.0
    %612 = vmatprep.subr.mxu0 0.0
    %613 = vmatpush1.msra.mxu0 0.0
    %614 = vmatprep.subr.mxu0 0.0
    %615 = vmatpush1.msra.mxu0 0.0
    %616 = vmatprep.subr.mxu0 0.0
    %617 = vmatpush1.msra.mxu0 0.0
    %618 = vmatprep.subr.mxu0 0.0
    %619 = vmatpush1.msra.mxu0 0.0
    %620 = vmatprep.subr.mxu0 0.0
    %621 = vmatpush1.msra.mxu0 0.0
    %622 = vmatprep.subr.mxu0 0.0
    %623 = vmatpush1.msra.mxu0 0.0
    %624 = vmatprep.subr.mxu0 0.0
    %625 = vmatpush1.msra.mxu0 0.0
    %626 = vmatprep.subr.mxu0 0.0
    %627 = vmatpush1.msra.mxu0 0.0
    %628 = vmatprep.subr.mxu0 0.0
    %629 = vmatpush1.msra.mxu0 0.0
    %630 = vmatprep.subr.mxu0 0.0
    %631 = vmatpush1.msra.mxu0 0.0
    %632 = vmatprep.subr.mxu0 0.0
    %633 = vmatpush1.msra.mxu0 0.0
    %634 = vmatprep.subr.mxu0 0.0
    %635 = vmatpush1.msra.mxu0 0.0
    %636 = vmatprep.subr.mxu0 0.0
    %637 = vmatpush1.msra.mxu0 0.0
    %638 = vmatprep.mubr.f32.mxu0 0.0
    %639 = vmatmul.mubr.f32.gmra.mrb[0].mxu0 %v98
    %v640 = vpop.f32.mrb[0].mxu0
    %v641 = vadd.f32 0.0, %v640
    %v642 = vpop.f32.mrb[0].mxu0
    %643 = vmatprep.mubr.f32.mxu0 0.0
    %644 = vmatmul.mubr.f32.gmra.mrb[0].mxu0 %v101
    %v645 = vpop.f32.mrb[0].mxu0
    %v646 = vadd.f32 0.0, %v645
    %v647 = vpop.f32.mrb[0].mxu0
    %648 = vdwg.mxu0
    %s649 = scalar_lea.vmem [#allocation2], 48
    %650 = vst.msk [vmem:[%s649] sm:$0xff] %vm181, %v641
    %651 = vst.msk [vmem:[%s649 + $0x8] sm:$0xff] %vm181, %v646
    %s652 = scalar_lea.vmem %s0, 16
    %v653 = vld [vmem:[%s652] sm:$0xf]
    %v655 = vsel %vm19, %v653, 0
    %657 = vmatprep.subr.mxu0 0.0
    %658 = vmatpush1.msra.mxu0 %v25
    %659 = vmatprep.subr.mxu0 0.0
    %660 = vmatpush1.msra.mxu0 0.0
    %661 = vmatprep.subr.mxu0 0.0
    %662 = vmatpush1.msra.mxu0 0.0
    %663 = vmatprep.subr.mxu0 0.0
    %664 = vmatpush1.msra.mxu0 0.0
    %665 = vmatprep.subr.mxu0 0.0
    %666 = vmatpush1.msra.mxu0 0.0
    %667 = vmatprep.subr.mxu0 0.0
    %668 = vmatpush1.msra.mxu0 0.0
    %669 = vmatprep.subr.mxu0 0.0
    %670 = vmatpush1.msra.mxu0 0.0
    %671 = vmatprep.subr.mxu0 0.0
    %672 = vmatpush1.msra.mxu0 0.0
    %673 = vmatprep.subr.mxu0 0.0
    %674 = vmatpush1.msra.mxu0 0.0
    %675 = vmatprep.subr.mxu0 0.0
    %676 = vmatpush1.msra.mxu0 0.0
    %677 = vmatprep.subr.mxu0 0.0
    %678 = vmatpush1.msra.mxu0 0.0
    %679 = vmatprep.subr.mxu0 0.0
    %680 = vmatpush1.msra.mxu0 0.0
    %681 = vmatprep.subr.mxu0 0.0
    %682 = vmatpush1.msra.mxu0 0.0
    %683 = vmatprep.subr.mxu0 0.0
    %684 = vmatpush1.msra.mxu0 0.0
    %685 = vmatprep.subr.mxu0 0.0
    %686 = vmatpush1.msra.mxu0 0.0
    %687 = vmatprep.subr.mxu0 0.0
    %688 = vmatpush1.msra.mxu0 0.0
    %689 = vmatprep.subr.mxu0 0.0
    %690 = vmatpush1.msra.mxu0 0.0
    %691 = vmatprep.subr.mxu0 0.0
    %692 = vmatpush1.msra.mxu0 0.0
    %693 = vmatprep.subr.mxu0 0.0
    %694 = vmatpush1.msra.mxu0 0.0
    %695 = vmatprep.subr.mxu0 0.0
    %696 = vmatpush1.msra.mxu0 0.0
    %697 = vmatprep.subr.mxu0 0.0
    %698 = vmatpush1.msra.mxu0 0.0
    %699 = vmatprep.subr.mxu0 0.0
    %700 = vmatpush1.msra.mxu0 0.0
    %701 = vmatprep.subr.mxu0 0.0
    %702 = vmatpush1.msra.mxu0 0.0
    %703 = vmatprep.subr.mxu0 0.0
    %704 = vmatpush1.msra.mxu0 0.0
    %705 = vmatprep.subr.mxu0 0.0
    %706 = vmatpush1.msra.mxu0 0.0
    %707 = vmatprep.subr.mxu0 0.0
    %708 = vmatpush1.msra.mxu0 0.0
    %709 = vmatprep.subr.mxu0 0.0
    %710 = vmatpush1.msra.mxu0 0.0
    %711 = vmatprep.subr.mxu0 0.0
    %712 = vmatpush1.msra.mxu0 0.0
    %713 = vmatprep.subr.mxu0 0.0
    %714 = vmatpush1.msra.mxu0 0.0
    %715 = vmatprep.subr.mxu0 0.0
    %716 = vmatpush1.msra.mxu0 0.0
    %717 = vmatprep.subr.mxu0 0.0
    %718 = vmatpush1.msra.mxu0 0.0
    %719 = vmatprep.subr.mxu0 0.0
    %720 = vmatpush1.msra.mxu0 0.0
    %721 = vmatprep.mubr.f32.mxu0 0.0
    %722 = vmatmul.mubr.f32.gmra.mrb[0].mxu0 %v655
    %v723 = vpop.f32.mrb[0].mxu0
    %v724 = vadd.f32 0.0, %v723
    %v725 = vpop.f32.mrb[0].mxu0
    %726 = vdwg.mxu0
    %v728 = vsel %vm23, %v724, 0
    %730 = vmatprep.subr.mxu0 0.0
    %731 = vmatpush1.msra.mxu0 %v728
    %732 = vmatprep.subr.mxu0 0.0
    %733 = vmatpush1.msra.mxu0 0.0
    %734 = vmatprep.subr.mxu0 0.0
    %735 = vmatpush1.msra.mxu0 0.0
    %736 = vmatprep.subr.mxu0 0.0
    %737 = vmatpush1.msra.mxu0 0.0
    %738 = vmatprep.subr.mxu0 0.0
    %739 = vmatpush1.msra.mxu0 0.0
    %740 = vmatprep.subr.mxu0 0.0
    %741 = vmatpush1.msra.mxu0 0.0
    %742 = vmatprep.subr.mxu0 0.0
    %743 = vmatpush1.msra.mxu0 0.0
    %744 = vmatprep.subr.mxu0 0.0
    %745 = vmatpush1.msra.mxu0 0.0
    %746 = vmatprep.subr.mxu0 0.0
    %747 = vmatpush1.msra.mxu0 0.0
    %748 = vmatprep.subr.mxu0 0.0
    %749 = vmatpush1.msra.mxu0 0.0
    %750 = vmatprep.subr.mxu0 0.0
    %751 = vmatpush1.msra.mxu0 0.0
    %752 = vmatprep.subr.mxu0 0.0
    %753 = vmatpush1.msra.mxu0 0.0
    %754 = vmatprep.subr.mxu0 0.0
    %755 = vmatpush1.msra.mxu0 0.0
    %756 = vmatprep.subr.mxu0 0.0
    %757 = vmatpush1.msra.mxu0 0.0
    %758 = vmatprep.subr.mxu0 0.0
    %759 = vmatpush1.msra.mxu0 0.0
    %760 = vmatprep.subr.mxu0 0.0
    %761 = vmatpush1.msra.mxu0 0.0
    %762 = vmatprep.subr.mxu0 0.0
    %763 = vmatpush1.msra.mxu0 0.0
    %764 = vmatprep.subr.mxu0 0.0
    %765 = vmatpush1.msra.mxu0 0.0
    %766 = vmatprep.subr.mxu0 0.0
    %767 = vmatpush1.msra.mxu0 0.0
    %768 = vmatprep.subr.mxu0 0.0
    %769 = vmatpush1.msra.mxu0 0.0
    %770 = vmatprep.subr.mxu0 0.0
    %771 = vmatpush1.msra.mxu0 0.0
    %772 = vmatprep.subr.mxu0 0.0
    %773 = vmatpush1.msra.mxu0 0.0
    %774 = vmatprep.subr.mxu0 0.0
    %775 = vmatpush1.msra.mxu0 0.0
    %776 = vmatprep.subr.mxu0 0.0
    %777 = vmatpush1.msra.mxu0 0.0
    %778 = vmatprep.subr.mxu0 0.0
    %779 = vmatpush1.msra.mxu0 0.0
    %780 = vmatprep.subr.mxu0 0.0
    %781 = vmatpush1.msra.mxu0 0.0
    %782 = vmatprep.subr.mxu0 0.0
    %783 = vmatpush1.msra.mxu0 0.0
    %784 = vmatprep.subr.mxu0 0.0
    %785 = vmatpush1.msra.mxu0 0.0
    %786 = vmatprep.subr.mxu0 0.0
    %787 = vmatpush1.msra.mxu0 0.0
    %788 = vmatprep.subr.mxu0 0.0
    %789 = vmatpush1.msra.mxu0 0.0
    %790 = vmatprep.subr.mxu0 0.0
    %791 = vmatpush1.msra.mxu0 0.0
    %792 = vmatprep.subr.mxu0 0.0
    %793 = vmatpush1.msra.mxu0 0.0
    %794 = vmatprep.mubr.f32.mxu0 0.0
    %795 = vmatmul.mubr.f32.gmra.mrb[0].mxu0 %v98
    %v796 = vpop.f32.mrb[0].mxu0
    %v797 = vadd.f32 0.0, %v796
    %v798 = vpop.f32.mrb[0].mxu0
    %799 = vmatprep.mubr.f32.mxu0 0.0
    %800 = vmatmul.mubr.f32.gmra.mrb[0].mxu0 %v101
    %v801 = vpop.f32.mrb[0].mxu0
    %v802 = vadd.f32 0.0, %v801
    %v803 = vpop.f32.mrb[0].mxu0
    %804 = vdwg.mxu0
    %s805 = scalar_lea.vmem [#allocation2], 64
    %806 = vst.msk [vmem:[%s805] sm:$0xff] %vm181, %v797
    %807 = vst.msk [vmem:[%s805 + $0x8] sm:$0xff] %vm181, %v802
    %s808 = scalar_lea.vmem %s0, 20
    %v809 = vld [vmem:[%s808] sm:$0xf]
    %v811 = vsel %vm19, %v809, 0
    %813 = vmatprep.subr.mxu0 0.0
    %814 = vmatpush1.msra.mxu0 %v25
    %815 = vmatprep.subr.mxu0 0.0
    %816 = vmatpush1.msra.mxu0 0.0
    %817 = vmatprep.subr.mxu0 0.0
    %818 = vmatpush1.msra.mxu0 0.0
    %819 = vmatprep.subr.mxu0 0.0
    %820 = vmatpush1.msra.mxu0 0.0
    %821 = vmatprep.subr.mxu0 0.0
    %822 = vmatpush1.msra.mxu0 0.0
    %823 = vmatprep.subr.mxu0 0.0
    %824 = vmatpush1.msra.mxu0 0.0
    %825 = vmatprep.subr.mxu0 0.0
    %826 = vmatpush1.msra.mxu0 0.0
    %827 = vmatprep.subr.mxu0 0.0
    %828 = vmatpush1.msra.mxu0 0.0
    %829 = vmatprep.subr.mxu0 0.0
    %830 = vmatpush1.msra.mxu0 0.0
    %831 = vmatprep.subr.mxu0 0.0
    %832 = vmatpush1.msra.mxu0 0.0
    %833 = vmatprep.subr.mxu0 0.0
    %834 = vmatpush1.msra.mxu0 0.0
    %835 = vmatprep.subr.mxu0 0.0
    %836 = vmatpush1.msra.mxu0 0.0
    %837 = vmatprep.subr.mxu0 0.0
    %838 = vmatpush1.msra.mxu0 0.0
    %839 = vmatprep.subr.mxu0 0.0
    %840 = vmatpush1.msra.mxu0 0.0
    %841 = vmatprep.subr.mxu0 0.0
    %842 = vmatpush1.msra.mxu0 0.0
    %843 = vmatprep.subr.mxu0 0.0
    %844 = vmatpush1.msra.mxu0 0.0
    %845 = vmatprep.subr.mxu0 0.0
    %846 = vmatpush1.msra.mxu0 0.0
    %847 = vmatprep.subr.mxu0 0.0
    %848 = vmatpush1.msra.mxu0 0.0
    %849 = vmatprep.subr.mxu0 0.0
    %850 = vmatpush1.msra.mxu0 0.0
    %851 = vmatprep.subr.mxu0 0.0
    %852 = vmatpush1.msra.mxu0 0.0
    %853 = vmatprep.subr.mxu0 0.0
    %854 = vmatpush1.msra.mxu0 0.0
    %855 = vmatprep.subr.mxu0 0.0
    %856 = vmatpush1.msra.mxu0 0.0
    %857 = vmatprep.subr.mxu0 0.0
    %858 = vmatpush1.msra.mxu0 0.0
    %859 = vmatprep.subr.mxu0 0.0
    %860 = vmatpush1.msra.mxu0 0.0
    %861 = vmatprep.subr.mxu0 0.0
    %862 = vmatpush1.msra.mxu0 0.0
    %863 = vmatprep.subr.mxu0 0.0
    %864 = vmatpush1.msra.mxu0 0.0
    %865 = vmatprep.subr.mxu0 0.0
    %866 = vmatpush1.msra.mxu0 0.0
    %867 = vmatprep.subr.mxu0 0.0
    %868 = vmatpush1.msra.mxu0 0.0
    %869 = vmatprep.subr.mxu0 0.0
    %870 = vmatpush1.msra.mxu0 0.0
    %871 = vmatprep.subr.mxu0 0.0
    %872 = vmatpush1.msra.mxu0 0.0
    %873 = vmatprep.subr.mxu0 0.0
    %874 = vmatpush1.msra.mxu0 0.0
    %875 = vmatprep.subr.mxu0 0.0
    %876 = vmatpush1.msra.mxu0 0.0
    %877 = vmatprep.mubr.f32.mxu0 0.0
    %878 = vmatmul.mubr.f32.gmra.mrb[0].mxu0 %v811
    %v879 = vpop.f32.mrb[0].mxu0
    %v880 = vadd.f32 0.0, %v879
    %v881 = vpop.f32.mrb[0].mxu0
    %882 = vdwg.mxu0
    %v884 = vsel %vm23, %v880, 0
    %886 = vmatprep.subr.mxu0 0.0
    %887 = vmatpush1.msra.mxu0 %v884
    %888 = vmatprep.subr.mxu0 0.0
    %889 = vmatpush1.msra.mxu0 0.0
    %890 = vmatprep.subr.mxu0 0.0
    %891 = vmatpush1.msra.mxu0 0.0
    %892 = vmatprep.subr.mxu0 0.0
    %893 = vmatpush1.msra.mxu0 0.0
    %894 = vmatprep.subr.mxu0 0.0
    %895 = vmatpush1.msra.mxu0 0.0
    %896 = vmatprep.subr.mxu0 0.0
    %897 = vmatpush1.msra.mxu0 0.0
    %898 = vmatprep.subr.mxu0 0.0
    %899 = vmatpush1.msra.mxu0 0.0
    %900 = vmatprep.subr.mxu0 0.0
    %901 = vmatpush1.msra.mxu0 0.0
    %902 = vmatprep.subr.mxu0 0.0
    %903 = vmatpush1.msra.mxu0 0.0
    %904 = vmatprep.subr.mxu0 0.0
    %905 = vmatpush1.msra.mxu0 0.0
    %906 = vmatprep.subr.mxu0 0.0
    %907 = vmatpush1.msra.mxu0 0.0
    %908 = vmatprep.subr.mxu0 0.0
    %909 = vmatpush1.msra.mxu0 0.0
    %910 = vmatprep.subr.mxu0 0.0
    %911 = vmatpush1.msra.mxu0 0.0
    %912 = vmatprep.subr.mxu0 0.0
    %913 = vmatpush1.msra.mxu0 0.0
    %914 = vmatprep.subr.mxu0 0.0
    %915 = vmatpush1.msra.mxu0 0.0
    %916 = vmatprep.subr.mxu0 0.0
    %917 = vmatpush1.msra.mxu0 0.0
    %918 = vmatprep.subr.mxu0 0.0
    %919 = vmatpush1.msra.mxu0 0.0
    %920 = vmatprep.subr.mxu0 0.0
    %921 = vmatpush1.msra.mxu0 0.0
    %922 = vmatprep.subr.mxu0 0.0
    %923 = vmatpush1.msra.mxu0 0.0
    %924 = vmatprep.subr.mxu0 0.0
    %925 = vmatpush1.msra.mxu0 0.0
    %926 = vmatprep.subr.mxu0 0.0
    %927 = vmatpush1.msra.mxu0 0.0
    %928 = vmatprep.subr.mxu0 0.0
    %929 = vmatpush1.msra.mxu0 0.0
    %930 = vmatprep.subr.mxu0 0.0
    %931 = vmatpush1.msra.mxu0 0.0
    %932 = vmatprep.subr.mxu0 0.0
    %933 = vmatpush1.msra.mxu0 0.0
    %934 = vmatprep.subr.mxu0 0.0
    %935 = vmatpush1.msra.mxu0 0.0
    %936 = vmatprep.subr.mxu0 0.0
    %937 = vmatpush1.msra.mxu0 0.0
    %938 = vmatprep.subr.mxu0 0.0
    %939 = vmatpush1.msra.mxu0 0.0
    %940 = vmatprep.subr.mxu0 0.0
    %941 = vmatpush1.msra.mxu0 0.0
    %942 = vmatprep.subr.mxu0 0.0
    %943 = vmatpush1.msra.mxu0 0.0
    %944 = vmatprep.subr.mxu0 0.0
    %945 = vmatpush1.msra.mxu0 0.0
    %946 = vmatprep.subr.mxu0 0.0
    %947 = vmatpush1.msra.mxu0 0.0
    %948 = vmatprep.subr.mxu0 0.0
    %949 = vmatpush1.msra.mxu0 0.0
    %950 = vmatprep.mubr.f32.mxu0 0.0
    %951 = vmatmul.mubr.f32.gmra.mrb[0].mxu0 %v98
    %v952 = vpop.f32.mrb[0].mxu0
    %v953 = vadd.f32 0.0, %v952
    %v954 = vpop.f32.mrb[0].mxu0
    %955 = vmatprep.mubr.f32.mxu0 0.0
    %956 = vmatmul.mubr.f32.gmra.mrb[0].mxu0 %v101
    %v957 = vpop.f32.mrb[0].mxu0
    %v958 = vadd.f32 0.0, %v957
    %v959 = vpop.f32.mrb[0].mxu0
    %960 = vdwg.mxu0
    %s961 = scalar_lea.vmem [#allocation2], 80
    %962 = vst.msk [vmem:[%s961] sm:$0xff] %vm181, %v953
    %963 = vst.msk [vmem:[%s961 + $0x8] sm:$0xff] %vm181, %v958
    %s964 = scalar_lea.vmem %s0, 24
    %v965 = vld [vmem:[%s964] sm:$0xf]
    %v967 = vsel %vm19, %v965, 0
    %969 = vmatprep.subr.mxu0 0.0
    %970 = vmatpush1.msra.mxu0 %v25
    %971 = vmatprep.subr.mxu0 0.0
    %972 = vmatpush1.msra.mxu0 0.0
    %973 = vmatprep.subr.mxu0 0.0
    %974 = vmatpush1.msra.mxu0 0.0
    %975 = vmatprep.subr.mxu0 0.0
    %976 = vmatpush1.msra.mxu0 0.0
    %977 = vmatprep.subr.mxu0 0.0
    %978 = vmatpush1.msra.mxu0 0.0
    %979 = vmatprep.subr.mxu0 0.0
    %980 = vmatpush1.msra.mxu0 0.0
    %981 = vmatprep.subr.mxu0 0.0
    %982 = vmatpush1.msra.mxu0 0.0
    %983 = vmatprep.subr.mxu0 0.0
    %984 = vmatpush1.msra.mxu0 0.0
    %985 = vmatprep.subr.mxu0 0.0
    %986 = vmatpush1.msra.mxu0 0.0
    %987 = vmatprep.subr.mxu0 0.0
    %988 = vmatpush1.msra.mxu0 0.0
    %989 = vmatprep.subr.mxu0 0.0
    %990 = vmatpush1.msra.mxu0 0.0
    %991 = vmatprep.subr.mxu0 0.0
    %992 = vmatpush1.msra.mxu0 0.0
    %993 = vmatprep.subr.mxu0 0.0
    %994 = vmatpush1.msra.mxu0 0.0
    %995 = vmatprep.subr.mxu0 0.0
    %996 = vmatpush1.msra.mxu0 0.0
    %997 = vmatprep.subr.mxu0 0.0
    %998 = vmatpush1.msra.mxu0 0.0
    %999 = vmatprep.subr.mxu0 0.0
    %1000 = vmatpush1.msra.mxu0 0.0
    %1001 = vmatprep.subr.mxu0 0.0
    %1002 = vmatpush1.msra.mxu0 0.0
    %1003 = vmatprep.subr.mxu0 0.0
    %1004 = vmatpush1.msra.mxu0 0.0
    %1005 = vmatprep.subr.mxu0 0.0
    %1006 = vmatpush1.msra.mxu0 0.0
    %1007 = vmatprep.subr.mxu0 0.0
    %1008 = vmatpush1.msra.mxu0 0.0
    %1009 = vmatprep.subr.mxu0 0.0
    %1010 = vmatpush1.msra.mxu0 0.0
    %1011 = vmatprep.subr.mxu0 0.0
    %1012 = vmatpush1.msra.mxu0 0.0
    %1013 = vmatprep.subr.mxu0 0.0
    %1014 = vmatpush1.msra.mxu0 0.0
    %1015 = vmatprep.subr.mxu0 0.0
    %1016 = vmatpush1.msra.mxu0 0.0
    %1017 = vmatprep.subr.mxu0 0.0
    %1018 = vmatpush1.msra.mxu0 0.0
    %1019 = vmatprep.subr.mxu0 0.0
    %1020 = vmatpush1.msra.mxu0 0.0
    %1021 = vmatprep.subr.mxu0 0.0
    %1022 = vmatpush1.msra.mxu0 0.0
    %1023 = vmatprep.subr.mxu0 0.0
    %1024 = vmatpush1.msra.mxu0 0.0
    %1025 = vmatprep.subr.mxu0 0.0
    %1026 = vmatpush1.msra.mxu0 0.0
    %1027 = vmatprep.subr.mxu0 0.0
    %1028 = vmatpush1.msra.mxu0 0.0
    %1029 = vmatprep.subr.mxu0 0.0
    %1030 = vmatpush1.msra.mxu0 0.0
    %1031 = vmatprep.subr.mxu0 0.0
    %1032 = vmatpush1.msra.mxu0 0.0
    %1033 = vmatprep.mubr.f32.mxu0 0.0
    %1034 = vmatmul.mubr.f32.gmra.mrb[0].mxu0 %v967
    %v1035 = vpop.f32.mrb[0].mxu0
    %v1036 = vadd.f32 0.0, %v1035
    %v1037 = vpop.f32.mrb[0].mxu0
    %1038 = vdwg.mxu0
    %v1040 = vsel %vm23, %v1036, 0
    %1042 = vmatprep.subr.mxu0 0.0
    %1043 = vmatpush1.msra.mxu0 %v1040
    %1044 = vmatprep.subr.mxu0 0.0
    %1045 = vmatpush1.msra.mxu0 0.0
    %1046 = vmatprep.subr.mxu0 0.0
    %1047 = vmatpush1.msra.mxu0 0.0
    %1048 = vmatprep.subr.mxu0 0.0
    %1049 = vmatpush1.msra.mxu0 0.0
    %1050 = vmatprep.subr.mxu0 0.0
    %1051 = vmatpush1.msra.mxu0 0.0
    %1052 = vmatprep.subr.mxu0 0.0
    %1053 = vmatpush1.msra.mxu0 0.0
    %1054 = vmatprep.subr.mxu0 0.0
    %1055 = vmatpush1.msra.mxu0 0.0
    %1056 = vmatprep.subr.mxu0 0.0
    %1057 = vmatpush1.msra.mxu0 0.0
    %1058 = vmatprep.subr.mxu0 0.0
    %1059 = vmatpush1.msra.mxu0 0.0
    %1060 = vmatprep.subr.mxu0 0.0
    %1061 = vmatpush1.msra.mxu0 0.0
    %1062 = vmatprep.subr.mxu0 0.0
    %1063 = vmatpush1.msra.mxu0 0.0
    %1064 = vmatprep.subr.mxu0 0.0
    %1065 = vmatpush1.msra.mxu0 0.0
    %1066 = vmatprep.subr.mxu0 0.0
    %1067 = vmatpush1.msra.mxu0 0.0
    %1068 = vmatprep.subr.mxu0 0.0
    %1069 = vmatpush1.msra.mxu0 0.0
    %1070 = vmatprep.subr.mxu0 0.0
    %1071 = vmatpush1.msra.mxu0 0.0
    %1072 = vmatprep.subr.mxu0 0.0
    %1073 = vmatpush1.msra.mxu0 0.0
    %1074 = vmatprep.subr.mxu0 0.0
    %1075 = vmatpush1.msra.mxu0 0.0
    %1076 = vmatprep.subr.mxu0 0.0
    %1077 = vmatpush1.msra.mxu0 0.0
    %1078 = vmatprep.subr.mxu0 0.0
    %1079 = vmatpush1.msra.mxu0 0.0
    %1080 = vmatprep.subr.mxu0 0.0
    %1081 = vmatpush1.msra.mxu0 0.0
    %1082 = vmatprep.subr.mxu0 0.0
    %1083 = vmatpush1.msra.mxu0 0.0
    %1084 = vmatprep.subr.mxu0 0.0
    %1085 = vmatpush1.msra.mxu0 0.0
    %1086 = vmatprep.subr.mxu0 0.0
    %1087 = vmatpush1.msra.mxu0 0.0
    %1088 = vmatprep.subr.mxu0 0.0
    %1089 = vmatpush1.msra.mxu0 0.0
    %1090 = vmatprep.subr.mxu0 0.0
    %1091 = vmatpush1.msra.mxu0 0.0
    %1092 = vmatprep.subr.mxu0 0.0
    %1093 = vmatpush1.msra.mxu0 0.0
    %1094 = vmatprep.subr.mxu0 0.0
    %1095 = vmatpush1.msra.mxu0 0.0
    %1096 = vmatprep.subr.mxu0 0.0
    %1097 = vmatpush1.msra.mxu0 0.0
    %1098 = vmatprep.subr.mxu0 0.0
    %1099 = vmatpush1.msra.mxu0 0.0
    %1100 = vmatprep.subr.mxu0 0.0
    %1101 = vmatpush1.msra.mxu0 0.0
    %1102 = vmatprep.subr.mxu0 0.0
    %1103 = vmatpush1.msra.mxu0 0.0
    %1104 = vmatprep.subr.mxu0 0.0
    %1105 = vmatpush1.msra.mxu0 0.0
    %1106 = vmatprep.mubr.f32.mxu0 0.0
    %1107 = vmatmul.mubr.f32.gmra.mrb[0].mxu0 %v98
    %v1108 = vpop.f32.mrb[0].mxu0
    %v1109 = vadd.f32 0.0, %v1108
    %v1110 = vpop.f32.mrb[0].mxu0
    %1111 = vmatprep.mubr.f32.mxu0 0.0
    %1112 = vmatmul.mubr.f32.gmra.mrb[0].mxu0 %v101
    %v1113 = vpop.f32.mrb[0].mxu0
    %v1114 = vadd.f32 0.0, %v1113
    %v1115 = vpop.f32.mrb[0].mxu0
    %1116 = vdwg.mxu0
    %s1117 = scalar_lea.vmem [#allocation2], 96
    %1118 = vst.msk [vmem:[%s1117] sm:$0xff] %vm181, %v1109
    %1119 = vst.msk [vmem:[%s1117 + $0x8] sm:$0xff] %vm181, %v1114
    %s1120 = scalar_lea.vmem %s0, 28
    %v1121 = vld [vmem:[%s1120] sm:$0xf]
    %v1123 = vsel %vm19, %v1121, 0
    %1125 = vmatprep.subr.mxu0 0.0
    %1126 = vmatpush1.msra.mxu0 %v25
    %1127 = vmatprep.subr.mxu0 0.0
    %1128 = vmatpush1.msra.mxu0 0.0
    %1129 = vmatprep.subr.mxu0 0.0
    %1130 = vmatpush1.msra.mxu0 0.0
    %1131 = vmatprep.subr.mxu0 0.0
    %1132 = vmatpush1.msra.mxu0 0.0
    %1133 = vmatprep.subr.mxu0 0.0
    %1134 = vmatpush1.msra.mxu0 0.0
    %1135 = vmatprep.subr.mxu0 0.0
    %1136 = vmatpush1.msra.mxu0 0.0
    %1137 = vmatprep.subr.mxu0 0.0
    %1138 = vmatpush1.msra.mxu0 0.0
    %1139 = vmatprep.subr.mxu0 0.0
    %1140 = vmatpush1.msra.mxu0 0.0
    %1141 = vmatprep.subr.mxu0 0.0
    %1142 = vmatpush1.msra.mxu0 0.0
    %1143 = vmatprep.subr.mxu0 0.0
    %1144 = vmatpush1.msra.mxu0 0.0
    %1145 = vmatprep.subr.mxu0 0.0
    %1146 = vmatpush1.msra.mxu0 0.0
    %1147 = vmatprep.subr.mxu0 0.0
    %1148 = vmatpush1.msra.mxu0 0.0
    %1149 = vmatprep.subr.mxu0 0.0
    %1150 = vmatpush1.msra.mxu0 0.0
    %1151 = vmatprep.subr.mxu0 0.0
    %1152 = vmatpush1.msra.mxu0 0.0
    %1153 = vmatprep.subr.mxu0 0.0
    %1154 = vmatpush1.msra.mxu0 0.0
    %1155 = vmatprep.subr.mxu0 0.0
    %1156 = vmatpush1.msra.mxu0 0.0
    %1157 = vmatprep.subr.mxu0 0.0
    %1158 = vmatpush1.msra.mxu0 0.0
    %1159 = vmatprep.subr.mxu0 0.0
    %1160 = vmatpush1.msra.mxu0 0.0
    %1161 = vmatprep.subr.mxu0 0.0
    %1162 = vmatpush1.msra.mxu0 0.0
    %1163 = vmatprep.subr.mxu0 0.0
    %1164 = vmatpush1.msra.mxu0 0.0
    %1165 = vmatprep.subr.mxu0 0.0
    %1166 = vmatpush1.msra.mxu0 0.0
    %1167 = vmatprep.subr.mxu0 0.0
    %1168 = vmatpush1.msra.mxu0 0.0
    %1169 = vmatprep.subr.mxu0 0.0
    %1170 = vmatpush1.msra.mxu0 0.0
    %1171 = vmatprep.subr.mxu0 0.0
    %1172 = vmatpush1.msra.mxu0 0.0
    %1173 = vmatprep.subr.mxu0 0.0
    %1174 = vmatpush1.msra.mxu0 0.0
    %1175 = vmatprep.subr.mxu0 0.0
    %1176 = vmatpush1.msra.mxu0 0.0
    %1177 = vmatprep.subr.mxu0 0.0
    %1178 = vmatpush1.msra.mxu0 0.0
    %1179 = vmatprep.subr.mxu0 0.0
    %1180 = vmatpush1.msra.mxu0 0.0
    %1181 = vmatprep.subr.mxu0 0.0
    %1182 = vmatpush1.msra.mxu0 0.0
    %1183 = vmatprep.subr.mxu0 0.0
    %1184 = vmatpush1.msra.mxu0 0.0
    %1185 = vmatprep.subr.mxu0 0.0
    %1186 = vmatpush1.msra.mxu0 0.0
    %1187 = vmatprep.subr.mxu0 0.0
    %1188 = vmatpush1.msra.mxu0 0.0
    %1189 = vmatprep.mubr.f32.mxu0 0.0
    %1190 = vmatmul.mubr.f32.gmra.mrb[0].mxu0 %v1123
    %v1191 = vpop.f32.mrb[0].mxu0
    %v1192 = vadd.f32 0.0, %v1191
    %v1193 = vpop.f32.mrb[0].mxu0
    %1194 = vdwg.mxu0
    %v1196 = vsel %vm23, %v1192, 0
    %1198 = vmatprep.subr.mxu0 0.0
    %1199 = vmatpush1.msra.mxu0 %v1196
    %1200 = vmatprep.subr.mxu0 0.0
    %1201 = vmatpush1.msra.mxu0 0.0
    %1202 = vmatprep.subr.mxu0 0.0
    %1203 = vmatpush1.msra.mxu0 0.0
    %1204 = vmatprep.subr.mxu0 0.0
    %1205 = vmatpush1.msra.mxu0 0.0
    %1206 = vmatprep.subr.mxu0 0.0
    %1207 = vmatpush1.msra.mxu0 0.0
    %1208 = vmatprep.subr.mxu0 0.0
    %1209 = vmatpush1.msra.mxu0 0.0
    %1210 = vmatprep.subr.mxu0 0.0
    %1211 = vmatpush1.msra.mxu0 0.0
    %1212 = vmatprep.subr.mxu0 0.0
    %1213 = vmatpush1.msra.mxu0 0.0
    %1214 = vmatprep.subr.mxu0 0.0
    %1215 = vmatpush1.msra.mxu0 0.0
    %1216 = vmatprep.subr.mxu0 0.0
    %1217 = vmatpush1.msra.mxu0 0.0
    %1218 = vmatprep.subr.mxu0 0.0
    %1219 = vmatpush1.msra.mxu0 0.0
    %1220 = vmatprep.subr.mxu0 0.0
    %1221 = vmatpush1.msra.mxu0 0.0
    %1222 = vmatprep.subr.mxu0 0.0
    %1223 = vmatpush1.msra.mxu0 0.0
    %1224 = vmatprep.subr.mxu0 0.0
    %1225 = vmatpush1.msra.mxu0 0.0
    %1226 = vmatprep.subr.mxu0 0.0
    %1227 = vmatpush1.msra.mxu0 0.0
    %1228 = vmatprep.subr.mxu0 0.0
    %1229 = vmatpush1.msra.mxu0 0.0
    %1230 = vmatprep.subr.mxu0 0.0
    %1231 = vmatpush1.msra.mxu0 0.0
    %1232 = vmatprep.subr.mxu0 0.0
    %1233 = vmatpush1.msra.mxu0 0.0
    %1234 = vmatprep.subr.mxu0 0.0
    %1235 = vmatpush1.msra.mxu0 0.0
    %1236 = vmatprep.subr.mxu0 0.0
    %1237 = vmatpush1.msra.mxu0 0.0
    %1238 = vmatprep.subr.mxu0 0.0
    %1239 = vmatpush1.msra.mxu0 0.0
    %1240 = vmatprep.subr.mxu0 0.0
    %1241 = vmatpush1.msra.mxu0 0.0
    %1242 = vmatprep.subr.mxu0 0.0
    %1243 = vmatpush1.msra.mxu0 0.0
    %1244 = vmatprep.subr.mxu0 0.0
    %1245 = vmatpush1.msra.mxu0 0.0
    %1246 = vmatprep.subr.mxu0 0.0
    %1247 = vmatpush1.msra.mxu0 0.0
    %1248 = vmatprep.subr.mxu0 0.0
    %1249 = vmatpush1.msra.mxu0 0.0
    %1250 = vmatprep.subr.mxu0 0.0
    %1251 = vmatpush1.msra.mxu0 0.0
    %1252 = vmatprep.subr.mxu0 0.0
    %1253 = vmatpush1.msra.mxu0 0.0
    %1254 = vmatprep.subr.mxu0 0.0
    %1255 = vmatpush1.msra.mxu0 0.0
    %1256 = vmatprep.subr.mxu0 0.0
    %1257 = vmatpush1.msra.mxu0 0.0
    %1258 = vmatprep.subr.mxu0 0.0
    %1259 = vmatpush1.msra.mxu0 0.0
    %1260 = vmatprep.subr.mxu0 0.0
    %1261 = vmatpush1.msra.mxu0 0.0
    %1262 = vmatprep.mubr.f32.mxu0 0.0
    %1263 = vmatmul.mubr.f32.gmra.mrb[0].mxu0 %v98
    %v1264 = vpop.f32.mrb[0].mxu0
    %v1265 = vadd.f32 0.0, %v1264
    %v1266 = vpop.f32.mrb[0].mxu0
    %1267 = vmatprep.mubr.f32.mxu0 0.0
    %1268 = vmatmul.mubr.f32.gmra.mrb[0].mxu0 %v101
    %v1269 = vpop.f32.mrb[0].mxu0
    %v1270 = vadd.f32 0.0, %v1269
    %v1271 = vpop.f32.mrb[0].mxu0
    %1272 = vdwg.mxu0
    %s1273 = scalar_lea.vmem [#allocation2], 112
    %1274 = vst.msk [vmem:[%s1273] sm:$0xff] %vm181, %v1265
    %1275 = vst.msk [vmem:[%s1273 + $0x8] sm:$0xff] %vm181, %v1270
    %s1276 = scalar_lea.vmem %s0, 32
    %v1277 = vld [vmem:[%s1276] sm:$0xf]
    %v1279 = vsel %vm19, %v1277, 0
    %1281 = vmatprep.subr.mxu0 0.0
    %1282 = vmatpush1.msra.mxu0 %v25
    %1283 = vmatprep.subr.mxu0 0.0
    %1284 = vmatpush1.msra.mxu0 0.0
    %1285 = vmatprep.subr.mxu0 0.0
    %1286 = vmatpush1.msra.mxu0 0.0
    %1287 = vmatprep.subr.mxu0 0.0
    %1288 = vmatpush1.msra.mxu0 0.0
    %1289 = vmatprep.subr.mxu0 0.0
    %1290 = vmatpush1.msra.mxu0 0.0
    %1291 = vmatprep.subr.mxu0 0.0
    %1292 = vmatpush1.msra.mxu0 0.0
    %1293 = vmatprep.subr.mxu0 0.0
    %1294 = vmatpush1.msra.mxu0 0.0
    %1295 = vmatprep.subr.mxu0 0.0
    %1296 = vmatpush1.msra.mxu0 0.0
    %1297 = vmatprep.subr.mxu0 0.0
    %1298 = vmatpush1.msra.mxu0 0.0
    %1299 = vmatprep.subr.mxu0 0.0
    %1300 = vmatpush1.msra.mxu0 0.0
    %1301 = vmatprep.subr.mxu0 0.0
    %1302 = vmatpush1.msra.mxu0 0.0
    %1303 = vmatprep.subr.mxu0 0.0
    %1304 = vmatpush1.msra.mxu0 0.0
    %1305 = vmatprep.subr.mxu0 0.0
    %1306 = vmatpush1.msra.mxu0 0.0
    %1307 = vmatprep.subr.mxu0 0.0
    %1308 = vmatpush1.msra.mxu0 0.0
    %1309 = vmatprep.subr.mxu0 0.0
    %1310 = vmatpush1.msra.mxu0 0.0
    %1311 = vmatprep.subr.mxu0 0.0
    %1312 = vmatpush1.msra.mxu0 0.0
    %1313 = vmatprep.subr.mxu0 0.0
    %1314 = vmatpush1.msra.mxu0 0.0
    %1315 = vmatprep.subr.mxu0 0.0
    %1316 = vmatpush1.msra.mxu0 0.0
    %1317 = vmatprep.subr.mxu0 0.0
    %1318 = vmatpush1.msra.mxu0 0.0
    %1319 = vmatprep.subr.mxu0 0.0
    %1320 = vmatpush1.msra.mxu0 0.0
    %1321 = vmatprep.subr.mxu0 0.0
    %1322 = vmatpush1.msra.mxu0 0.0
    %1323 = vmatprep.subr.mxu0 0.0
    %1324 = vmatpush1.msra.mxu0 0.0
    %1325 = vmatprep.subr.mxu0 0.0
    %1326 = vmatpush1.msra.mxu0 0.0
    %1327 = vmatprep.subr.mxu0 0.0
    %1328 = vmatpush1.msra.mxu0 0.0
    %1329 = vmatprep.subr.mxu0 0.0
    %1330 = vmatpush1.msra.mxu0 0.0
    %1331 = vmatprep.subr.mxu0 0.0
    %1332 = vmatpush1.msra.mxu0 0.0
    %1333 = vmatprep.subr.mxu0 0.0
    %1334 = vmatpush1.msra.mxu0 0.0
    %1335 = vmatprep.subr.mxu0 0.0
    %1336 = vmatpush1.msra.mxu0 0.0
    %1337 = vmatprep.subr.mxu0 0.0
    %1338 = vmatpush1.msra.mxu0 0.0
    %1339 = vmatprep.subr.mxu0 0.0
    %1340 = vmatpush1.msra.mxu0 0.0
    %1341 = vmatprep.subr.mxu0 0.0
    %1342 = vmatpush1.msra.mxu0 0.0
    %1343 = vmatprep.subr.mxu0 0.0
    %1344 = vmatpush1.msra.mxu0 0.0
    %1345 = vmatprep.mubr.f32.mxu0 0.0
    %1346 = vmatmul.mubr.f32.gmra.mrb[0].mxu0 %v1279
    %v1347 = vpop.f32.mrb[0].mxu0
    %v1348 = vadd.f32 0.0, %v1347
    %v1349 = vpop.f32.mrb[0].mxu0
    %1350 = vdwg.mxu0
    %v1352 = vsel %vm23, %v1348, 0
    %1354 = vmatprep.subr.mxu0 0.0
    %1355 = vmatpush1.msra.mxu0 %v1352
    %1356 = vmatprep.subr.mxu0 0.0
    %1357 = vmatpush1.msra.mxu0 0.0
    %1358 = vmatprep.subr.mxu0 0.0
    %1359 = vmatpush1.msra.mxu0 0.0
    %1360 = vmatprep.subr.mxu0 0.0
    %1361 = vmatpush1.msra.mxu0 0.0
    %1362 = vmatprep.subr.mxu0 0.0
    %1363 = vmatpush1.msra.mxu0 0.0
    %1364 = vmatprep.subr.mxu0 0.0
    %1365 = vmatpush1.msra.mxu0 0.0
    %1366 = vmatprep.subr.mxu0 0.0
    %1367 = vmatpush1.msra.mxu0 0.0
    %1368 = vmatprep.subr.mxu0 0.0
    %1369 = vmatpush1.msra.mxu0 0.0
    %1370 = vmatprep.subr.mxu0 0.0
    %1371 = vmatpush1.msra.mxu0 0.0
    %1372 = vmatprep.subr.mxu0 0.0
    %1373 = vmatpush1.msra.mxu0 0.0
    %1374 = vmatprep.subr.mxu0 0.0
    %1375 = vmatpush1.msra.mxu0 0.0
    %1376 = vmatprep.subr.mxu0 0.0
    %1377 = vmatpush1.msra.mxu0 0.0
    %1378 = vmatprep.subr.mxu0 0.0
    %1379 = vmatpush1.msra.mxu0 0.0
    %1380 = vmatprep.subr.mxu0 0.0
    %1381 = vmatpush1.msra.mxu0 0.0
    %1382 = vmatprep.subr.mxu0 0.0
    %1383 = vmatpush1.msra.mxu0 0.0
    %1384 = vmatprep.subr.mxu0 0.0
    %1385 = vmatpush1.msra.mxu0 0.0
    %1386 = vmatprep.subr.mxu0 0.0
    %1387 = vmatpush1.msra.mxu0 0.0
    %1388 = vmatprep.subr.mxu0 0.0
    %1389 = vmatpush1.msra.mxu0 0.0
    %1390 = vmatprep.subr.mxu0 0.0
    %1391 = vmatpush1.msra.mxu0 0.0
    %1392 = vmatprep.subr.mxu0 0.0
    %1393 = vmatpush1.msra.mxu0 0.0
    %1394 = vmatprep.subr.mxu0 0.0
    %1395 = vmatpush1.msra.mxu0 0.0
    %1396 = vmatprep.subr.mxu0 0.0
    %1397 = vmatpush1.msra.mxu0 0.0
    %1398 = vmatprep.subr.mxu0 0.0
    %1399 = vmatpush1.msra.mxu0 0.0
    %1400 = vmatprep.subr.mxu0 0.0
    %1401 = vmatpush1.msra.mxu0 0.0
    %1402 = vmatprep.subr.mxu0 0.0
    %1403 = vmatpush1.msra.mxu0 0.0
    %1404 = vmatprep.subr.mxu0 0.0
    %1405 = vmatpush1.msra.mxu0 0.0
    %1406 = vmatprep.subr.mxu0 0.0
    %1407 = vmatpush1.msra.mxu0 0.0
    %1408 = vmatprep.subr.mxu0 0.0
    %1409 = vmatpush1.msra.mxu0 0.0
    %1410 = vmatprep.subr.mxu0 0.0
    %1411 = vmatpush1.msra.mxu0 0.0
    %1412 = vmatprep.subr.mxu0 0.0
    %1413 = vmatpush1.msra.mxu0 0.0
    %1414 = vmatprep.subr.mxu0 0.0
    %1415 = vmatpush1.msra.mxu0 0.0
    %1416 = vmatprep.subr.mxu0 0.0
    %1417 = vmatpush1.msra.mxu0 0.0
    %1418 = vmatprep.mubr.f32.mxu0 0.0
    %1419 = vmatmul.mubr.f32.gmra.mrb[0].mxu0 %v98
    %v1420 = vpop.f32.mrb[0].mxu0
    %v1421 = vadd.f32 0.0, %v1420
    %v1422 = vpop.f32.mrb[0].mxu0
    %1423 = vmatprep.mubr.f32.mxu0 0.0
    %1424 = vmatmul.mubr.f32.gmra.mrb[0].mxu0 %v101
    %v1425 = vpop.f32.mrb[0].mxu0
    %v1426 = vadd.f32 0.0, %v1425
    %v1427 = vpop.f32.mrb[0].mxu0
    %1428 = vdwg.mxu0
    %s1429 = scalar_lea.vmem [#allocation2], 128
    %1430 = vst.msk [vmem:[%s1429] sm:$0xff] %vm181, %v1421
    %1431 = vst.msk [vmem:[%s1429 + $0x8] sm:$0xff] %vm181, %v1426
    %s1432 = scalar_lea.vmem %s0, 36
    %v1433 = vld [vmem:[%s1432] sm:$0xf]
    %v1435 = vsel %vm19, %v1433, 0
    %1437 = vmatprep.subr.mxu0 0.0
    %1438 = vmatpush1.msra.mxu0 %v25
    %1439 = vmatprep.subr.mxu0 0.0
    %1440 = vmatpush1.msra.mxu0 0.0
    %1441 = vmatprep.subr.mxu0 0.0
    %1442 = vmatpush1.msra.mxu0 0.0
    %1443 = vmatprep.subr.mxu0 0.0
    %1444 = vmatpush1.msra.mxu0 0.0
    %1445 = vmatprep.subr.mxu0 0.0
    %1446 = vmatpush1.msra.mxu0 0.0
    %1447 = vmatprep.subr.mxu0 0.0
    %1448 = vmatpush1.msra.mxu0 0.0
    %1449 = vmatprep.subr.mxu0 0.0
    %1450 = vmatpush1.msra.mxu0 0.0
    %1451 = vmatprep.subr.mxu0 0.0
    %1452 = vmatpush1.msra.mxu0 0.0
    %1453 = vmatprep.subr.mxu0 0.0
    %1454 = vmatpush1.msra.mxu0 0.0
    %1455 = vmatprep.subr.mxu0 0.0
    %1456 = vmatpush1.msra.mxu0 0.0
    %1457 = vmatprep.subr.mxu0 0.0
    %1458 = vmatpush1.msra.mxu0 0.0
    %1459 = vmatprep.subr.mxu0 0.0
    %1460 = vmatpush1.msra.mxu0 0.0
    %1461 = vmatprep.subr.mxu0 0.0
    %1462 = vmatpush1.msra.mxu0 0.0
    %1463 = vmatprep.subr.mxu0 0.0
    %1464 = vmatpush1.msra.mxu0 0.0
    %1465 = vmatprep.subr.mxu0 0.0
    %1466 = vmatpush1.msra.mxu0 0.0
    %1467 = vmatprep.subr.mxu0 0.0
    %1468 = vmatpush1.msra.mxu0 0.0
    %1469 = vmatprep.subr.mxu0 0.0
    %1470 = vmatpush1.msra.mxu0 0.0
    %1471 = vmatprep.subr.mxu0 0.0
    %1472 = vmatpush1.msra.mxu0 0.0
    %1473 = vmatprep.subr.mxu0 0.0
    %1474 = vmatpush1.msra.mxu0 0.0
    %1475 = vmatprep.subr.mxu0 0.0
    %1476 = vmatpush1.msra.mxu0 0.0
    %1477 = vmatprep.subr.mxu0 0.0
    %1478 = vmatpush1.msra.mxu0 0.0
    %1479 = vmatprep.subr.mxu0 0.0
    %1480 = vmatpush1.msra.mxu0 0.0
    %1481 = vmatprep.subr.mxu0 0.0
    %1482 = vmatpush1.msra.mxu0 0.0
    %1483 = vmatprep.subr.mxu0 0.0
    %1484 = vmatpush1.msra.mxu0 0.0
    %1485 = vmatprep.subr.mxu0 0.0
    %1486 = vmatpush1.msra.mxu0 0.0
    %1487 = vmatprep.subr.mxu0 0.0
    %1488 = vmatpush1.msra.mxu0 0.0
    %1489 = vmatprep.subr.mxu0 0.0
    %1490 = vmatpush1.msra.mxu0 0.0
    %1491 = vmatprep.subr.mxu0 0.0
    %1492 = vmatpush1.msra.mxu0 0.0
    %1493 = vmatprep.subr.mxu0 0.0
    %1494 = vmatpush1.msra.mxu0 0.0
    %1495 = vmatprep.subr.mxu0 0.0
    %1496 = vmatpush1.msra.mxu0 0.0
    %1497 = vmatprep.subr.mxu0 0.0
    %1498 = vmatpush1.msra.mxu0 0.0
    %1499 = vmatprep.subr.mxu0 0.0
    %1500 = vmatpush1.msra.mxu0 0.0
    %1501 = vmatprep.mubr.f32.mxu0 0.0
    %1502 = vmatmul.mubr.f32.gmra.mrb[0].mxu0 %v1435
    %v1503 = vpop.f32.mrb[0].mxu0
    %v1504 = vadd.f32 0.0, %v1503
    %v1505 = vpop.f32.mrb[0].mxu0
    %1506 = vdwg.mxu0
    %v1508 = vsel %vm23, %v1504, 0
    %1510 = vmatprep.subr.mxu0 0.0
    %1511 = vmatpush1.msra.mxu0 %v1508
    %1512 = vmatprep.subr.mxu0 0.0
    %1513 = vmatpush1.msra.mxu0 0.0
    %1514 = vmatprep.subr.mxu0 0.0
    %1515 = vmatpush1.msra.mxu0 0.0
    %1516 = vmatprep.subr.mxu0 0.0
    %1517 = vmatpush1.msra.mxu0 0.0
    %1518 = vmatprep.subr.mxu0 0.0
    %1519 = vmatpush1.msra.mxu0 0.0
    %1520 = vmatprep.subr.mxu0 0.0
    %1521 = vmatpush1.msra.mxu0 0.0
    %1522 = vmatprep.subr.mxu0 0.0
    %1523 = vmatpush1.msra.mxu0 0.0
    %1524 = vmatprep.subr.mxu0 0.0
    %1525 = vmatpush1.msra.mxu0 0.0
    %1526 = vmatprep.subr.mxu0 0.0
    %1527 = vmatpush1.msra.mxu0 0.0
    %1528 = vmatprep.subr.mxu0 0.0
    %1529 = vmatpush1.msra.mxu0 0.0
    %1530 = vmatprep.subr.mxu0 0.0
    %1531 = vmatpush1.msra.mxu0 0.0
    %1532 = vmatprep.subr.mxu0 0.0
    %1533 = vmatpush1.msra.mxu0 0.0
    %1534 = vmatprep.subr.mxu0 0.0
    %1535 = vmatpush1.msra.mxu0 0.0
    %1536 = vmatprep.subr.mxu0 0.0
    %1537 = vmatpush1.msra.mxu0 0.0
    %1538 = vmatprep.subr.mxu0 0.0
    %1539 = vmatpush1.msra.mxu0 0.0
    %1540 = vmatprep.subr.mxu0 0.0
    %1541 = vmatpush1.msra.mxu0 0.0
    %1542 = vmatprep.subr.mxu0 0.0
    %1543 = vmatpush1.msra.mxu0 0.0
    %1544 = vmatprep.subr.mxu0 0.0
    %1545 = vmatpush1.msra.mxu0 0.0
    %1546 = vmatprep.subr.mxu0 0.0
    %1547 = vmatpush1.msra.mxu0 0.0
    %1548 = vmatprep.subr.mxu0 0.0
    %1549 = vmatpush1.msra.mxu0 0.0
    %1550 = vmatprep.subr.mxu0 0.0
    %1551 = vmatpush1.msra.mxu0 0.0
    %1552 = vmatprep.subr.mxu0 0.0
    %1553 = vmatpush1.msra.mxu0 0.0
    %1554 = vmatprep.subr.mxu0 0.0
    %1555 = vmatpush1.msra.mxu0 0.0
    %1556 = vmatprep.subr.mxu0 0.0
    %1557 = vmatpush1.msra.mxu0 0.0
    %1558 = vmatprep.subr.mxu0 0.0
    %1559 = vmatpush1.msra.mxu0 0.0
    %1560 = vmatprep.subr.mxu0 0.0
    %1561 = vmatpush1.msra.mxu0 0.0
    %1562 = vmatprep.subr.mxu0 0.0
    %1563 = vmatpush1.msra.mxu0 0.0
    %1564 = vmatprep.subr.mxu0 0.0
    %1565 = vmatpush1.msra.mxu0 0.0
    %1566 = vmatprep.subr.mxu0 0.0
    %1567 = vmatpush1.msra.mxu0 0.0
    %1568 = vmatprep.subr.mxu0 0.0
    %1569 = vmatpush1.msra.mxu0 0.0
    %1570 = vmatprep.subr.mxu0 0.0
    %1571 = vmatpush1.msra.mxu0 0.0
    %1572 = vmatprep.subr.mxu0 0.0
    %1573 = vmatpush1.msra.mxu0 0.0
    %1574 = vmatprep.mubr.f32.mxu0 0.0
    %1575 = vmatmul.mubr.f32.gmra.mrb[0].mxu0 %v98
    %v1576 = vpop.f32.mrb[0].mxu0
    %v1577 = vadd.f32 0.0, %v1576
    %v1578 = vpop.f32.mrb[0].mxu0
    %1579 = vmatprep.mubr.f32.mxu0 0.0
    %1580 = vmatmul.mubr.f32.gmra.mrb[0].mxu0 %v101
    %v1581 = vpop.f32.mrb[0].mxu0
    %v1582 = vadd.f32 0.0, %v1581
    %v1583 = vpop.f32.mrb[0].mxu0
    %1584 = vdwg.mxu0
    %s1585 = scalar_lea.vmem [#allocation2], 144
    %1586 = vst.msk [vmem:[%s1585] sm:$0xff] %vm181, %v1577
    %1587 = vst.msk [vmem:[%s1585 + $0x8] sm:$0xff] %vm181, %v1582
    %s1588 = scalar_lea.vmem %s0, 40
    %v1589 = vld [vmem:[%s1588] sm:$0xf]
    %v1591 = vsel %vm19, %v1589, 0
    %1593 = vmatprep.subr.mxu0 0.0
    %1594 = vmatpush1.msra.mxu0 %v25
    %1595 = vmatprep.subr.mxu0 0.0
    %1596 = vmatpush1.msra.mxu0 0.0
    %1597 = vmatprep.subr.mxu0 0.0
    %1598 = vmatpush1.msra.mxu0 0.0
    %1599 = vmatprep.subr.mxu0 0.0
    %1600 = vmatpush1.msra.mxu0 0.0
    %1601 = vmatprep.subr.mxu0 0.0
    %1602 = vmatpush1.msra.mxu0 0.0
    %1603 = vmatprep.subr.mxu0 0.0
    %1604 = vmatpush1.msra.mxu0 0.0
    %1605 = vmatprep.subr.mxu0 0.0
    %1606 = vmatpush1.msra.mxu0 0.0
    %1607 = vmatprep.subr.mxu0 0.0
    %1608 = vmatpush1.msra.mxu0 0.0
    %1609 = vmatprep.subr.mxu0 0.0
    %1610 = vmatpush1.msra.mxu0 0.0
    %1611 = vmatprep.subr.mxu0 0.0
    %1612 = vmatpush1.msra.mxu0 0.0
    %1613 = vmatprep.subr.mxu0 0.0
    %1614 = vmatpush1.msra.mxu0 0.0
    %1615 = vmatprep.subr.mxu0 0.0
    %1616 = vmatpush1.msra.mxu0 0.0
    %1617 = vmatprep.subr.mxu0 0.0
    %1618 = vmatpush1.msra.mxu0 0.0
    %1619 = vmatprep.subr.mxu0 0.0
    %1620 = vmatpush1.msra.mxu0 0.0
    %1621 = vmatprep.subr.mxu0 0.0
    %1622 = vmatpush1.msra.mxu0 0.0
    %1623 = vmatprep.subr.mxu0 0.0
    %1624 = vmatpush1.msra.mxu0 0.0
    %1625 = vmatprep.subr.mxu0 0.0
    %1626 = vmatpush1.msra.mxu0 0.0
    %1627 = vmatprep.subr.mxu0 0.0
    %1628 = vmatpush1.msra.mxu0 0.0
    %1629 = vmatprep.subr.mxu0 0.0
    %1630 = vmatpush1.msra.mxu0 0.0
    %1631 = vmatprep.subr.mxu0 0.0
    %1632 = vmatpush1.msra.mxu0 0.0
    %1633 = vmatprep.subr.mxu0 0.0
    %1634 = vmatpush1.msra.mxu0 0.0
    %1635 = vmatprep.subr.mxu0 0.0
    %1636 = vmatpush1.msra.mxu0 0.0
    %1637 = vmatprep.subr.mxu0 0.0
    %1638 = vmatpush1.msra.mxu0 0.0
    %1639 = vmatprep.subr.mxu0 0.0
    %1640 = vmatpush1.msra.mxu0 0.0
    %1641 = vmatprep.subr.mxu0 0.0
    %1642 = vmatpush1.msra.mxu0 0.0
    %1643 = vmatprep.subr.mxu0 0.0
    %1644 = vmatpush1.msra.mxu0 0.0
    %1645 = vmatprep.subr.mxu0 0.0
    %1646 = vmatpush1.msra.mxu0 0.0
    %1647 = vmatprep.subr.mxu0 0.0
    %1648 = vmatpush1.msra.mxu0 0.0
    %1649 = vmatprep.subr.mxu0 0.0
    %1650 = vmatpush1.msra.mxu0 0.0
    %1651 = vmatprep.subr.mxu0 0.0
    %1652 = vmatpush1.msra.mxu0 0.0
    %1653 = vmatprep.subr.mxu0 0.0
    %1654 = vmatpush1.msra.mxu0 0.0
    %1655 = vmatprep.subr.mxu0 0.0
    %1656 = vmatpush1.msra.mxu0 0.0
    %1657 = vmatprep.mubr.f32.mxu0 0.0
    %1658 = vmatmul.mubr.f32.gmra.mrb[0].mxu0 %v1591
    %v1659 = vpop.f32.mrb[0].mxu0
    %v1660 = vadd.f32 0.0, %v1659
    %v1661 = vpop.f32.mrb[0].mxu0
    %1662 = vdwg.mxu0
    %v1664 = vsel %vm23, %v1660, 0
    %1666 = vmatprep.subr.mxu0 0.0
    %1667 = vmatpush1.msra.mxu0 %v1664
    %1668 = vmatprep.subr.mxu0 0.0
    %1669 = vmatpush1.msra.mxu0 0.0
    %1670 = vmatprep.subr.mxu0 0.0
    %1671 = vmatpush1.msra.mxu0 0.0
    %1672 = vmatprep.subr.mxu0 0.0
    %1673 = vmatpush1.msra.mxu0 0.0
    %1674 = vmatprep.subr.mxu0 0.0
    %1675 = vmatpush1.msra.mxu0 0.0
    %1676 = vmatprep.subr.mxu0 0.0
    %1677 = vmatpush1.msra.mxu0 0.0
    %1678 = vmatprep.subr.mxu0 0.0
    %1679 = vmatpush1.msra.mxu0 0.0
    %1680 = vmatprep.subr.mxu0 0.0
    %1681 = vmatpush1.msra.mxu0 0.0
    %1682 = vmatprep.subr.mxu0 0.0
    %1683 = vmatpush1.msra.mxu0 0.0
    %1684 = vmatprep.subr.mxu0 0.0
    %1685 = vmatpush1.msra.mxu0 0.0
    %1686 = vmatprep.subr.mxu0 0.0
    %1687 = vmatpush1.msra.mxu0 0.0
    %1688 = vmatprep.subr.mxu0 0.0
    %1689 = vmatpush1.msra.mxu0 0.0
    %1690 = vmatprep.subr.mxu0 0.0
    %1691 = vmatpush1.msra.mxu0 0.0
    %1692 = vmatprep.subr.mxu0 0.0
    %1693 = vmatpush1.msra.mxu0 0.0
    %1694 = vmatprep.subr.mxu0 0.0
    %1695 = vmatpush1.msra.mxu0 0.0
    %1696 = vmatprep.subr.mxu0 0.0
    %1697 = vmatpush1.msra.mxu0 0.0
    %1698 = vmatprep.subr.mxu0 0.0
    %1699 = vmatpush1.msra.mxu0 0.0
    %1700 = vmatprep.subr.mxu0 0.0
    %1701 = vmatpush1.msra.mxu0 0.0
    %1702 = vmatprep.subr.mxu0 0.0
    %1703 = vmatpush1.msra.mxu0 0.0
    %1704 = vmatprep.subr.mxu0 0.0
    %1705 = vmatpush1.msra.mxu0 0.0
    %1706 = vmatprep.subr.mxu0 0.0
    %1707 = vmatpush1.msra.mxu0 0.0
    %1708 = vmatprep.subr.mxu0 0.0
    %1709 = vmatpush1.msra.mxu0 0.0
    %1710 = vmatprep.subr.mxu0 0.0
    %1711 = vmatpush1.msra.mxu0 0.0
    %1712 = vmatprep.subr.mxu0 0.0
    %1713 = vmatpush1.msra.mxu0 0.0
    %1714 = vmatprep.subr.mxu0 0.0
    %1715 = vmatpush1.msra.mxu0 0.0
    %1716 = vmatprep.subr.mxu0 0.0
    %1717 = vmatpush1.msra.mxu0 0.0
    %1718 = vmatprep.subr.mxu0 0.0
    %1719 = vmatpush1.msra.mxu0 0.0
    %1720 = vmatprep.subr.mxu0 0.0
    %1721 = vmatpush1.msra.mxu0 0.0
    %1722 = vmatprep.subr.mxu0 0.0
    %1723 = vmatpush1.msra.mxu0 0.0
    %1724 = vmatprep.subr.mxu0 0.0
    %1725 = vmatpush1.msra.mxu0 0.0
    %1726 = vmatprep.subr.mxu0 0.0
    %1727 = vmatpush1.msra.mxu0 0.0
    %1728 = vmatprep.subr.mxu0 0.0
    %1729 = vmatpush1.msra.mxu0 0.0
    %1730 = vmatprep.mubr.f32.mxu0 0.0
    %1731 = vmatmul.mubr.f32.gmra.mrb[0].mxu0 %v98
    %v1732 = vpop.f32.mrb[0].mxu0
    %v1733 = vadd.f32 0.0, %v1732
    %v1734 = vpop.f32.mrb[0].mxu0
    %1735 = vmatprep.mubr.f32.mxu0 0.0
    %1736 = vmatmul.mubr.f32.gmra.mrb[0].mxu0 %v101
    %v1737 = vpop.f32.mrb[0].mxu0
    %v1738 = vadd.f32 0.0, %v1737
    %v1739 = vpop.f32.mrb[0].mxu0
    %1740 = vdwg.mxu0
    %s1741 = scalar_lea.vmem [#allocation2], 160
    %1742 = vst.msk [vmem:[%s1741] sm:$0xff] %vm181, %v1733
    %1743 = vst.msk [vmem:[%s1741 + $0x8] sm:$0xff] %vm181, %v1738
    %s1744 = scalar_lea.vmem %s0, 44
    %v1745 = vld [vmem:[%s1744] sm:$0xf]
    %v1747 = vsel %vm19, %v1745, 0
    %1749 = vmatprep.subr.mxu0 0.0
    %1750 = vmatpush1.msra.mxu0 %v25
    %1751 = vmatprep.subr.mxu0 0.0
    %1752 = vmatpush1.msra.mxu0 0.0
    %1753 = vmatprep.subr.mxu0 0.0
    %1754 = vmatpush1.msra.mxu0 0.0
    %1755 = vmatprep.subr.mxu0 0.0
    %1756 = vmatpush1.msra.mxu0 0.0
    %1757 = vmatprep.subr.mxu0 0.0
    %1758 = vmatpush1.msra.mxu0 0.0
    %1759 = vmatprep.subr.mxu0 0.0
    %1760 = vmatpush1.msra.mxu0 0.0
    %1761 = vmatprep.subr.mxu0 0.0
    %1762 = vmatpush1.msra.mxu0 0.0
    %1763 = vmatprep.subr.mxu0 0.0
    %1764 = vmatpush1.msra.mxu0 0.0
    %1765 = vmatprep.subr.mxu0 0.0
    %1766 = vmatpush1.msra.mxu0 0.0
    %1767 = vmatprep.subr.mxu0 0.0
    %1768 = vmatpush1.msra.mxu0 0.0
    %1769 = vmatprep.subr.mxu0 0.0
    %1770 = vmatpush1.msra.mxu0 0.0
    %1771 = vmatprep.subr.mxu0 0.0
    %1772 = vmatpush1.msra.mxu0 0.0
    %1773 = vmatprep.subr.mxu0 0.0
    %1774 = vmatpush1.msra.mxu0 0.0
    %1775 = vmatprep.subr.mxu0 0.0
    %1776 = vmatpush1.msra.mxu0 0.0
    %1777 = vmatprep.subr.mxu0 0.0
    %1778 = vmatpush1.msra.mxu0 0.0
    %1779 = vmatprep.subr.mxu0 0.0
    %1780 = vmatpush1.msra.mxu0 0.0
    %1781 = vmatprep.subr.mxu0 0.0
    %1782 = vmatpush1.msra.mxu0 0.0
    %1783 = vmatprep.subr.mxu0 0.0
    %1784 = vmatpush1.msra.mxu0 0.0
    %1785 = vmatprep.subr.mxu0 0.0
    %1786 = vmatpush1.msra.mxu0 0.0
    %1787 = vmatprep.subr.mxu0 0.0
    %1788 = vmatpush1.msra.mxu0 0.0
    %1789 = vmatprep.subr.mxu0 0.0
    %1790 = vmatpush1.msra.mxu0 0.0
    %1791 = vmatprep.subr.mxu0 0.0
    %1792 = vmatpush1.msra.mxu0 0.0
    %1793 = vmatprep.subr.mxu0 0.0
    %1794 = vmatpush1.msra.mxu0 0.0
    %1795 = vmatprep.subr.mxu0 0.0
    %1796 = vmatpush1.msra.mxu0 0.0
    %1797 = vmatprep.subr.mxu0 0.0
    %1798 = vmatpush1.msra.mxu0 0.0
    %1799 = vmatprep.subr.mxu0 0.0
    %1800 = vmatpush1.msra.mxu0 0.0
    %1801 = vmatprep.subr.mxu0 0.0
    %1802 = vmatpush1.msra.mxu0 0.0
    %1803 = vmatprep.subr.mxu0 0.0
    %1804 = vmatpush1.msra.mxu0 0.0
    %1805 = vmatprep.subr.mxu0 0.0
    %1806 = vmatpush1.msra.mxu0 0.0
    %1807 = vmatprep.subr.mxu0 0.0
    %1808 = vmatpush1.msra.mxu0 0.0
    %1809 = vmatprep.subr.mxu0 0.0
    %1810 = vmatpush1.msra.mxu0 0.0
    %1811 = vmatprep.subr.mxu0 0.0
    %1812 = vmatpush1.msra.mxu0 0.0
    %1813 = vmatprep.mubr.f32.mxu0 0.0
    %1814 = vmatmul.mubr.f32.gmra.mrb[0].mxu0 %v1747
    %v1815 = vpop.f32.mrb[0].mxu0
    %v1816 = vadd.f32 0.0, %v1815
    %v1817 = vpop.f32.mrb[0].mxu0
    %1818 = vdwg.mxu0
    %v1820 = vsel %vm23, %v1816, 0
    %1822 = vmatprep.subr.mxu0 0.0
    %1823 = vmatpush1.msra.mxu0 %v1820
    %1824 = vmatprep.subr.mxu0 0.0
    %1825 = vmatpush1.msra.mxu0 0.0
    %1826 = vmatprep.subr.mxu0 0.0
    %1827 = vmatpush1.msra.mxu0 0.0
    %1828 = vmatprep.subr.mxu0 0.0
    %1829 = vmatpush1.msra.mxu0 0.0
    %1830 = vmatprep.subr.mxu0 0.0
    %1831 = vmatpush1.msra.mxu0 0.0
    %1832 = vmatprep.subr.mxu0 0.0
    %1833 = vmatpush1.msra.mxu0 0.0
    %1834 = vmatprep.subr.mxu0 0.0
    %1835 = vmatpush1.msra.mxu0 0.0
    %1836 = vmatprep.subr.mxu0 0.0
    %1837 = vmatpush1.msra.mxu0 0.0
    %1838 = vmatprep.subr.mxu0 0.0
    %1839 = vmatpush1.msra.mxu0 0.0
    %1840 = vmatprep.subr.mxu0 0.0
    %1841 = vmatpush1.msra.mxu0 0.0
    %1842 = vmatprep.subr.mxu0 0.0
    %1843 = vmatpush1.msra.mxu0 0.0
    %1844 = vmatprep.subr.mxu0 0.0
    %1845 = vmatpush1.msra.mxu0 0.0
    %1846 = vmatprep.subr.mxu0 0.0
    %1847 = vmatpush1.msra.mxu0 0.0
    %1848 = vmatprep.subr.mxu0 0.0
    %1849 = vmatpush1.msra.mxu0 0.0
    %1850 = vmatprep.subr.mxu0 0.0
    %1851 = vmatpush1.msra.mxu0 0.0
    %1852 = vmatprep.subr.mxu0 0.0
    %1853 = vmatpush1.msra.mxu0 0.0
    %1854 = vmatprep.subr.mxu0 0.0
    %1855 = vmatpush1.msra.mxu0 0.0
    %1856 = vmatprep.subr.mxu0 0.0
    %1857 = vmatpush1.msra.mxu0 0.0
    %1858 = vmatprep.subr.mxu0 0.0
    %1859 = vmatpush1.msra.mxu0 0.0
    %1860 = vmatprep.subr.mxu0 0.0
    %1861 = vmatpush1.msra.mxu0 0.0
    %1862 = vmatprep.subr.mxu0 0.0
    %1863 = vmatpush1.msra.mxu0 0.0
    %1864 = vmatprep.subr.mxu0 0.0
    %1865 = vmatpush1.msra.mxu0 0.0
    %1866 = vmatprep.subr.mxu0 0.0
    %1867 = vmatpush1.msra.mxu0 0.0
    %1868 = vmatprep.subr.mxu0 0.0
    %1869 = vmatpush1.msra.mxu0 0.0
    %1870 = vmatprep.subr.mxu0 0.0
    %1871 = vmatpush1.msra.mxu0 0.0
    %1872 = vmatprep.subr.mxu0 0.0
    %1873 = vmatpush1.msra.mxu0 0.0
    %1874 = vmatprep.subr.mxu0 0.0
    %1875 = vmatpush1.msra.mxu0 0.0
    %1876 = vmatprep.subr.mxu0 0.0
    %1877 = vmatpush1.msra.mxu0 0.0
    %1878 = vmatprep.subr.mxu0 0.0
    %1879 = vmatpush1.msra.mxu0 0.0
    %1880 = vmatprep.subr.mxu0 0.0
    %1881 = vmatpush1.msra.mxu0 0.0
    %1882 = vmatprep.subr.mxu0 0.0
    %1883 = vmatpush1.msra.mxu0 0.0
    %1884 = vmatprep.subr.mxu0 0.0
    %1885 = vmatpush1.msra.mxu0 0.0
    %1886 = vmatprep.mubr.f32.mxu0 0.0
    %1887 = vmatmul.mubr.f32.gmra.mrb[0].mxu0 %v98
    %v1888 = vpop.f32.mrb[0].mxu0
    %v1889 = vadd.f32 0.0, %v1888
    %v1890 = vpop.f32.mrb[0].mxu0
    %1891 = vmatprep.mubr.f32.mxu0 0.0
    %1892 = vmatmul.mubr.f32.gmra.mrb[0].mxu0 %v101
    %v1893 = vpop.f32.mrb[0].mxu0
    %v1894 = vadd.f32 0.0, %v1893
    %v1895 = vpop.f32.mrb[0].mxu0
    %1896 = vdwg.mxu0
    %s1897 = scalar_lea.vmem [#allocation2], 176
    %1898 = vst.msk [vmem:[%s1897] sm:$0xff] %vm181, %v1889
    %1899 = vst.msk [vmem:[%s1897 + $0x8] sm:$0xff] %vm181, %v1894
    %s1900 = scalar_lea.vmem %s0, 48
    %v1901 = vld [vmem:[%s1900] sm:$0xf]
    %v1903 = vsel %vm19, %v1901, 0
    %1905 = vmatprep.subr.mxu0 0.0
    %1906 = vmatpush1.msra.mxu0 %v25
    %1907 = vmatprep.subr.mxu0 0.0
    %1908 = vmatpush1.msra.mxu0 0.0
    %1909 = vmatprep.subr.mxu0 0.0
    %1910 = vmatpush1.msra.mxu0 0.0
    %1911 = vmatprep.subr.mxu0 0.0
    %1912 = vmatpush1.msra.mxu0 0.0
    %1913 = vmatprep.subr.mxu0 0.0
    %1914 = vmatpush1.msra.mxu0 0.0
    %1915 = vmatprep.subr.mxu0 0.0
    %1916 = vmatpush1.msra.mxu0 0.0
    %1917 = vmatprep.subr.mxu0 0.0
    %1918 = vmatpush1.msra.mxu0 0.0
    %1919 = vmatprep.subr.mxu0 0.0
    %1920 = vmatpush1.msra.mxu0 0.0
    %1921 = vmatprep.subr.mxu0 0.0
    %1922 = vmatpush1.msra.mxu0 0.0
    %1923 = vmatprep.subr.mxu0 0.0
    %1924 = vmatpush1.msra.mxu0 0.0
    %1925 = vmatprep.subr.mxu0 0.0
    %1926 = vmatpush1.msra.mxu0 0.0
    %1927 = vmatprep.subr.mxu0 0.0
    %1928 = vmatpush1.msra.mxu0 0.0
    %1929 = vmatprep.subr.mxu0 0.0
    %1930 = vmatpush1.msra.mxu0 0.0
    %1931 = vmatprep.subr.mxu0 0.0
    %1932 = vmatpush1.msra.mxu0 0.0
    %1933 = vmatprep.subr.mxu0 0.0
    %1934 = vmatpush1.msra.mxu0 0.0
    %1935 = vmatprep.subr.mxu0 0.0
    %1936 = vmatpush1.msra.mxu0 0.0
    %1937 = vmatprep.subr.mxu0 0.0
    %1938 = vmatpush1.msra.mxu0 0.0
    %1939 = vmatprep.subr.mxu0 0.0
    %1940 = vmatpush1.msra.mxu0 0.0
    %1941 = vmatprep.subr.mxu0 0.0
    %1942 = vmatpush1.msra.mxu0 0.0
    %1943 = vmatprep.subr.mxu0 0.0
    %1944 = vmatpush1.msra.mxu0 0.0
    %1945 = vmatprep.subr.mxu0 0.0
    %1946 = vmatpush1.msra.mxu0 0.0
    %1947 = vmatprep.subr.mxu0 0.0
    %1948 = vmatpush1.msra.mxu0 0.0
    %1949 = vmatprep.subr.mxu0 0.0
    %1950 = vmatpush1.msra.mxu0 0.0
    %1951 = vmatprep.subr.mxu0 0.0
    %1952 = vmatpush1.msra.mxu0 0.0
    %1953 = vmatprep.subr.mxu0 0.0
    %1954 = vmatpush1.msra.mxu0 0.0
    %1955 = vmatprep.subr.mxu0 0.0
    %1956 = vmatpush1.msra.mxu0 0.0
    %1957 = vmatprep.subr.mxu0 0.0
    %1958 = vmatpush1.msra.mxu0 0.0
    %1959 = vmatprep.subr.mxu0 0.0
    %1960 = vmatpush1.msra.mxu0 0.0
    %1961 = vmatprep.subr.mxu0 0.0
    %1962 = vmatpush1.msra.mxu0 0.0
    %1963 = vmatprep.subr.mxu0 0.0
    %1964 = vmatpush1.msra.mxu0 0.0
    %1965 = vmatprep.subr.mxu0 0.0
    %1966 = vmatpush1.msra.mxu0 0.0
    %1967 = vmatprep.subr.mxu0 0.0
    %1968 = vmatpush1.msra.mxu0 0.0
    %1969 = vmatprep.mubr.f32.mxu0 0.0
    %1970 = vmatmul.mubr.f32.gmra.mrb[0].mxu0 %v1903
    %v1971 = vpop.f32.mrb[0].mxu0
    %v1972 = vadd.f32 0.0, %v1971
    %v1973 = vpop.f32.mrb[0].mxu0
    %1974 = vdwg.mxu0
    %v1976 = vsel %vm23, %v1972, 0
    %1978 = vmatprep.subr.mxu0 0.0
    %1979 = vmatpush1.msra.mxu0 %v1976
    %1980 = vmatprep.subr.mxu0 0.0
    %1981 = vmatpush1.msra.mxu0 0.0
    %1982 = vmatprep.subr.mxu0 0.0
    %1983 = vmatpush1.msra.mxu0 0.0
    %1984 = vmatprep.subr.mxu0 0.0
    %1985 = vmatpush1.msra.mxu0 0.0
    %1986 = vmatprep.subr.mxu0 0.0
    %1987 = vmatpush1.msra.mxu0 0.0
    %1988 = vmatprep.subr.mxu0 0.0
    %1989 = vmatpush1.msra.mxu0 0.0
    %1990 = vmatprep.subr.mxu0 0.0
    %1991 = vmatpush1.msra.mxu0 0.0
    %1992 = vmatprep.subr.mxu0 0.0
    %1993 = vmatpush1.msra.mxu0 0.0
    %1994 = vmatprep.subr.mxu0 0.0
    %1995 = vmatpush1.msra.mxu0 0.0
    %1996 = vmatprep.subr.mxu0 0.0
    %1997 = vmatpush1.msra.mxu0 0.0
    %1998 = vmatprep.subr.mxu0 0.0
    %1999 = vmatpush1.msra.mxu0 0.0
    %2000 = vmatprep.subr.mxu0 0.0
    %2001 = vmatpush1.msra.mxu0 0.0
    %2002 = vmatprep.subr.mxu0 0.0
    %2003 = vmatpush1.msra.mxu0 0.0
    %2004 = vmatprep.subr.mxu0 0.0
    %2005 = vmatpush1.msra.mxu0 0.0
    %2006 = vmatprep.subr.mxu0 0.0
    %2007 = vmatpush1.msra.mxu0 0.0
    %2008 = vmatprep.subr.mxu0 0.0
    %2009 = vmatpush1.msra.mxu0 0.0
    %2010 = vmatprep.subr.mxu0 0.0
    %2011 = vmatpush1.msra.mxu0 0.0
    %2012 = vmatprep.subr.mxu0 0.0
    %2013 = vmatpush1.msra.mxu0 0.0
    %2014 = vmatprep.subr.mxu0 0.0
    %2015 = vmatpush1.msra.mxu0 0.0
    %2016 = vmatprep.subr.mxu0 0.0
    %2017 = vmatpush1.msra.mxu0 0.0
    %2018 = vmatprep.subr.mxu0 0.0
    %2019 = vmatpush1.msra.mxu0 0.0
    %2020 = vmatprep.subr.mxu0 0.0
    %2021 = vmatpush1.msra.mxu0 0.0
    %2022 = vmatprep.subr.mxu0 0.0
    %2023 = vmatpush1.msra.mxu0 0.0
    %2024 = vmatprep.subr.mxu0 0.0
    %2025 = vmatpush1.msra.mxu0 0.0
    %2026 = vmatprep.subr.mxu0 0.0
    %2027 = vmatpush1.msra.mxu0 0.0
    %2028 = vmatprep.subr.mxu0 0.0
    %2029 = vmatpush1.msra.mxu0 0.0
    %2030 = vmatprep.subr.mxu0 0.0
    %2031 = vmatpush1.msra.mxu0 0.0
    %2032 = vmatprep.subr.mxu0 0.0
    %2033 = vmatpush1.msra.mxu0 0.0
    %2034 = vmatprep.subr.mxu0 0.0
    %2035 = vmatpush1.msra.mxu0 0.0
    %2036 = vmatprep.subr.mxu0 0.0
    %2037 = vmatpush1.msra.mxu0 0.0
    %2038 = vmatprep.subr.mxu0 0.0
    %2039 = vmatpush1.msra.mxu0 0.0
    %2040 = vmatprep.subr.mxu0 0.0
    %2041 = vmatpush1.msra.mxu0 0.0
    %2042 = vmatprep.mubr.f32.mxu0 0.0
    %2043 = vmatmul.mubr.f32.gmra.mrb[0].mxu0 %v98
    %v2044 = vpop.f32.mrb[0].mxu0
    %v2045 = vadd.f32 0.0, %v2044
    %v2046 = vpop.f32.mrb[0].mxu0
    %2047 = vmatprep.mubr.f32.mxu0 0.0
    %2048 = vmatmul.mubr.f32.gmra.mrb[0].mxu0 %v101
    %v2049 = vpop.f32.mrb[0].mxu0
    %v2050 = vadd.f32 0.0, %v2049
    %v2051 = vpop.f32.mrb[0].mxu0
    %2052 = vdwg.mxu0
    %s2053 = scalar_lea.vmem [#allocation2], 192
    %2054 = vst.msk [vmem:[%s2053] sm:$0xff] %vm181, %v2045
    %2055 = vst.msk [vmem:[%s2053 + $0x8] sm:$0xff] %vm181, %v2050
    %s2056 = scalar_lea.vmem %s0, 52
    %v2057 = vld [vmem:[%s2056] sm:$0xf]
    %v2059 = vsel %vm19, %v2057, 0
    %2061 = vmatprep.subr.mxu0 0.0
    %2062 = vmatpush1.msra.mxu0 %v25
    %2063 = vmatprep.subr.mxu0 0.0
    %2064 = vmatpush1.msra.mxu0 0.0
    %2065 = vmatprep.subr.mxu0 0.0
    %2066 = vmatpush1.msra.mxu0 0.0
    %2067 = vmatprep.subr.mxu0 0.0
    %2068 = vmatpush1.msra.mxu0 0.0
    %2069 = vmatprep.subr.mxu0 0.0
    %2070 = vmatpush1.msra.mxu0 0.0
    %2071 = vmatprep.subr.mxu0 0.0
    %2072 = vmatpush1.msra.mxu0 0.0
    %2073 = vmatprep.subr.mxu0 0.0
    %2074 = vmatpush1.msra.mxu0 0.0
    %2075 = vmatprep.subr.mxu0 0.0
    %2076 = vmatpush1.msra.mxu0 0.0
    %2077 = vmatprep.subr.mxu0 0.0
    %2078 = vmatpush1.msra.mxu0 0.0
    %2079 = vmatprep.subr.mxu0 0.0
    %2080 = vmatpush1.msra.mxu0 0.0
    %2081 = vmatprep.subr.mxu0 0.0
    %2082 = vmatpush1.msra.mxu0 0.0
    %2083 = vmatprep.subr.mxu0 0.0
    %2084 = vmatpush1.msra.mxu0 0.0
    %2085 = vmatprep.subr.mxu0 0.0
    %2086 = vmatpush1.msra.mxu0 0.0
    %2087 = vmatprep.subr.mxu0 0.0
    %2088 = vmatpush1.msra.mxu0 0.0
    %2089 = vmatprep.subr.mxu0 0.0
    %2090 = vmatpush1.msra.mxu0 0.0
    %2091 = vmatprep.subr.mxu0 0.0
    %2092 = vmatpush1.msra.mxu0 0.0
    %2093 = vmatprep.subr.mxu0 0.0
    %2094 = vmatpush1.msra.mxu0 0.0
    %2095 = vmatprep.subr.mxu0 0.0
    %2096 = vmatpush1.msra.mxu0 0.0
    %2097 = vmatprep.subr.mxu0 0.0
    %2098 = vmatpush1.msra.mxu0 0.0
    %2099 = vmatprep.subr.mxu0 0.0
    %2100 = vmatpush1.msra.mxu0 0.0
    %2101 = vmatprep.subr.mxu0 0.0
    %2102 = vmatpush1.msra.mxu0 0.0
    %2103 = vmatprep.subr.mxu0 0.0
    %2104 = vmatpush1.msra.mxu0 0.0
    %2105 = vmatprep.subr.mxu0 0.0
    %2106 = vmatpush1.msra.mxu0 0.0
    %2107 = vmatprep.subr.mxu0 0.0
    %2108 = vmatpush1.msra.mxu0 0.0
    %2109 = vmatprep.subr.mxu0 0.0
    %2110 = vmatpush1.msra.mxu0 0.0
    %2111 = vmatprep.subr.mxu0 0.0
    %2112 = vmatpush1.msra.mxu0 0.0
    %2113 = vmatprep.subr.mxu0 0.0
    %2114 = vmatpush1.msra.mxu0 0.0
    %2115 = vmatprep.subr.mxu0 0.0
    %2116 = vmatpush1.msra.mxu0 0.0
    %2117 = vmatprep.subr.mxu0 0.0
    %2118 = vmatpush1.msra.mxu0 0.0
    %2119 = vmatprep.subr.mxu0 0.0
    %2120 = vmatpush1.msra.mxu0 0.0
    %2121 = vmatprep.subr.mxu0 0.0
    %2122 = vmatpush1.msra.mxu0 0.0
    %2123 = vmatprep.subr.mxu0 0.0
    %2124 = vmatpush1.msra.mxu0 0.0
    %2125 = vmatprep.mubr.f32.mxu0 0.0
    %2126 = vmatmul.mubr.f32.gmra.mrb[0].mxu0 %v2059
    %v2127 = vpop.f32.mrb[0].mxu0
    %v2128 = vadd.f32 0.0, %v2127
    %v2129 = vpop.f32.mrb[0].mxu0
    %2130 = vdwg.mxu0
    %v2132 = vsel %vm23, %v2128, 0
    %2134 = vmatprep.subr.mxu0 0.0
    %2135 = vmatpush1.msra.mxu0 %v2132
    %2136 = vmatprep.subr.mxu0 0.0
    %2137 = vmatpush1.msra.mxu0 0.0
    %2138 = vmatprep.subr.mxu0 0.0
    %2139 = vmatpush1.msra.mxu0 0.0
    %2140 = vmatprep.subr.mxu0 0.0
    %2141 = vmatpush1.msra.mxu0 0.0
    %2142 = vmatprep.subr.mxu0 0.0
    %2143 = vmatpush1.msra.mxu0 0.0
    %2144 = vmatprep.subr.mxu0 0.0
    %2145 = vmatpush1.msra.mxu0 0.0
    %2146 = vmatprep.subr.mxu0 0.0
    %2147 = vmatpush1.msra.mxu0 0.0
    %2148 = vmatprep.subr.mxu0 0.0
    %2149 = vmatpush1.msra.mxu0 0.0
    %2150 = vmatprep.subr.mxu0 0.0
    %2151 = vmatpush1.msra.mxu0 0.0
    %2152 = vmatprep.subr.mxu0 0.0
    %2153 = vmatpush1.msra.mxu0 0.0
    %2154 = vmatprep.subr.mxu0 0.0
    %2155 = vmatpush1.msra.mxu0 0.0
    %2156 = vmatprep.subr.mxu0 0.0
    %2157 = vmatpush1.msra.mxu0 0.0
    %2158 = vmatprep.subr.mxu0 0.0
    %2159 = vmatpush1.msra.mxu0 0.0
    %2160 = vmatprep.subr.mxu0 0.0
    %2161 = vmatpush1.msra.mxu0 0.0
    %2162 = vmatprep.subr.mxu0 0.0
    %2163 = vmatpush1.msra.mxu0 0.0
    %2164 = vmatprep.subr.mxu0 0.0
    %2165 = vmatpush1.msra.mxu0 0.0
    %2166 = vmatprep.subr.mxu0 0.0
    %2167 = vmatpush1.msra.mxu0 0.0
    %2168 = vmatprep.subr.mxu0 0.0
    %2169 = vmatpush1.msra.mxu0 0.0
    %2170 = vmatprep.subr.mxu0 0.0
    %2171 = vmatpush1.msra.mxu0 0.0
    %2172 = vmatprep.subr.mxu0 0.0
    %2173 = vmatpush1.msra.mxu0 0.0
    %2174 = vmatprep.subr.mxu0 0.0
    %2175 = vmatpush1.msra.mxu0 0.0
    %2176 = vmatprep.subr.mxu0 0.0
    %2177 = vmatpush1.msra.mxu0 0.0
    %2178 = vmatprep.subr.mxu0 0.0
    %2179 = vmatpush1.msra.mxu0 0.0
    %2180 = vmatprep.subr.mxu0 0.0
    %2181 = vmatpush1.msra.mxu0 0.0
    %2182 = vmatprep.subr.mxu0 0.0
    %2183 = vmatpush1.msra.mxu0 0.0
    %2184 = vmatprep.subr.mxu0 0.0
    %2185 = vmatpush1.msra.mxu0 0.0
    %2186 = vmatprep.subr.mxu0 0.0
    %2187 = vmatpush1.msra.mxu0 0.0
    %2188 = vmatprep.subr.mxu0 0.0
    %2189 = vmatpush1.msra.mxu0 0.0
    %2190 = vmatprep.subr.mxu0 0.0
    %2191 = vmatpush1.msra.mxu0 0.0
    %2192 = vmatprep.subr.mxu0 0.0
    %2193 = vmatpush1.msra.mxu0 0.0
    %2194 = vmatprep.subr.mxu0 0.0
    %2195 = vmatpush1.msra.mxu0 0.0
    %2196 = vmatprep.subr.mxu0 0.0
    %2197 = vmatpush1.msra.mxu0 0.0
    %2198 = vmatprep.mubr.f32.mxu0 0.0
    %2199 = vmatmul.mubr.f32.gmra.mrb[0].mxu0 %v98
    %v2200 = vpop.f32.mrb[0].mxu0
    %v2201 = vadd.f32 0.0, %v2200
    %v2202 = vpop.f32.mrb[0].mxu0
    %2203 = vmatprep.mubr.f32.mxu0 0.0
    %2204 = vmatmul.mubr.f32.gmra.mrb[0].mxu0 %v101
    %v2205 = vpop.f32.mrb[0].mxu0
    %v2206 = vadd.f32 0.0, %v2205
    %v2207 = vpop.f32.mrb[0].mxu0
    %2208 = vdwg.mxu0
    %s2209 = scalar_lea.vmem [#allocation2], 208
    %2210 = vst.msk [vmem:[%s2209] sm:$0xff] %vm181, %v2201
    %2211 = vst.msk [vmem:[%s2209 + $0x8] sm:$0xff] %vm181, %v2206
    %s2212 = scalar_lea.vmem %s0, 56
    %v2213 = vld [vmem:[%s2212] sm:$0xf]
    %v2215 = vsel %vm19, %v2213, 0
    %2217 = vmatprep.subr.mxu0 0.0
    %2218 = vmatpush1.msra.mxu0 %v25
    %2219 = vmatprep.subr.mxu0 0.0
    %2220 = vmatpush1.msra.mxu0 0.0
    %2221 = vmatprep.subr.mxu0 0.0
    %2222 = vmatpush1.msra.mxu0 0.0
    %2223 = vmatprep.subr.mxu0 0.0
    %2224 = vmatpush1.msra.mxu0 0.0
    %2225 = vmatprep.subr.mxu0 0.0
    %2226 = vmatpush1.msra.mxu0 0.0
    %2227 = vmatprep.subr.mxu0 0.0
    %2228 = vmatpush1.msra.mxu0 0.0
    %2229 = vmatprep.subr.mxu0 0.0
    %2230 = vmatpush1.msra.mxu0 0.0
    %2231 = vmatprep.subr.mxu0 0.0
    %2232 = vmatpush1.msra.mxu0 0.0
    %2233 = vmatprep.subr.mxu0 0.0
    %2234 = vmatpush1.msra.mxu0 0.0
    %2235 = vmatprep.subr.mxu0 0.0
    %2236 = vmatpush1.msra.mxu0 0.0
    %2237 = vmatprep.subr.mxu0 0.0
    %2238 = vmatpush1.msra.mxu0 0.0
    %2239 = vmatprep.subr.mxu0 0.0
    %2240 = vmatpush1.msra.mxu0 0.0
    %2241 = vmatprep.subr.mxu0 0.0
    %2242 = vmatpush1.msra.mxu0 0.0
    %2243 = vmatprep.subr.mxu0 0.0
    %2244 = vmatpush1.msra.mxu0 0.0
    %2245 = vmatprep.subr.mxu0 0.0
    %2246 = vmatpush1.msra.mxu0 0.0
    %2247 = vmatprep.subr.mxu0 0.0
    %2248 = vmatpush1.msra.mxu0 0.0
    %2249 = vmatprep.subr.mxu0 0.0
    %2250 = vmatpush1.msra.mxu0 0.0
    %2251 = vmatprep.subr.mxu0 0.0
    %2252 = vmatpush1.msra.mxu0 0.0
    %2253 = vmatprep.subr.mxu0 0.0
    %2254 = vmatpush1.msra.mxu0 0.0
    %2255 = vmatprep.subr.mxu0 0.0
    %2256 = vmatpush1.msra.mxu0 0.0
    %2257 = vmatprep.subr.mxu0 0.0
    %2258 = vmatpush1.msra.mxu0 0.0
    %2259 = vmatprep.subr.mxu0 0.0
    %2260 = vmatpush1.msra.mxu0 0.0
    %2261 = vmatprep.subr.mxu0 0.0
    %2262 = vmatpush1.msra.mxu0 0.0
    %2263 = vmatprep.subr.mxu0 0.0
    %2264 = vmatpush1.msra.mxu0 0.0
    %2265 = vmatprep.subr.mxu0 0.0
    %2266 = vmatpush1.msra.mxu0 0.0
    %2267 = vmatprep.subr.mxu0 0.0
    %2268 = vmatpush1.msra.mxu0 0.0
    %2269 = vmatprep.subr.mxu0 0.0
    %2270 = vmatpush1.msra.mxu0 0.0
    %2271 = vmatprep.subr.mxu0 0.0
    %2272 = vmatpush1.msra.mxu0 0.0
    %2273 = vmatprep.subr.mxu0 0.0
    %2274 = vmatpush1.msra.mxu0 0.0
    %2275 = vmatprep.subr.mxu0 0.0
    %2276 = vmatpush1.msra.mxu0 0.0
    %2277 = vmatprep.subr.mxu0 0.0
    %2278 = vmatpush1.msra.mxu0 0.0
    %2279 = vmatprep.subr.mxu0 0.0
    %2280 = vmatpush1.msra.mxu0 0.0
    %2281 = vmatprep.mubr.f32.mxu0 0.0
    %2282 = vmatmul.mubr.f32.gmra.mrb[0].mxu0 %v2215
    %v2283 = vpop.f32.mrb[0].mxu0
    %v2284 = vadd.f32 0.0, %v2283
    %v2285 = vpop.f32.mrb[0].mxu0
    %2286 = vdwg.mxu0
    %v2288 = vsel %vm23, %v2284, 0
    %2290 = vmatprep.subr.mxu0 0.0
    %2291 = vmatpush1.msra.mxu0 %v2288
    %2292 = vmatprep.subr.mxu0 0.0
    %2293 = vmatpush1.msra.mxu0 0.0
    %2294 = vmatprep.subr.mxu0 0.0
    %2295 = vmatpush1.msra.mxu0 0.0
    %2296 = vmatprep.subr.mxu0 0.0
    %2297 = vmatpush1.msra.mxu0 0.0
    %2298 = vmatprep.subr.mxu0 0.0
    %2299 = vmatpush1.msra.mxu0 0.0
    %2300 = vmatprep.subr.mxu0 0.0
    %2301 = vmatpush1.msra.mxu0 0.0
    %2302 = vmatprep.subr.mxu0 0.0
    %2303 = vmatpush1.msra.mxu0 0.0
    %2304 = vmatprep.subr.mxu0 0.0
    %2305 = vmatpush1.msra.mxu0 0.0
    %2306 = vmatprep.subr.mxu0 0.0
    %2307 = vmatpush1.msra.mxu0 0.0
    %2308 = vmatprep.subr.mxu0 0.0
    %2309 = vmatpush1.msra.mxu0 0.0
    %2310 = vmatprep.subr.mxu0 0.0
    %2311 = vmatpush1.msra.mxu0 0.0
    %2312 = vmatprep.subr.mxu0 0.0
    %2313 = vmatpush1.msra.mxu0 0.0
    %2314 = vmatprep.subr.mxu0 0.0
    %2315 = vmatpush1.msra.mxu0 0.0
    %2316 = vmatprep.subr.mxu0 0.0
    %2317 = vmatpush1.msra.mxu0 0.0
    %2318 = vmatprep.subr.mxu0 0.0
    %2319 = vmatpush1.msra.mxu0 0.0
    %2320 = vmatprep.subr.mxu0 0.0
    %2321 = vmatpush1.msra.mxu0 0.0
    %2322 = vmatprep.subr.mxu0 0.0
    %2323 = vmatpush1.msra.mxu0 0.0
    %2324 = vmatprep.subr.mxu0 0.0
    %2325 = vmatpush1.msra.mxu0 0.0
    %2326 = vmatprep.subr.mxu0 0.0
    %2327 = vmatpush1.msra.mxu0 0.0
    %2328 = vmatprep.subr.mxu0 0.0
    %2329 = vmatpush1.msra.mxu0 0.0
    %2330 = vmatprep.subr.mxu0 0.0
    %2331 = vmatpush1.msra.mxu0 0.0
    %2332 = vmatprep.subr.mxu0 0.0
    %2333 = vmatpush1.msra.mxu0 0.0
    %2334 = vmatprep.subr.mxu0 0.0
    %2335 = vmatpush1.msra.mxu0 0.0
    %2336 = vmatprep.subr.mxu0 0.0
    %2337 = vmatpush1.msra.mxu0 0.0
    %2338 = vmatprep.subr.mxu0 0.0
    %2339 = vmatpush1.msra.mxu0 0.0
    %2340 = vmatprep.subr.mxu0 0.0
    %2341 = vmatpush1.msra.mxu0 0.0
    %2342 = vmatprep.subr.mxu0 0.0
    %2343 = vmatpush1.msra.mxu0 0.0
    %2344 = vmatprep.subr.mxu0 0.0
    %2345 = vmatpush1.msra.mxu0 0.0
    %2346 = vmatprep.subr.mxu0 0.0
    %2347 = vmatpush1.msra.mxu0 0.0
    %2348 = vmatprep.subr.mxu0 0.0
    %2349 = vmatpush1.msra.mxu0 0.0
    %2350 = vmatprep.subr.mxu0 0.0
    %2351 = vmatpush1.msra.mxu0 0.0
    %2352 = vmatprep.subr.mxu0 0.0
    %2353 = vmatpush1.msra.mxu0 0.0
    %2354 = vmatprep.mubr.f32.mxu0 0.0
    %2355 = vmatmul.mubr.f32.gmra.mrb[0].mxu0 %v98
    %v2356 = vpop.f32.mrb[0].mxu0
    %v2357 = vadd.f32 0.0, %v2356
    %v2358 = vpop.f32.mrb[0].mxu0
    %2359 = vmatprep.mubr.f32.mxu0 0.0
    %2360 = vmatmul.mubr.f32.gmra.mrb[0].mxu0 %v101
    %v2361 = vpop.f32.mrb[0].mxu0
    %v2362 = vadd.f32 0.0, %v2361
    %v2363 = vpop.f32.mrb[0].mxu0
    %2364 = vdwg.mxu0
    %s2365 = scalar_lea.vmem [#allocation2], 224
    %2366 = vst.msk [vmem:[%s2365] sm:$0xff] %vm181, %v2357
    %2367 = vst.msk [vmem:[%s2365 + $0x8] sm:$0xff] %vm181, %v2362
    %s2368 = scalar_lea.vmem %s0, 60
    %v2369 = vld [vmem:[%s2368] sm:$0xf]
    %v2371 = vsel %vm19, %v2369, 0
    %2373 = vmatprep.subr.mxu0 0.0
    %2374 = vmatpush1.msra.mxu0 %v25
    %2375 = vmatprep.subr.mxu0 0.0
    %2376 = vmatpush1.msra.mxu0 0.0
    %2377 = vmatprep.subr.mxu0 0.0
    %2378 = vmatpush1.msra.mxu0 0.0
    %2379 = vmatprep.subr.mxu0 0.0
    %2380 = vmatpush1.msra.mxu0 0.0
    %2381 = vmatprep.subr.mxu0 0.0
    %2382 = vmatpush1.msra.mxu0 0.0
    %2383 = vmatprep.subr.mxu0 0.0
    %2384 = vmatpush1.msra.mxu0 0.0
    %2385 = vmatprep.subr.mxu0 0.0
    %2386 = vmatpush1.msra.mxu0 0.0
    %2387 = vmatprep.subr.mxu0 0.0
    %2388 = vmatpush1.msra.mxu0 0.0
    %2389 = vmatprep.subr.mxu0 0.0
    %2390 = vmatpush1.msra.mxu0 0.0
    %2391 = vmatprep.subr.mxu0 0.0
    %2392 = vmatpush1.msra.mxu0 0.0
    %2393 = vmatprep.subr.mxu0 0.0
    %2394 = vmatpush1.msra.mxu0 0.0
    %2395 = vmatprep.subr.mxu0 0.0
    %2396 = vmatpush1.msra.mxu0 0.0
    %2397 = vmatprep.subr.mxu0 0.0
    %2398 = vmatpush1.msra.mxu0 0.0
    %2399 = vmatprep.subr.mxu0 0.0
    %2400 = vmatpush1.msra.mxu0 0.0
    %2401 = vmatprep.subr.mxu0 0.0
    %2402 = vmatpush1.msra.mxu0 0.0
    %2403 = vmatprep.subr.mxu0 0.0
    %2404 = vmatpush1.msra.mxu0 0.0
    %2405 = vmatprep.subr.mxu0 0.0
    %2406 = vmatpush1.msra.mxu0 0.0
    %2407 = vmatprep.subr.mxu0 0.0
    %2408 = vmatpush1.msra.mxu0 0.0
    %2409 = vmatprep.subr.mxu0 0.0
    %2410 = vmatpush1.msra.mxu0 0.0
    %2411 = vmatprep.subr.mxu0 0.0
    %2412 = vmatpush1.msra.mxu0 0.0
    %2413 = vmatprep.subr.mxu0 0.0
    %2414 = vmatpush1.msra.mxu0 0.0
    %2415 = vmatprep.subr.mxu0 0.0
    %2416 = vmatpush1.msra.mxu0 0.0
    %2417 = vmatprep.subr.mxu0 0.0
    %2418 = vmatpush1.msra.mxu0 0.0
    %2419 = vmatprep.subr.mxu0 0.0
    %2420 = vmatpush1.msra.mxu0 0.0
    %2421 = vmatprep.subr.mxu0 0.0
    %2422 = vmatpush1.msra.mxu0 0.0
    %2423 = vmatprep.subr.mxu0 0.0
    %2424 = vmatpush1.msra.mxu0 0.0
    %2425 = vmatprep.subr.mxu0 0.0
    %2426 = vmatpush1.msra.mxu0 0.0
    %2427 = vmatprep.subr.mxu0 0.0
    %2428 = vmatpush1.msra.mxu0 0.0
    %2429 = vmatprep.subr.mxu0 0.0
    %2430 = vmatpush1.msra.mxu0 0.0
    %2431 = vmatprep.subr.mxu0 0.0
    %2432 = vmatpush1.msra.mxu0 0.0
    %2433 = vmatprep.subr.mxu0 0.0
    %2434 = vmatpush1.msra.mxu0 0.0
    %2435 = vmatprep.subr.mxu0 0.0
    %2436 = vmatpush1.msra.mxu0 0.0
    %2437 = vmatprep.mubr.f32.mxu0 0.0
    %2438 = vmatmul.mubr.f32.gmra.mrb[0].mxu0 %v2371
    %v2439 = vpop.f32.mrb[0].mxu0
    %v2440 = vadd.f32 0.0, %v2439
    %v2441 = vpop.f32.mrb[0].mxu0
    %2442 = vdwg.mxu0
    %v2444 = vsel %vm23, %v2440, 0
    %2446 = vmatprep.subr.mxu0 0.0
    %2447 = vmatpush1.msra.mxu0 %v2444
    %2448 = vmatprep.subr.mxu0 0.0
    %2449 = vmatpush1.msra.mxu0 0.0
    %2450 = vmatprep.subr.mxu0 0.0
    %2451 = vmatpush1.msra.mxu0 0.0
    %2452 = vmatprep.subr.mxu0 0.0
    %2453 = vmatpush1.msra.mxu0 0.0
    %2454 = vmatprep.subr.mxu0 0.0
    %2455 = vmatpush1.msra.mxu0 0.0
    %2456 = vmatprep.subr.mxu0 0.0
    %2457 = vmatpush1.msra.mxu0 0.0
    %2458 = vmatprep.subr.mxu0 0.0
    %2459 = vmatpush1.msra.mxu0 0.0
    %2460 = vmatprep.subr.mxu0 0.0
    %2461 = vmatpush1.msra.mxu0 0.0
    %2462 = vmatprep.subr.mxu0 0.0
    %2463 = vmatpush1.msra.mxu0 0.0
    %2464 = vmatprep.subr.mxu0 0.0
    %2465 = vmatpush1.msra.mxu0 0.0
    %2466 = vmatprep.subr.mxu0 0.0
    %2467 = vmatpush1.msra.mxu0 0.0
    %2468 = vmatprep.subr.mxu0 0.0
    %2469 = vmatpush1.msra.mxu0 0.0
    %2470 = vmatprep.subr.mxu0 0.0
    %2471 = vmatpush1.msra.mxu0 0.0
    %2472 = vmatprep.subr.mxu0 0.0
    %2473 = vmatpush1.msra.mxu0 0.0
    %2474 = vmatprep.subr.mxu0 0.0
    %2475 = vmatpush1.msra.mxu0 0.0
    %2476 = vmatprep.subr.mxu0 0.0
    %2477 = vmatpush1.msra.mxu0 0.0
    %2478 = vmatprep.subr.mxu0 0.0
    %2479 = vmatpush1.msra.mxu0 0.0
    %2480 = vmatprep.subr.mxu0 0.0
    %2481 = vmatpush1.msra.mxu0 0.0
    %2482 = vmatprep.subr.mxu0 0.0
    %2483 = vmatpush1.msra.mxu0 0.0
    %2484 = vmatprep.subr.mxu0 0.0
    %2485 = vmatpush1.msra.mxu0 0.0
    %2486 = vmatprep.subr.mxu0 0.0
    %2487 = vmatpush1.msra.mxu0 0.0
    %2488 = vmatprep.subr.mxu0 0.0
    %2489 = vmatpush1.msra.mxu0 0.0
    %2490 = vmatprep.subr.mxu0 0.0
    %2491 = vmatpush1.msra.mxu0 0.0
    %2492 = vmatprep.subr.mxu0 0.0
    %2493 = vmatpush1.msra.mxu0 0.0
    %2494 = vmatprep.subr.mxu0 0.0
    %2495 = vmatpush1.msra.mxu0 0.0
    %2496 = vmatprep.subr.mxu0 0.0
    %2497 = vmatpush1.msra.mxu0 0.0
    %2498 = vmatprep.subr.mxu0 0.0
    %2499 = vmatpush1.msra.mxu0 0.0
    %2500 = vmatprep.subr.mxu0 0.0
    %2501 = vmatpush1.msra.mxu0 0.0
    %2502 = vmatprep.subr.mxu0 0.0
    %2503 = vmatpush1.msra.mxu0 0.0
    %2504 = vmatprep.subr.mxu0 0.0
    %2505 = vmatpush1.msra.mxu0 0.0
    %2506 = vmatprep.subr.mxu0 0.0
    %2507 = vmatpush1.msra.mxu0 0.0
    %2508 = vmatprep.subr.mxu0 0.0
    %2509 = vmatpush1.msra.mxu0 0.0
    %2510 = vmatprep.mubr.f32.mxu0 0.0
    %2511 = vmatmul.mubr.f32.gmra.mrb[0].mxu0 %v98
    %v2512 = vpop.f32.mrb[0].mxu0
    %v2513 = vadd.f32 0.0, %v2512
    %v2514 = vpop.f32.mrb[0].mxu0
    %2515 = vmatprep.mubr.f32.mxu0 0.0
    %2516 = vmatmul.mubr.f32.gmra.mrb[0].mxu0 %v101
    %v2517 = vpop.f32.mrb[0].mxu0
    %v2518 = vadd.f32 0.0, %v2517
    %v2519 = vpop.f32.mrb[0].mxu0
    %2520 = vdwg.mxu0
    %s2521 = scalar_lea.vmem [#allocation2], 240
    %2522 = vst.msk [vmem:[%s2521] sm:$0xff] %vm181, %v2513
    %2523 = vst.msk [vmem:[%s2521 + $0x8] sm:$0xff] %vm181, %v2518
    // Predicated region
    $region14: #{segmenter_forward.3} parent=1 // pred_check
      _
    $region15: #{segmenter_forward.3} parent=1 // pred_check_branch
      %2525 = sbr.rel (0) target = $region17
    $region16: #{segmenter_forward.3} parent=1 // pred_region
      %s2527 = ssub.s32 4096, 4096
      %2528 = vsyncadd [#allocation3], %s2527
      %s2529 = sshll.u32 [#allocation2], 4
      %s2530 = int_to_ptr.vmem [resolvable:$true] %s2529
      %2535 = dma.vmem_to_hbm [thread:$0]  %s2530, 4096, %s3, [#allocation3], 128, 128, 8
    $region17: #{segmenter_forward.3} parent=1 // pred_fallthru
      _
    // Predicated region
    $region18: #{segmenter_forward.3} parent=1 // pred_check
      _
    $region19: #{segmenter_forward.3} parent=1 // pred_check_branch
      %2537 = sbr.rel (0) target = $region21
    $region20: #{segmenter_forward.3} parent=1 // pred_region
      %2538 = dma.done [#allocation3], 4096
    $region21: #{segmenter_forward.3} parent=1 // pred_fallthru
      _
    %2539 = vsyncpa [#allocation3], 1

</llo_original>
